<compile_context>
chip_gen: v7x
topology: tpu7x:2x2x1
jax: 0.10.0
libtpu: 0.0.40
codegen_flags: <defaults>
</compile_context>

<pallas_src>
import functools

import numpy as np
import jax
import jax.numpy as jnp
from jax.experimental import pallas as pl
from jax.experimental.pallas import tpu as pltpu

EPS = 1e-5                       # nn.LayerNorm default eps
VMEM_LIMIT = 48 * 1024 * 1024    # > v5e's 16 MiB default, < v7x's 64 MiB physical


def _round_up(x, m):
    return (x + m - 1) // m * m


def _pick_h_tile(H, th):
    """Largest multiple of 128 that divides H and is <= th (or H itself)."""
    if H <= th:
        return H
    t = (th // 128) * 128
    while t >= 128:
        if H % t == 0:
            return t
        t -= 128
    return H


def _layer_norm(v, g, b):
    mu = jnp.mean(v, axis=-1, keepdims=True)
    var = jnp.mean((v - mu) ** 2, axis=-1, keepdims=True)
    return (v - mu) * jax.lax.rsqrt(var + EPS) * g + b


# ----------------------------------------------------------------------------
# Pallas kernels
# ----------------------------------------------------------------------------
def _block_kernel(*refs, h_axis, has_pe):
    """One TransformerBlock on a row tile, with the FF hidden dim H tiled over
    grid axis `h_axis` ("arbitrary", innermost) and accumulated in f32 scratch.

    Grid iteration order puts the H axis innermost, so for each row tile:
      h == 0      : (optional PE add) -> proj(x)+x -> LayerNorm1 -> n1 scratch
      every h     : acc += relu(n1 @ w1_tile + b1_tile) @ w2_tile
      h == nh - 1 : LayerNorm2(acc + b2 + n1) -> output
    """
    if has_pe:
        (x_ref, pe_ref, wp_ref, bp_ref, g1_ref, be1_ref,
         w1_ref, bb1_ref, w2_ref, bb2_ref, g2_ref, be2_ref,
         o_ref, n1_sc, acc_sc) = refs
    else:
        (x_ref, wp_ref, bp_ref, g1_ref, be1_ref,
         w1_ref, bb1_ref, w2_ref, bb2_ref, g2_ref, be2_ref,
         o_ref, n1_sc, acc_sc) = refs
        pe_ref = None

    h = pl.program_id(h_axis)
    nh = pl.num_programs(h_axis)

    @pl.when(h == 0)
    def _init():
        x = x_ref[...].astype(jnp.float32)
        if pe_ref is not None:              # fused positional embedding add
            x = x + pe_ref[...].astype(jnp.float32)
        # "attention" (effective semantics: proj(x)) + residual, bf16 MXU / f32 acc
        a = jnp.dot(x.astype(jnp.bfloat16), wp_ref[...],
                    preferred_element_type=jnp.float32) + bp_ref[...] + x
        n1_sc[...] = _layer_norm(a, g1_ref[...], be1_ref[...])
        acc_sc[...] = jnp.zeros_like(acc_sc)

    # feed-forward, one H tile per grid step (ReLU is elementwise over H, so
    # splitting the H axis and summing partial w2 products is exact).
    n1 = n1_sc[...]
    ffh = jnp.maximum(
        jnp.dot(n1.astype(jnp.bfloat16), w1_ref[...],
                preferred_element_type=jnp.float32) + bb1_ref[...], 0.0)
    acc_sc[...] += jnp.dot(ffh.astype(jnp.bfloat16), w2_ref[...],
                           preferred_element_type=jnp.float32)

    @pl.when(h == nh - 1)
    def _finalize():
        h2 = acc_sc[...] + bb2_ref[...] + n1_sc[...]
        o_ref[...] = _layer_norm(h2, g2_ref[...], be2_ref[...]).astype(o_ref.dtype)


def _head_kernel(x_ref, w1_ref, b1_ref, w2t_ref, b2_ref, o_ref):
    """Head: Linear(D, D//4) -> ReLU -> Linear(D//4, 1) -> ReLU.

    The second linear has out_features=1, so it is a VPU reduction instead of
    a (1-column) MXU matmul.
    """
    hh = jnp.maximum(
        jnp.dot(x_ref[...].astype(jnp.bfloat16), w1_ref[...],
                preferred_element_type=jnp.float32) + b1_ref[...], 0.0)
    y = jnp.sum(hh * w2t_ref[...], axis=-1, keepdims=True) + b2_ref[...]
    o_ref[...] = jnp.maximum(y, 0.0)


# ----------------------------------------------------------------------------
# Wrappers (pallas_call plumbing)
# ----------------------------------------------------------------------------
def transformer_block_2d(x2d, p, *, tm=128, th=512):
    """One block on row-flattened activations [M, D] (rows are independent)."""
    M, D = x2d.shape
    H = p["w1"].shape[1]

    tm_eff = min(tm, _round_up(M, 8))
    M_pad = _round_up(M, tm_eff)
    if M_pad != M:
        x2d = jnp.pad(x2d, ((0, M_pad - M), (0, 0)))
    th_eff = _pick_h_tile(H, th)
    grid = (M_pad // tm_eff, H // th_eff)

    def const(shape):
        return pl.BlockSpec(shape, lambda r, h: (0, 0))

    out = pl.pallas_call(
        functools.partial(_block_kernel, h_axis=1, has_pe=False),
        out_shape=jax.ShapeDtypeStruct((M_pad, D), jnp.float32),
        grid=grid,
        in_specs=[
            pl.BlockSpec((tm_eff, D), lambda r, h: (r, 0)),   # x rows
            const((D, D)),                                    # proj W^T (bf16)
            const((1, D)), const((1, D)), const((1, D)),      # bp, ln1 gamma/beta
            pl.BlockSpec((D, th_eff), lambda r, h: (0, h)),   # ff W1^T tile (bf16)
            pl.BlockSpec((1, th_eff), lambda r, h: (0, h)),   # ff b1 tile
            pl.BlockSpec((th_eff, D), lambda r, h: (h, 0)),   # ff W2^T tile (bf16)
            const((1, D)), const((1, D)), const((1, D)),      # bb2, ln2 gamma/beta
        ],
        out_specs=pl.BlockSpec((tm_eff, D), lambda r, h: (r, 0)),
        scratch_shapes=[pltpu.VMEM((tm_eff, D), jnp.float32),   # n1
                        pltpu.VMEM((tm_eff, D), jnp.float32)],  # ff accumulator
        compiler_params=pltpu.CompilerParams(
            dimension_semantics=("parallel", "arbitrary"),
            vmem_limit_bytes=VMEM_LIMIT),
    )(x2d, p["wp"], p["bp"], p["g1"], p["be1"],
      p["w1"], p["bb1"], p["w2"], p["bb2"], p["g2"], p["be2"])
    return out[:M] if M_pad != M else out


def transformer_block_first(x3d, pe, p, *, tn=128, th=512):
    """First block, operating on [B, N, D] with the positional-embedding add
    fused into the kernel (pe row tile indexed by the sequence-tile index)."""
    B, N, D = x3d.shape
    H = p["w1"].shape[1]

    tn_eff = min(tn, _round_up(N, 8))
    N_pad = _round_up(N, tn_eff)
    if N_pad != N:
        x3d = jnp.pad(x3d, ((0, 0), (0, N_pad - N), (0, 0)))
    pe_use = pe[:N_pad] if pe.shape[0] >= N_pad else \
        jnp.pad(pe, ((0, N_pad - pe.shape[0]), (0, 0)))
    th_eff = _pick_h_tile(H, th)
    grid = (B, N_pad // tn_eff, H // th_eff)

    def const(shape):
        return pl.BlockSpec(shape, lambda b, j, h: (0, 0))

    out = pl.pallas_call(
        functools.partial(_block_kernel, h_axis=2, has_pe=True),
        out_shape=jax.ShapeDtypeStruct((B, N_pad, D), jnp.float32),
        grid=grid,
        in_specs=[
            pl.BlockSpec((None, tn_eff, D), lambda b, j, h: (b, j, 0)),  # x
            pl.BlockSpec((tn_eff, D), lambda b, j, h: (j, 0)),           # pe rows
            const((D, D)),
            const((1, D)), const((1, D)), const((1, D)),
            pl.BlockSpec((D, th_eff), lambda b, j, h: (0, h)),
            pl.BlockSpec((1, th_eff), lambda b, j, h: (0, h)),
            pl.BlockSpec((th_eff, D), lambda b, j, h: (h, 0)),
            const((1, D)), const((1, D)), const((1, D)),
        ],
        out_specs=pl.BlockSpec((None, tn_eff, D), lambda b, j, h: (b, j, 0)),
        scratch_shapes=[pltpu.VMEM((tn_eff, D), jnp.float32),
                        pltpu.VMEM((tn_eff, D), jnp.float32)],
        compiler_params=pltpu.CompilerParams(
            dimension_semantics=("parallel", "parallel", "arbitrary"),
            vmem_limit_bytes=VMEM_LIMIT),
    )(x3d, pe_use, p["wp"], p["bp"], p["g1"], p["be1"],
      p["w1"], p["bb1"], p["w2"], p["bb2"], p["g2"], p["be2"])
    return out[:, :N] if N_pad != N else out


def head_mlp(x0, p):
    Bq, D = x0.shape
    Dq = p["w1"].shape[1]
    return pl.pallas_call(
        _head_kernel,
        out_shape=jax.ShapeDtypeStruct((Bq, 1), jnp.float32),
        grid=(1,),
        in_specs=[
            pl.BlockSpec((Bq, D), lambda i: (0, 0)),
            pl.BlockSpec((D, Dq), lambda i: (0, 0)),
            pl.BlockSpec((1, Dq), lambda i: (0, 0)),
            pl.BlockSpec((1, Dq), lambda i: (0, 0)),   # w2 transposed (1, Dq)
            pl.BlockSpec((1, 1), lambda i: (0, 0)),
        ],
        out_specs=pl.BlockSpec((Bq, 1), lambda i: (0, 0)),
        compiler_params=pltpu.CompilerParams(vmem_limit_bytes=VMEM_LIMIT),
    )(x0, p["w1"], p["b1"], p["w2t"], p["b2"])


def am_transformer_forward(x, params, pe, *, tm=128, th=512):
    """x: [B, N, D] float32 -> [B, 1] float32."""
    B, N, D = x.shape
    blocks = params["blocks"]
    L = len(blocks)

    # Block 0 with the positional-embedding add fused into the kernel.
    h = transformer_block_first(x, pe, blocks[0], tn=tm, th=th)

    if L == 1:
        x0 = h[:, 0, :]
    else:
        h = h.reshape(B * N, D)
        for blk in blocks[1:-1]:
            h = transformer_block_2d(h, blk, tm=tm, th=th)
        # Only sequence position 0 feeds the head, and the (degenerate)
        # attention mixes nothing across positions, so the last block only
        # needs the [B, D] gathered rows -> skips (N-1)/N of its work.
        x0 = h.reshape(B, N, D)[:, 0, :]
        x0 = transformer_block_2d(x0, blocks[-1], tm=tm, th=th)
    return head_mlp(x0, params["head"])


# ----------------------------------------------------------------------------
# Deterministic parameter construction + pure-JAX reference
# ----------------------------------------------------------------------------
def make_pe(max_seq_len, d):
    pos = np.arange(max_seq_len, dtype=np.float64)[:, None]
    i = np.arange(d // 2, dtype=np.float64)[None, :]
    denom = np.power(10000.0, 2.0 * i / d)
    pe = np.zeros((max_seq_len, d), dtype=np.float32)
    pe[:, 0::2] = np.sin(pos / denom)
    pe[:, 1::2] = np.cos(pos / denom)
    return jnp.asarray(pe)


def init_params(key, D, expansion, L):
    """Weights feeding the MXU are stored in bf16; biases / LN params in f32."""
    H = D * expansion
    Dq = D // 4
    keys = jax.random.split(key, L + 1)
    blocks = []
    for l in range(L):
        k = jax.random.split(keys[l], 10)
        blocks.append(dict(
            wp=(0.05 * jax.random.normal(k[0], (D, D), jnp.float32)).astype(jnp.bfloat16),
            bp=0.01 * jax.random.normal(k[1], (1, D), jnp.float32),
            g1=1.0 + 0.05 * jax.random.normal(k[2], (1, D), jnp.float32),
            be1=0.01 * jax.random.normal(k[3], (1, D), jnp.float32),
            w1=(0.05 * jax.random.normal(k[4], (D, H), jnp.float32)).astype(jnp.bfloat16),
            bb1=0.01 * jax.random.normal(k[5], (1, H), jnp.float32),
            w2=(0.05 * jax.random.normal(k[6], (H, D), jnp.float32)).astype(jnp.bfloat16),
            bb2=0.01 * jax.random.normal(k[7], (1, D), jnp.float32),
            g2=1.0 + 0.05 * jax.random.normal(k[8], (1, D), jnp.float32),
            be2=0.01 * jax.random.normal(k[9], (1, D), jnp.float32),
        ))
    kh = jax.random.split(keys[L], 4)
    head = dict(
        w1=(0.05 * jax.random.normal(kh[0], (D, Dq), jnp.float32)).astype(jnp.bfloat16),
        b1=0.01 * jax.random.normal(kh[1], (1, Dq), jnp.float32),
        w2t=0.05 * jax.random.normal(kh[2], (1, Dq), jnp.float32),   # (out=1) row
        b2=0.01 * jax.random.normal(kh[3], (1, 1), jnp.float32),
    )
    # TODO(synk): qkv weights and cls_token are dead code in the PyTorch
    # forward (x.dim bug / unused token) and therefore not materialized here.
    return dict(blocks=blocks, head=head)


def reference(x, params, pe):
    """Pure-JAX reference with the same bf16-operand / f32-accumulate matmuls."""
    B, N, D = x.shape

    def ln(v, g, b):
        mu = v.mean(-1, keepdims=True)
        var = ((v - mu) ** 2).mean(-1, keepdims=True)
        return (v - mu) / jnp.sqrt(var + EPS) * g + b

    def bdot(a, w):
        return jnp.dot(a.astype(jnp.bfloat16), w, preferred_element_type=jnp.float32)

    h = x + pe[None, :N, :]
    for p in params["blocks"]:
        a = bdot(h, p["wp"]) + p["bp"] + h
        n1 = ln(a, p["g1"], p["be1"])
        ff = bdot(jnp.maximum(bdot(n1, p["w1"]) + p["bb1"], 0.0), p["w2"]) + p["bb2"]
        h = ln(ff + n1, p["g2"], p["be2"])
    x0 = h[:, 0, :]
    ph = params["head"]
    hh = jnp.maximum(bdot(x0, ph["w1"]) + ph["b1"], 0.0)
    y = jnp.sum(hh * ph["w2t"], axis=-1, keepdims=True) + ph["b2"]
    return jnp.maximum(y, 0.0)


# ----------------------------------------------------------------------------
if __name__ == "__main__":
    # Small-shape analog of AMTransformer(embed_dim=2560, n_heads=10, L=4,
    # expansion_factor=4, seq_length=300) with x: [B, N, D].
    B, N, D = 2, 16, 128
    n_heads = 8
    assert D % n_heads == 0        # mirrors the module's __init__ assert
    expansion, L, max_seq = 4, 4, 300

    key = jax.random.PRNGKey(0)
    kx, kp = jax.random.split(key)
    x = jax.random.normal(kx, (B, N, D), jnp.float32)
    params = init_params(kp, D, expansion, L)
    pe = make_pe(max_seq, D)

    # th=256 so the demo (H=512) exercises the H-reduction/accumulator path;
    # at real shapes (H=10240) th=512 keeps weight tiles ~1.3 MB bf16 each.
    fwd = jax.jit(lambda xx, pp, pe_: am_transformer_forward(xx, pp, pe_, tm=128, th=256))
    out = jax.block_until_ready(fwd(x, params, pe))

    ref = reference(x, params, pe)
    np.testing.assert_allclose(np.asarray(out), np.asarray(ref),
                               rtol=1e-2, atol=1e-2)
    assert out.shape == (B, 1)
    print("KERNEL_OK")
</pallas_src>

<mosaic_0001>
module attributes {stable_mosaic.version = 11 : i64} {
  func.func @_block_kernel(%arg0: i32, %arg1: i32, %arg2: memref<32x128xf32, #tpu.memory_space<vmem>>, %arg3: memref<128x128xbf16, #tpu.memory_space<vmem>>, %arg4: memref<1x128xf32, #tpu.memory_space<vmem>>, %arg5: memref<1x128xf32, #tpu.memory_space<vmem>>, %arg6: memref<1x128xf32, #tpu.memory_space<vmem>>, %arg7: memref<128x256xbf16, #tpu.memory_space<vmem>>, %arg8: memref<1x256xf32, #tpu.memory_space<vmem>>, %arg9: memref<256x128xbf16, #tpu.memory_space<vmem>>, %arg10: memref<1x128xf32, #tpu.memory_space<vmem>>, %arg11: memref<1x128xf32, #tpu.memory_space<vmem>>, %arg12: memref<1x128xf32, #tpu.memory_space<vmem>>, %arg13: memref<32x128xf32, #tpu.memory_space<vmem>>, %arg14: memref<32x128xf32, #tpu.memory_space<vmem>>, %arg15: memref<32x128xf32, #tpu.memory_space<vmem>>) attributes {dimension_semantics = [#tpu.dimension_semantics<parallel>, #tpu.dimension_semantics<arbitrary>], iteration_bounds = array<i64: 1, 2>, scalar_prefetch = 0 : i64, scratch_operands = 2 : i64, tpu.core_type = #tpu.core_type<tc>, window_params = [{transform_indices = @transform_0, window_bounds = array<i64: 32, 128>}, {pipeline_mode = #tpu.pipeline_mode<synchronous>, transform_indices = @transform_1, window_bounds = array<i64: 128, 128>}, {pipeline_mode = #tpu.pipeline_mode<synchronous>, transform_indices = @transform_2, window_bounds = array<i64: 1, 128>}, {pipeline_mode = #tpu.pipeline_mode<synchronous>, transform_indices = @transform_3, window_bounds = array<i64: 1, 128>}, {pipeline_mode = #tpu.pipeline_mode<synchronous>, transform_indices = @transform_4, window_bounds = array<i64: 1, 128>}, {transform_indices = @transform_5, window_bounds = array<i64: 128, 256>}, {transform_indices = @transform_6, window_bounds = array<i64: 1, 256>}, {transform_indices = @transform_7, window_bounds = array<i64: 256, 128>}, {pipeline_mode = #tpu.pipeline_mode<synchronous>, transform_indices = @transform_8, window_bounds = array<i64: 1, 128>}, {pipeline_mode = #tpu.pipeline_mode<synchronous>, transform_indices = @transform_9, window_bounds = array<i64: 1, 128>}, {pipeline_mode = #tpu.pipeline_mode<synchronous>, transform_indices = @transform_10, window_bounds = array<i64: 1, 128>}, {transform_indices = @transform_11, window_bounds = array<i64: 32, 128>}]} {
    %c0_i32 = arith.constant 0 : i32
    %0 = arith.cmpi eq, %arg1, %c0_i32 : i32
    %1 = arith.extui %0 : i1 to i32
    %c0_i32_0 = arith.constant 0 : i32
    %2 = arith.cmpi ne, %1, %c0_i32_0 : i32
    scf.if %2 {
      %c0_15 = arith.constant 0 : index
      %c0_16 = arith.constant 0 : index
      %21 = vector.load %arg2[%c0_15, %c0_16] : memref<32x128xf32, #tpu.memory_space<vmem>>, vector<32x128xf32>
      %22 = arith.truncf %21 : vector<32x128xf32> to vector<32x128xbf16>
      %c0_17 = arith.constant 0 : index
      %c0_18 = arith.constant 0 : index
      %23 = vector.load %arg3[%c0_17, %c0_18] : memref<128x128xbf16, #tpu.memory_space<vmem>>, vector<128x128xbf16>
      %cst_19 = arith.constant dense<0.000000e+00> : vector<32x128xf32>
      %24 = tpu.matmul %22, %23, %cst_19 {dimension_numbers = #tpu.dot_dimension_numbers<[1], [0], [0], [1], [0, 0, 1, 1], [], []>} : vector<32x128xbf16>, vector<128x128xbf16>, vector<32x128xf32> -> vector<32x128xf32>
      %c0_20 = arith.constant 0 : index
      %c0_21 = arith.constant 0 : index
      %25 = vector.load %arg4[%c0_20, %c0_21] : memref<1x128xf32, #tpu.memory_space<vmem>>, vector<1x128xf32>
      %26 = vector.broadcast %25 : vector<1x128xf32> to vector<32x128xf32>
      %27 = arith.addf %24, %26 : vector<32x128xf32>
      %28 = arith.addf %27, %21 : vector<32x128xf32>
      %c0_22 = arith.constant 0 : index
      %c0_23 = arith.constant 0 : index
      %29 = vector.load %arg5[%c0_22, %c0_23] : memref<1x128xf32, #tpu.memory_space<vmem>>, vector<1x128xf32>
      %c0_24 = arith.constant 0 : index
      %c0_25 = arith.constant 0 : index
      %30 = vector.load %arg6[%c0_24, %c0_25] : memref<1x128xf32, #tpu.memory_space<vmem>>, vector<1x128xf32>
      %cst_26 = arith.constant dense<0.000000e+00> : vector<32xf32>
      %31 = vector.multi_reduction <add>, %28, %cst_26 [1] : vector<32x128xf32> to vector<32xf32>
      %32 = vector.shape_cast %31 : vector<32xf32> to vector<32x1xf32>
      %cst_27 = arith.constant 1.280000e+02 : f32
      %33 = vector.broadcast %cst_27 : f32 to vector<32x1xf32>
      %34 = arith.divf %32, %33 : vector<32x1xf32>
      %35 = vector.broadcast %34 : vector<32x1xf32> to vector<32x128xf32>
      %36 = arith.subf %28, %35 : vector<32x128xf32>
      %37 = arith.mulf %36, %36 : vector<32x128xf32>
      %cst_28 = arith.constant dense<0.000000e+00> : vector<32xf32>
      %38 = vector.multi_reduction <add>, %37, %cst_28 [1] : vector<32x128xf32> to vector<32xf32>
      %39 = vector.shape_cast %38 : vector<32xf32> to vector<32x1xf32>
      %cst_29 = arith.constant 1.280000e+02 : f32
      %40 = vector.broadcast %cst_29 : f32 to vector<32x1xf32>
      %41 = arith.divf %39, %40 : vector<32x1xf32>
      %42 = vector.broadcast %34 : vector<32x1xf32> to vector<32x128xf32>
      %43 = arith.subf %28, %42 : vector<32x128xf32>
      %cst_30 = arith.constant 9.99999974E-6 : f32
      %44 = vector.broadcast %cst_30 : f32 to vector<32x1xf32>
      %45 = arith.addf %41, %44 : vector<32x1xf32>
      %46 = math.rsqrt %45 : vector<32x1xf32>
      %47 = vector.broadcast %46 : vector<32x1xf32> to vector<32x128xf32>
      %48 = arith.mulf %43, %47 : vector<32x128xf32>
      %49 = vector.broadcast %29 : vector<1x128xf32> to vector<32x128xf32>
      %50 = arith.mulf %48, %49 : vector<32x128xf32>
      %51 = vector.broadcast %30 : vector<1x128xf32> to vector<32x128xf32>
      %52 = arith.addf %50, %51 : vector<32x128xf32>
      %c0_31 = arith.constant 0 : index
      %c0_32 = arith.constant 0 : index
      %53 = vector.load %arg14[%c0_31, %c0_32] : memref<32x128xf32, #tpu.memory_space<vmem>>, vector<32x128xf32>
      tpu.vector_store %arg14[%c0_31, %c0_32], %52 {strides = array<i32>} : memref<32x128xf32, #tpu.memory_space<vmem>>, vector<32x128xf32>,
      %cst_33 = arith.constant 0.000000e+00 : f32
      %54 = vector.broadcast %cst_33 : f32 to vector<32x128xf32>
      %c0_34 = arith.constant 0 : index
      %c0_35 = arith.constant 0 : index
      %55 = vector.load %arg15[%c0_34, %c0_35] : memref<32x128xf32, #tpu.memory_space<vmem>>, vector<32x128xf32>
      tpu.vector_store %arg15[%c0_34, %c0_35], %54 {strides = array<i32>} : memref<32x128xf32, #tpu.memory_space<vmem>>, vector<32x128xf32>,
    } else {
    }
    %c0 = arith.constant 0 : index
    %c0_1 = arith.constant 0 : index
    %3 = vector.load %arg14[%c0, %c0_1] : memref<32x128xf32, #tpu.memory_space<vmem>>, vector<32x128xf32>
    %4 = arith.truncf %3 : vector<32x128xf32> to vector<32x128xbf16>
    %c0_2 = arith.constant 0 : index
    %c0_3 = arith.constant 0 : index
    %5 = vector.load %arg7[%c0_2, %c0_3] : memref<128x256xbf16, #tpu.memory_space<vmem>>, vector<128x256xbf16>
    %cst = arith.constant dense<0.000000e+00> : vector<32x256xf32>
    %6 = tpu.matmul %4, %5, %cst {dimension_numbers = #tpu.dot_dimension_numbers<[1], [0], [0], [1], [0, 0, 1, 1], [], []>} : vector<32x128xbf16>, vector<128x256xbf16>, vector<32x256xf32> -> vector<32x256xf32>
    %c0_4 = arith.constant 0 : index
    %c0_5 = arith.constant 0 : index
    %7 = vector.load %arg8[%c0_4, %c0_5] : memref<1x256xf32, #tpu.memory_space<vmem>>, vector<1x256xf32>
    %8 = vector.broadcast %7 : vector<1x256xf32> to vector<32x256xf32>
    %9 = arith.addf %6, %8 : vector<32x256xf32>
    %cst_6 = arith.constant 0.000000e+00 : f32
    %10 = vector.broadcast %cst_6 : f32 to vector<32x256xf32>
    %11 = arith.maximumf %9, %10 : vector<32x256xf32>
    %c0_7 = arith.constant 0 : index
    %c0_8 = arith.constant 0 : index
    %12 = vector.load %arg15[%c0_7, %c0_8] : memref<32x128xf32, #tpu.memory_space<vmem>>, vector<32x128xf32>
    %13 = arith.truncf %11 : vector<32x256xf32> to vector<32x256xbf16>
    %c0_9 = arith.constant 0 : index
    %c0_10 = arith.constant 0 : index
    %14 = vector.load %arg9[%c0_9, %c0_10] : memref<256x128xbf16, #tpu.memory_space<vmem>>, vector<256x128xbf16>
    %cst_11 = arith.constant dense<0.000000e+00> : vector<32x128xf32>
    %15 = tpu.matmul %13, %14, %cst_11 {dimension_numbers = #tpu.dot_dimension_numbers<[1], [0], [0], [1], [0, 0, 1, 1], [], []>} : vector<32x256xbf16>, vector<256x128xbf16>, vector<32x128xf32> -> vector<32x128xf32>
    %16 = arith.addf %12, %15 : vector<32x128xf32>
    %c0_12 = arith.constant 0 : index
    %c0_13 = arith.constant 0 : index
    %17 = vector.load %arg15[%c0_12, %c0_13] : memref<32x128xf32, #tpu.memory_space<vmem>>, vector<32x128xf32>
    tpu.vector_store %arg15[%c0_12, %c0_13], %16 {strides = array<i32>} : memref<32x128xf32, #tpu.memory_space<vmem>>, vector<32x128xf32>,
    %c1_i32 = arith.constant 1 : i32
    %18 = arith.cmpi eq, %arg1, %c1_i32 : i32
    %19 = arith.extui %18 : i1 to i32
    %c0_i32_14 = arith.constant 0 : i32
    %20 = arith.cmpi ne, %19, %c0_i32_14 : i32
    scf.if %20 {
      %c0_15 = arith.constant 0 : index
      %c0_16 = arith.constant 0 : index
      %21 = vector.load %arg15[%c0_15, %c0_16] : memref<32x128xf32, #tpu.memory_space<vmem>>, vector<32x128xf32>
      %c0_17 = arith.constant 0 : index
      %c0_18 = arith.constant 0 : index
      %22 = vector.load %arg10[%c0_17, %c0_18] : memref<1x128xf32, #tpu.memory_space<vmem>>, vector<1x128xf32>
      %23 = vector.broadcast %22 : vector<1x128xf32> to vector<32x128xf32>
      %24 = arith.addf %21, %23 : vector<32x128xf32>
      %c0_19 = arith.constant 0 : index
      %c0_20 = arith.constant 0 : index
      %25 = vector.load %arg14[%c0_19, %c0_20] : memref<32x128xf32, #tpu.memory_space<vmem>>, vector<32x128xf32>
      %26 = arith.addf %24, %25 : vector<32x128xf32>
      %c0_21 = arith.constant 0 : index
      %c0_22 = arith.constant 0 : index
      %27 = vector.load %arg11[%c0_21, %c0_22] : memref<1x128xf32, #tpu.memory_space<vmem>>, vector<1x128xf32>
      %c0_23 = arith.constant 0 : index
      %c0_24 = arith.constant 0 : index
      %28 = vector.load %arg12[%c0_23, %c0_24] : memref<1x128xf32, #tpu.memory_space<vmem>>, vector<1x128xf32>
      %cst_25 = arith.constant dense<0.000000e+00> : vector<32xf32>
      %29 = vector.multi_reduction <add>, %26, %cst_25 [1] : vector<32x128xf32> to vector<32xf32>
      %30 = vector.shape_cast %29 : vector<32xf32> to vector<32x1xf32>
      %cst_26 = arith.constant 1.280000e+02 : f32
      %31 = vector.broadcast %cst_26 : f32 to vector<32x1xf32>
      %32 = arith.divf %30, %31 : vector<32x1xf32>
      %33 = vector.broadcast %32 : vector<32x1xf32> to vector<32x128xf32>
      %34 = arith.subf %26, %33 : vector<32x128xf32>
      %35 = arith.mulf %34, %34 : vector<32x128xf32>
      %cst_27 = arith.constant dense<0.000000e+00> : vector<32xf32>
      %36 = vector.multi_reduction <add>, %35, %cst_27 [1] : vector<32x128xf32> to vector<32xf32>
      %37 = vector.shape_cast %36 : vector<32xf32> to vector<32x1xf32>
      %cst_28 = arith.constant 1.280000e+02 : f32
      %38 = vector.broadcast %cst_28 : f32 to vector<32x1xf32>
      %39 = arith.divf %37, %38 : vector<32x1xf32>
      %40 = vector.broadcast %32 : vector<32x1xf32> to vector<32x128xf32>
      %41 = arith.subf %26, %40 : vector<32x128xf32>
      %cst_29 = arith.constant 9.99999974E-6 : f32
      %42 = vector.broadcast %cst_29 : f32 to vector<32x1xf32>
      %43 = arith.addf %39, %42 : vector<32x1xf32>
      %44 = math.rsqrt %43 : vector<32x1xf32>
      %45 = vector.broadcast %44 : vector<32x1xf32> to vector<32x128xf32>
      %46 = arith.mulf %41, %45 : vector<32x128xf32>
      %47 = vector.broadcast %27 : vector<1x128xf32> to vector<32x128xf32>
      %48 = arith.mulf %46, %47 : vector<32x128xf32>
      %49 = vector.broadcast %28 : vector<1x128xf32> to vector<32x128xf32>
      %50 = arith.addf %48, %49 : vector<32x128xf32>
      %c0_30 = arith.constant 0 : index
      %c0_31 = arith.constant 0 : index
      %51 = vector.load %arg13[%c0_30, %c0_31] : memref<32x128xf32, #tpu.memory_space<vmem>>, vector<32x128xf32>
      tpu.vector_store %arg13[%c0_30, %c0_31], %50 {strides = array<i32>} : memref<32x128xf32, #tpu.memory_space<vmem>>, vector<32x128xf32>,
    } else {
    }
    return
  }
  func.func @transform_0(%arg0: i32, %arg1: i32) -> (i32, i32) {
    %c0_i32 = arith.constant 0 : i32
    %c0_i32_0 = arith.constant 0 : i32
    return %arg0, %c0_i32 : i32, i32
  }
  func.func @transform_1(%arg0: i32, %arg1: i32) -> (i32, i32) {
    %c0_i32 = arith.constant 0 : i32
    %c0_i32_0 = arith.constant 0 : i32
    %c0_i32_1 = arith.constant 0 : i32
    return %c0_i32, %c0_i32_0 : i32, i32
  }
  func.func @transform_2(%arg0: i32, %arg1: i32) -> (i32, i32) {
    %c0_i32 = arith.constant 0 : i32
    %c0_i32_0 = arith.constant 0 : i32
    %c0_i32_1 = arith.constant 0 : i32
    return %c0_i32, %c0_i32_0 : i32, i32
  }
  func.func @transform_3(%arg0: i32, %arg1: i32) -> (i32, i32) {
    %c0_i32 = arith.constant 0 : i32
    %c0_i32_0 = arith.constant 0 : i32
    %c0_i32_1 = arith.constant 0 : i32
    return %c0_i32, %c0_i32_0 : i32, i32
  }
  func.func @transform_4(%arg0: i32, %arg1: i32) -> (i32, i32) {
    %c0_i32 = arith.constant 0 : i32
    %c0_i32_0 = arith.constant 0 : i32
    %c0_i32_1 = arith.constant 0 : i32
    return %c0_i32, %c0_i32_0 : i32, i32
  }
  func.func @transform_5(%arg0: i32, %arg1: i32) -> (i32, i32) {
    %c0_i32 = arith.constant 0 : i32
    %c0_i32_0 = arith.constant 0 : i32
    return %c0_i32, %arg1 : i32, i32
  }
  func.func @transform_6(%arg0: i32, %arg1: i32) -> (i32, i32) {
    %c0_i32 = arith.constant 0 : i32
    %c0_i32_0 = arith.constant 0 : i32
    return %c0_i32, %arg1 : i32, i32
  }
  func.func @transform_7(%arg0: i32, %arg1: i32) -> (i32, i32) {
    %c0_i32 = arith.constant 0 : i32
    %c0_i32_0 = arith.constant 0 : i32
    return %arg1, %c0_i32 : i32, i32
  }
  func.func @transform_8(%arg0: i32, %arg1: i32) -> (i32, i32) {
    %c0_i32 = arith.constant 0 : i32
    %c0_i32_0 = arith.constant 0 : i32
    %c0_i32_1 = arith.constant 0 : i32
    return %c0_i32, %c0_i32_0 : i32, i32
  }
  func.func @transform_9(%arg0: i32, %arg1: i32) -> (i32, i32) {
    %c0_i32 = arith.constant 0 : i32
    %c0_i32_0 = arith.constant 0 : i32
    %c0_i32_1 = arith.constant 0 : i32
    return %c0_i32, %c0_i32_0 : i32, i32
  }
  func.func @transform_10(%arg0: i32, %arg1: i32) -> (i32, i32) {
    %c0_i32 = arith.constant 0 : i32
    %c0_i32_0 = arith.constant 0 : i32
    %c0_i32_1 = arith.constant 0 : i32
    return %c0_i32, %c0_i32_0 : i32, i32
  }
  func.func @transform_11(%arg0: i32, %arg1: i32) -> (i32, i32) {
    %c0_i32 = arith.constant 0 : i32
    %c0_i32_0 = arith.constant 0 : i32
    return %arg0, %c0_i32 : i32, i32
  }
}

module attributes {stable_mosaic.version = 11 : i64} {
  func.func @_block_kernel(%arg0: i32, %arg1: i32, %arg2: i32, %arg3: memref<1x16x128xf32, #tpu.memory_space<vmem>>, %arg4: memref<16x128xf32, #tpu.memory_space<vmem>>, %arg5: memref<128x128xbf16, #tpu.memory_space<vmem>>, %arg6: memref<1x128xf32, #tpu.memory_space<vmem>>, %arg7: memref<1x128xf32, #tpu.memory_space<vmem>>, %arg8: memref<1x128xf32, #tpu.memory_space<vmem>>, %arg9: memref<128x256xbf16, #tpu.memory_space<vmem>>, %arg10: memref<1x256xf32, #tpu.memory_space<vmem>>, %arg11: memref<256x128xbf16, #tpu.memory_space<vmem>>, %arg12: memref<1x128xf32, #tpu.memory_space<vmem>>, %arg13: memref<1x128xf32, #tpu.memory_space<vmem>>, %arg14: memref<1x128xf32, #tpu.memory_space<vmem>>, %arg15: memref<1x16x128xf32, #tpu.memory_space<vmem>>, %arg16: memref<16x128xf32, #tpu.memory_space<vmem>>, %arg17: memref<16x128xf32, #tpu.memory_space<vmem>>) attributes {dimension_semantics = [#tpu.dimension_semantics<parallel>, #tpu.dimension_semantics<parallel>, #tpu.dimension_semantics<arbitrary>], iteration_bounds = array<i64: 2, 1, 2>, scalar_prefetch = 0 : i64, scratch_operands = 2 : i64, tpu.core_type = #tpu.core_type<tc>, window_params = [{transform_indices = @transform_0, window_bounds = array<i64: 1, 16, 128>}, {transform_indices = @transform_1, window_bounds = array<i64: 16, 128>}, {pipeline_mode = #tpu.pipeline_mode<synchronous>, transform_indices = @transform_2, window_bounds = array<i64: 128, 128>}, {pipeline_mode = #tpu.pipeline_mode<synchronous>, transform_indices = @transform_3, window_bounds = array<i64: 1, 128>}, {pipeline_mode = #tpu.pipeline_mode<synchronous>, transform_indices = @transform_4, window_bounds = array<i64: 1, 128>}, {pipeline_mode = #tpu.pipeline_mode<synchronous>, transform_indices = @transform_5, window_bounds = array<i64: 1, 128>}, {transform_indices = @transform_6, window_bounds = array<i64: 128, 256>}, {transform_indices = @transform_7, window_bounds = array<i64: 1, 256>}, {transform_indices = @transform_8, window_bounds = array<i64: 256, 128>}, {pipeline_mode = #tpu.pipeline_mode<synchronous>, transform_indices = @transform_9, window_bounds = array<i64: 1, 128>}, {pipeline_mode = #tpu.pipeline_mode<synchronous>, transform_indices = @transform_10, window_bounds = array<i64: 1, 128>}, {pipeline_mode = #tpu.pipeline_mode<synchronous>, transform_indices = @transform_11, window_bounds = array<i64: 1, 128>}, {transform_indices = @transform_12, window_bounds = array<i64: 1, 16, 128>}]} {
    %c0_i32 = arith.constant 0 : i32
    %0 = arith.cmpi eq, %arg2, %c0_i32 : i32
    %1 = arith.extui %0 : i1 to i32
    %c0_i32_0 = arith.constant 0 : i32
    %2 = arith.cmpi ne, %1, %c0_i32_0 : i32
    scf.if %2 {
      %c0_15 = arith.constant 0 : index
      %c0_16 = arith.constant 0 : index
      %c0_17 = arith.constant 0 : index
      %21 = vector.load %arg3[%c0_15, %c0_16, %c0_17] : memref<1x16x128xf32, #tpu.memory_space<vmem>>, vector<1x16x128xf32>
      %22 = vector.shape_cast %21 : vector<1x16x128xf32> to vector<16x128xf32>
      %c0_18 = arith.constant 0 : index
      %c0_19 = arith.constant 0 : index
      %23 = vector.load %arg4[%c0_18, %c0_19] : memref<16x128xf32, #tpu.memory_space<vmem>>, vector<16x128xf32>
      %24 = arith.addf %22, %23 : vector<16x128xf32>
      %25 = arith.truncf %24 : vector<16x128xf32> to vector<16x128xbf16>
      %c0_20 = arith.constant 0 : index
      %c0_21 = arith.constant 0 : index
      %26 = vector.load %arg5[%c0_20, %c0_21] : memref<128x128xbf16, #tpu.memory_space<vmem>>, vector<128x128xbf16>
      %cst_22 = arith.constant dense<0.000000e+00> : vector<16x128xf32>
      %27 = tpu.matmul %25, %26, %cst_22 {dimension_numbers = #tpu.dot_dimension_numbers<[1], [0], [0], [1], [0, 0, 1, 1], [], []>} : vector<16x128xbf16>, vector<128x128xbf16>, vector<16x128xf32> -> vector<16x128xf32>
      %c0_23 = arith.constant 0 : index
      %c0_24 = arith.constant 0 : index
      %28 = vector.load %arg6[%c0_23, %c0_24] : memref<1x128xf32, #tpu.memory_space<vmem>>, vector<1x128xf32>
      %29 = vector.broadcast %28 : vector<1x128xf32> to vector<16x128xf32>
      %30 = arith.addf %27, %29 : vector<16x128xf32>
      %31 = arith.addf %30, %24 : vector<16x128xf32>
      %c0_25 = arith.constant 0 : index
      %c0_26 = arith.constant 0 : index
      %32 = vector.load %arg7[%c0_25, %c0_26] : memref<1x128xf32, #tpu.memory_space<vmem>>, vector<1x128xf32>
      %c0_27 = arith.constant 0 : index
      %c0_28 = arith.constant 0 : index
      %33 = vector.load %arg8[%c0_27, %c0_28] : memref<1x128xf32, #tpu.memory_space<vmem>>, vector<1x128xf32>
      %cst_29 = arith.constant dense<0.000000e+00> : vector<16xf32>
      %34 = vector.multi_reduction <add>, %31, %cst_29 [1] : vector<16x128xf32> to vector<16xf32>
      %35 = vector.shape_cast %34 : vector<16xf32> to vector<16x1xf32>
      %cst_30 = arith.constant 1.280000e+02 : f32
      %36 = vector.broadcast %cst_30 : f32 to vector<16x1xf32>
      %37 = arith.divf %35, %36 : vector<16x1xf32>
      %38 = vector.broadcast %37 : vector<16x1xf32> to vector<16x128xf32>
      %39 = arith.subf %31, %38 : vector<16x128xf32>
      %40 = arith.mulf %39, %39 : vector<16x128xf32>
      %cst_31 = arith.constant dense<0.000000e+00> : vector<16xf32>
      %41 = vector.multi_reduction <add>, %40, %cst_31 [1] : vector<16x128xf32> to vector<16xf32>
      %42 = vector.shape_cast %41 : vector<16xf32> to vector<16x1xf32>
      %cst_32 = arith.constant 1.280000e+02 : f32
      %43 = vector.broadcast %cst_32 : f32 to vector<16x1xf32>
      %44 = arith.divf %42, %43 : vector<16x1xf32>
      %45 = vector.broadcast %37 : vector<16x1xf32> to vector<16x128xf32>
      %46 = arith.subf %31, %45 : vector<16x128xf32>
      %cst_33 = arith.constant 9.99999974E-6 : f32
      %47 = vector.broadcast %cst_33 : f32 to vector<16x1xf32>
      %48 = arith.addf %44, %47 : vector<16x1xf32>
      %49 = math.rsqrt %48 : vector<16x1xf32>
      %50 = vector.broadcast %49 : vector<16x1xf32> to vector<16x128xf32>
      %51 = arith.mulf %46, %50 : vector<16x128xf32>
      %52 = vector.broadcast %32 : vector<1x128xf32> to vector<16x128xf32>
      %53 = arith.mulf %51, %52 : vector<16x128xf32>
      %54 = vector.broadcast %33 : vector<1x128xf32> to vector<16x128xf32>
      %55 = arith.addf %53, %54 : vector<16x128xf32>
      %c0_34 = arith.constant 0 : index
      %c0_35 = arith.constant 0 : index
      %56 = vector.load %arg16[%c0_34, %c0_35] : memref<16x128xf32, #tpu.memory_space<vmem>>, vector<16x128xf32>
      tpu.vector_store %arg16[%c0_34, %c0_35], %55 {strides = array<i32>} : memref<16x128xf32, #tpu.memory_space<vmem>>, vector<16x128xf32>,
      %cst_36 = arith.constant 0.000000e+00 : f32
      %57 = vector.broadcast %cst_36 : f32 to vector<16x128xf32>
      %c0_37 = arith.constant 0 : index
      %c0_38 = arith.constant 0 : index
      %58 = vector.load %arg17[%c0_37, %c0_38] : memref<16x128xf32, #tpu.memory_space<vmem>>, vector<16x128xf32>
      tpu.vector_store %arg17[%c0_37, %c0_38], %57 {strides = array<i32>} : memref<16x128xf32, #tpu.memory_space<vmem>>, vector<16x128xf32>,
    } else {
    }
    %c0 = arith.constant 0 : index
    %c0_1 = arith.constant 0 : index
    %3 = vector.load %arg16[%c0, %c0_1] : memref<16x128xf32, #tpu.memory_space<vmem>>, vector<16x128xf32>
    %4 = arith.truncf %3 : vector<16x128xf32> to vector<16x128xbf16>
    %c0_2 = arith.constant 0 : index
    %c0_3 = arith.constant 0 : index
    %5 = vector.load %arg9[%c0_2, %c0_3] : memref<128x256xbf16, #tpu.memory_space<vmem>>, vector<128x256xbf16>
    %cst = arith.constant dense<0.000000e+00> : vector<16x256xf32>
    %6 = tpu.matmul %4, %5, %cst {dimension_numbers = #tpu.dot_dimension_numbers<[1], [0], [0], [1], [0, 0, 1, 1], [], []>} : vector<16x128xbf16>, vector<128x256xbf16>, vector<16x256xf32> -> vector<16x256xf32>
    %c0_4 = arith.constant 0 : index
    %c0_5 = arith.constant 0 : index
    %7 = vector.load %arg10[%c0_4, %c0_5] : memref<1x256xf32, #tpu.memory_space<vmem>>, vector<1x256xf32>
    %8 = vector.broadcast %7 : vector<1x256xf32> to vector<16x256xf32>
    %9 = arith.addf %6, %8 : vector<16x256xf32>
    %cst_6 = arith.constant 0.000000e+00 : f32
    %10 = vector.broadcast %cst_6 : f32 to vector<16x256xf32>
    %11 = arith.maximumf %9, %10 : vector<16x256xf32>
    %c0_7 = arith.constant 0 : index
    %c0_8 = arith.constant 0 : index
    %12 = vector.load %arg17[%c0_7, %c0_8] : memref<16x128xf32, #tpu.memory_space<vmem>>, vector<16x128xf32>
    %13 = arith.truncf %11 : vector<16x256xf32> to vector<16x256xbf16>
    %c0_9 = arith.constant 0 : index
    %c0_10 = arith.constant 0 : index
    %14 = vector.load %arg11[%c0_9, %c0_10] : memref<256x128xbf16, #tpu.memory_space<vmem>>, vector<256x128xbf16>
    %cst_11 = arith.constant dense<0.000000e+00> : vector<16x128xf32>
    %15 = tpu.matmul %13, %14, %cst_11 {dimension_numbers = #tpu.dot_dimension_numbers<[1], [0], [0], [1], [0, 0, 1, 1], [], []>} : vector<16x256xbf16>, vector<256x128xbf16>, vector<16x128xf32> -> vector<16x128xf32>
    %16 = arith.addf %12, %15 : vector<16x128xf32>
    %c0_12 = arith.constant 0 : index
    %c0_13 = arith.constant 0 : index
    %17 = vector.load %arg17[%c0_12, %c0_13] : memref<16x128xf32, #tpu.memory_space<vmem>>, vector<16x128xf32>
    tpu.vector_store %arg17[%c0_12, %c0_13], %16 {strides = array<i32>} : memref<16x128xf32, #tpu.memory_space<vmem>>, vector<16x128xf32>,
    %c1_i32 = arith.constant 1 : i32
    %18 = arith.cmpi eq, %arg2, %c1_i32 : i32
    %19 = arith.extui %18 : i1 to i32
    %c0_i32_14 = arith.constant 0 : i32
    %20 = arith.cmpi ne, %19, %c0_i32_14 : i32
    scf.if %20 {
      %c0_15 = arith.constant 0 : index
      %c0_16 = arith.constant 0 : index
      %21 = vector.load %arg17[%c0_15, %c0_16] : memref<16x128xf32, #tpu.memory_space<vmem>>, vector<16x128xf32>
      %c0_17 = arith.constant 0 : index
      %c0_18 = arith.constant 0 : index
      %22 = vector.load %arg12[%c0_17, %c0_18] : memref<1x128xf32, #tpu.memory_space<vmem>>, vector<1x128xf32>
      %23 = vector.broadcast %22 : vector<1x128xf32> to vector<16x128xf32>
      %24 = arith.addf %21, %23 : vector<16x128xf32>
      %c0_19 = arith.constant 0 : index
      %c0_20 = arith.constant 0 : index
      %25 = vector.load %arg16[%c0_19, %c0_20] : memref<16x128xf32, #tpu.memory_space<vmem>>, vector<16x128xf32>
      %26 = arith.addf %24, %25 : vector<16x128xf32>
      %c0_21 = arith.constant 0 : index
      %c0_22 = arith.constant 0 : index
      %27 = vector.load %arg13[%c0_21, %c0_22] : memref<1x128xf32, #tpu.memory_space<vmem>>, vector<1x128xf32>
      %c0_23 = arith.constant 0 : index
      %c0_24 = arith.constant 0 : index
      %28 = vector.load %arg14[%c0_23, %c0_24] : memref<1x128xf32, #tpu.memory_space<vmem>>, vector<1x128xf32>
      %cst_25 = arith.constant dense<0.000000e+00> : vector<16xf32>
      %29 = vector.multi_reduction <add>, %26, %cst_25 [1] : vector<16x128xf32> to vector<16xf32>
      %30 = vector.shape_cast %29 : vector<16xf32> to vector<16x1xf32>
      %cst_26 = arith.constant 1.280000e+02 : f32
      %31 = vector.broadcast %cst_26 : f32 to vector<16x1xf32>
      %32 = arith.divf %30, %31 : vector<16x1xf32>
      %33 = vector.broadcast %32 : vector<16x1xf32> to vector<16x128xf32>
      %34 = arith.subf %26, %33 : vector<16x128xf32>
      %35 = arith.mulf %34, %34 : vector<16x128xf32>
      %cst_27 = arith.constant dense<0.000000e+00> : vector<16xf32>
      %36 = vector.multi_reduction <add>, %35, %cst_27 [1] : vector<16x128xf32> to vector<16xf32>
      %37 = vector.shape_cast %36 : vector<16xf32> to vector<16x1xf32>
      %cst_28 = arith.constant 1.280000e+02 : f32
      %38 = vector.broadcast %cst_28 : f32 to vector<16x1xf32>
      %39 = arith.divf %37, %38 : vector<16x1xf32>
      %40 = vector.broadcast %32 : vector<16x1xf32> to vector<16x128xf32>
      %41 = arith.subf %26, %40 : vector<16x128xf32>
      %cst_29 = arith.constant 9.99999974E-6 : f32
      %42 = vector.broadcast %cst_29 : f32 to vector<16x1xf32>
      %43 = arith.addf %39, %42 : vector<16x1xf32>
      %44 = math.rsqrt %43 : vector<16x1xf32>
      %45 = vector.broadcast %44 : vector<16x1xf32> to vector<16x128xf32>
      %46 = arith.mulf %41, %45 : vector<16x128xf32>
      %47 = vector.broadcast %27 : vector<1x128xf32> to vector<16x128xf32>
      %48 = arith.mulf %46, %47 : vector<16x128xf32>
      %49 = vector.broadcast %28 : vector<1x128xf32> to vector<16x128xf32>
      %50 = arith.addf %48, %49 : vector<16x128xf32>
      %c0_30 = arith.constant 0 : index
      %c0_31 = arith.constant 0 : index
      %c0_32 = arith.constant 0 : index
      %51 = vector.load %arg15[%c0_30, %c0_31, %c0_32] : memref<1x16x128xf32, #tpu.memory_space<vmem>>, vector<1x16x128xf32>
      %52 = vector.shape_cast %51 : vector<1x16x128xf32> to vector<16x128xf32>
      %53 = vector.shape_cast %50 : vector<16x128xf32> to vector<1x16x128xf32>
      tpu.vector_store %arg15[%c0_30, %c0_31, %c0_32], %53 {strides = array<i32>} : memref<1x16x128xf32, #tpu.memory_space<vmem>>, vector<1x16x128xf32>,
    } else {
    }
    return
  }
  func.func @transform_0(%arg0: i32, %arg1: i32, %arg2: i32) -> (i32, i32, i32) {
    %c0_i32 = arith.constant 0 : i32
    %c0_i32_0 = arith.constant 0 : i32
    return %arg0, %arg1, %c0_i32 : i32, i32, i32
  }
  func.func @transform_1(%arg0: i32, %arg1: i32, %arg2: i32) -> (i32, i32) {
    %c0_i32 = arith.constant 0 : i32
    %c0_i32_0 = arith.constant 0 : i32
    return %arg1, %c0_i32 : i32, i32
  }
  func.func @transform_2(%arg0: i32, %arg1: i32, %arg2: i32) -> (i32, i32) {
    %c0_i32 = arith.constant 0 : i32
    %c0_i32_0 = arith.constant 0 : i32
    %c0_i32_1 = arith.constant 0 : i32
    return %c0_i32, %c0_i32_0 : i32, i32
  }
  func.func @transform_3(%arg0: i32, %arg1: i32, %arg2: i32) -> (i32, i32) {
    %c0_i32 = arith.constant 0 : i32
    %c0_i32_0 = arith.constant 0 : i32
    %c0_i32_1 = arith.constant 0 : i32
    return %c0_i32, %c0_i32_0 : i32, i32
  }
  func.func @transform_4(%arg0: i32, %arg1: i32, %arg2: i32) -> (i32, i32) {
    %c0_i32 = arith.constant 0 : i32
    %c0_i32_0 = arith.constant 0 : i32
    %c0_i32_1 = arith.constant 0 : i32
    return %c0_i32, %c0_i32_0 : i32, i32
  }
  func.func @transform_5(%arg0: i32, %arg1: i32, %arg2: i32) -> (i32, i32) {
    %c0_i32 = arith.constant 0 : i32
    %c0_i32_0 = arith.constant 0 : i32
    %c0_i32_1 = arith.constant 0 : i32
    return %c0_i32, %c0_i32_0 : i32, i32
  }
  func.func @transform_6(%arg0: i32, %arg1: i32, %arg2: i32) -> (i32, i32) {
    %c0_i32 = arith.constant 0 : i32
    %c0_i32_0 = arith.constant 0 : i32
    return %c0_i32, %arg2 : i32, i32
  }
  func.func @transform_7(%arg0: i32, %arg1: i32, %arg2: i32) -> (i32, i32) {
    %c0_i32 = arith.constant 0 : i32
    %c0_i32_0 = arith.constant 0 : i32
    return %c0_i32, %arg2 : i32, i32
  }
  func.func @transform_8(%arg0: i32, %arg1: i32, %arg2: i32) -> (i32, i32) {
    %c0_i32 = arith.constant 0 : i32
    %c0_i32_0 = arith.constant 0 : i32
    return %arg2, %c0_i32 : i32, i32
  }
  func.func @transform_9(%arg0: i32, %arg1: i32, %arg2: i32) -> (i32, i32) {
    %c0_i32 = arith.constant 0 : i32
    %c0_i32_0 = arith.constant 0 : i32
    %c0_i32_1 = arith.constant 0 : i32
    return %c0_i32, %c0_i32_0 : i32, i32
  }
  func.func @transform_10(%arg0: i32, %arg1: i32, %arg2: i32) -> (i32, i32) {
    %c0_i32 = arith.constant 0 : i32
    %c0_i32_0 = arith.constant 0 : i32
    %c0_i32_1 = arith.constant 0 : i32
    return %c0_i32, %c0_i32_0 : i32, i32
  }
  func.func @transform_11(%arg0: i32, %arg1: i32, %arg2: i32) -> (i32, i32) {
    %c0_i32 = arith.constant 0 : i32
    %c0_i32_0 = arith.constant 0 : i32
    %c0_i32_1 = arith.constant 0 : i32
    return %c0_i32, %c0_i32_0 : i32, i32
  }
  func.func @transform_12(%arg0: i32, %arg1: i32, %arg2: i32) -> (i32, i32, i32) {
    %c0_i32 = arith.constant 0 : i32
    %c0_i32_0 = arith.constant 0 : i32
    return %arg0, %arg1, %c0_i32 : i32, i32, i32
  }
}

module attributes {stable_mosaic.version = 11 : i64} {
  func.func @_block_kernel(%arg0: i32, %arg1: i32, %arg2: memref<8x128xf32, #tpu.memory_space<vmem>>, %arg3: memref<128x128xbf16, #tpu.memory_space<vmem>>, %arg4: memref<1x128xf32, #tpu.memory_space<vmem>>, %arg5: memref<1x128xf32, #tpu.memory_space<vmem>>, %arg6: memref<1x128xf32, #tpu.memory_space<vmem>>, %arg7: memref<128x256xbf16, #tpu.memory_space<vmem>>, %arg8: memref<1x256xf32, #tpu.memory_space<vmem>>, %arg9: memref<256x128xbf16, #tpu.memory_space<vmem>>, %arg10: memref<1x128xf32, #tpu.memory_space<vmem>>, %arg11: memref<1x128xf32, #tpu.memory_space<vmem>>, %arg12: memref<1x128xf32, #tpu.memory_space<vmem>>, %arg13: memref<8x128xf32, #tpu.memory_space<vmem>>, %arg14: memref<8x128xf32, #tpu.memory_space<vmem>>, %arg15: memref<8x128xf32, #tpu.memory_space<vmem>>) attributes {dimension_semantics = [#tpu.dimension_semantics<parallel>, #tpu.dimension_semantics<arbitrary>], iteration_bounds = array<i64: 1, 2>, scalar_prefetch = 0 : i64, scratch_operands = 2 : i64, tpu.core_type = #tpu.core_type<tc>, window_params = [{transform_indices = @transform_0, window_bounds = array<i64: 8, 128>}, {pipeline_mode = #tpu.pipeline_mode<synchronous>, transform_indices = @transform_1, window_bounds = array<i64: 128, 128>}, {pipeline_mode = #tpu.pipeline_mode<synchronous>, transform_indices = @transform_2, window_bounds = array<i64: 1, 128>}, {pipeline_mode = #tpu.pipeline_mode<synchronous>, transform_indices = @transform_3, window_bounds = array<i64: 1, 128>}, {pipeline_mode = #tpu.pipeline_mode<synchronous>, transform_indices = @transform_4, window_bounds = array<i64: 1, 128>}, {transform_indices = @transform_5, window_bounds = array<i64: 128, 256>}, {transform_indices = @transform_6, window_bounds = array<i64: 1, 256>}, {transform_indices = @transform_7, window_bounds = array<i64: 256, 128>}, {pipeline_mode = #tpu.pipeline_mode<synchronous>, transform_indices = @transform_8, window_bounds = array<i64: 1, 128>}, {pipeline_mode = #tpu.pipeline_mode<synchronous>, transform_indices = @transform_9, window_bounds = array<i64: 1, 128>}, {pipeline_mode = #tpu.pipeline_mode<synchronous>, transform_indices = @transform_10, window_bounds = array<i64: 1, 128>}, {transform_indices = @transform_11, window_bounds = array<i64: 8, 128>}]} {
    %c0_i32 = arith.constant 0 : i32
    %0 = arith.cmpi eq, %arg1, %c0_i32 : i32
    %1 = arith.extui %0 : i1 to i32
    %c0_i32_0 = arith.constant 0 : i32
    %2 = arith.cmpi ne, %1, %c0_i32_0 : i32
    scf.if %2 {
      %c0_15 = arith.constant 0 : index
      %c0_16 = arith.constant 0 : index
      %21 = vector.load %arg2[%c0_15, %c0_16] : memref<8x128xf32, #tpu.memory_space<vmem>>, vector<8x128xf32>
      %22 = arith.truncf %21 : vector<8x128xf32> to vector<8x128xbf16>
      %c0_17 = arith.constant 0 : index
      %c0_18 = arith.constant 0 : index
      %23 = vector.load %arg3[%c0_17, %c0_18] : memref<128x128xbf16, #tpu.memory_space<vmem>>, vector<128x128xbf16>
      %cst_19 = arith.constant dense<0.000000e+00> : vector<8x128xf32>
      %24 = tpu.matmul %22, %23, %cst_19 {dimension_numbers = #tpu.dot_dimension_numbers<[1], [0], [0], [1], [0, 0, 1, 1], [], []>} : vector<8x128xbf16>, vector<128x128xbf16>, vector<8x128xf32> -> vector<8x128xf32>
      %c0_20 = arith.constant 0 : index
      %c0_21 = arith.constant 0 : index
      %25 = vector.load %arg4[%c0_20, %c0_21] : memref<1x128xf32, #tpu.memory_space<vmem>>, vector<1x128xf32>
      %26 = vector.broadcast %25 : vector<1x128xf32> to vector<8x128xf32>
      %27 = arith.addf %24, %26 : vector<8x128xf32>
      %28 = arith.addf %27, %21 : vector<8x128xf32>
      %c0_22 = arith.constant 0 : index
      %c0_23 = arith.constant 0 : index
      %29 = vector.load %arg5[%c0_22, %c0_23] : memref<1x128xf32, #tpu.memory_space<vmem>>, vector<1x128xf32>
      %c0_24 = arith.constant 0 : index
      %c0_25 = arith.constant 0 : index
      %30 = vector.load %arg6[%c0_24, %c0_25] : memref<1x128xf32, #tpu.memory_space<vmem>>, vector<1x128xf32>
      %cst_26 = arith.constant dense<0.000000e+00> : vector<8xf32>
      %31 = vector.multi_reduction <add>, %28, %cst_26 [1] : vector<8x128xf32> to vector<8xf32>
      %32 = vector.shape_cast %31 : vector<8xf32> to vector<8x1xf32>
      %cst_27 = arith.constant 1.280000e+02 : f32
      %33 = vector.broadcast %cst_27 : f32 to vector<8x1xf32>
      %34 = arith.divf %32, %33 : vector<8x1xf32>
      %35 = vector.broadcast %34 : vector<8x1xf32> to vector<8x128xf32>
      %36 = arith.subf %28, %35 : vector<8x128xf32>
      %37 = arith.mulf %36, %36 : vector<8x128xf32>
      %cst_28 = arith.constant dense<0.000000e+00> : vector<8xf32>
      %38 = vector.multi_reduction <add>, %37, %cst_28 [1] : vector<8x128xf32> to vector<8xf32>
      %39 = vector.shape_cast %38 : vector<8xf32> to vector<8x1xf32>
      %cst_29 = arith.constant 1.280000e+02 : f32
      %40 = vector.broadcast %cst_29 : f32 to vector<8x1xf32>
      %41 = arith.divf %39, %40 : vector<8x1xf32>
      %42 = vector.broadcast %34 : vector<8x1xf32> to vector<8x128xf32>
      %43 = arith.subf %28, %42 : vector<8x128xf32>
      %cst_30 = arith.constant 9.99999974E-6 : f32
      %44 = vector.broadcast %cst_30 : f32 to vector<8x1xf32>
      %45 = arith.addf %41, %44 : vector<8x1xf32>
      %46 = math.rsqrt %45 : vector<8x1xf32>
      %47 = vector.broadcast %46 : vector<8x1xf32> to vector<8x128xf32>
      %48 = arith.mulf %43, %47 : vector<8x128xf32>
      %49 = vector.broadcast %29 : vector<1x128xf32> to vector<8x128xf32>
      %50 = arith.mulf %48, %49 : vector<8x128xf32>
      %51 = vector.broadcast %30 : vector<1x128xf32> to vector<8x128xf32>
      %52 = arith.addf %50, %51 : vector<8x128xf32>
      %c0_31 = arith.constant 0 : index
      %c0_32 = arith.constant 0 : index
      %53 = vector.load %arg14[%c0_31, %c0_32] : memref<8x128xf32, #tpu.memory_space<vmem>>, vector<8x128xf32>
      tpu.vector_store %arg14[%c0_31, %c0_32], %52 {strides = array<i32>} : memref<8x128xf32, #tpu.memory_space<vmem>>, vector<8x128xf32>,
      %cst_33 = arith.constant 0.000000e+00 : f32
      %54 = vector.broadcast %cst_33 : f32 to vector<8x128xf32>
      %c0_34 = arith.constant 0 : index
      %c0_35 = arith.constant 0 : index
      %55 = vector.load %arg15[%c0_34, %c0_35] : memref<8x128xf32, #tpu.memory_space<vmem>>, vector<8x128xf32>
      tpu.vector_store %arg15[%c0_34, %c0_35], %54 {strides = array<i32>} : memref<8x128xf32, #tpu.memory_space<vmem>>, vector<8x128xf32>,
    } else {
    }
    %c0 = arith.constant 0 : index
    %c0_1 = arith.constant 0 : index
    %3 = vector.load %arg14[%c0, %c0_1] : memref<8x128xf32, #tpu.memory_space<vmem>>, vector<8x128xf32>
    %4 = arith.truncf %3 : vector<8x128xf32> to vector<8x128xbf16>
    %c0_2 = arith.constant 0 : index
    %c0_3 = arith.constant 0 : index
    %5 = vector.load %arg7[%c0_2, %c0_3] : memref<128x256xbf16, #tpu.memory_space<vmem>>, vector<128x256xbf16>
    %cst = arith.constant dense<0.000000e+00> : vector<8x256xf32>
    %6 = tpu.matmul %4, %5, %cst {dimension_numbers = #tpu.dot_dimension_numbers<[1], [0], [0], [1], [0, 0, 1, 1], [], []>} : vector<8x128xbf16>, vector<128x256xbf16>, vector<8x256xf32> -> vector<8x256xf32>
    %c0_4 = arith.constant 0 : index
    %c0_5 = arith.constant 0 : index
    %7 = vector.load %arg8[%c0_4, %c0_5] : memref<1x256xf32, #tpu.memory_space<vmem>>, vector<1x256xf32>
    %8 = vector.broadcast %7 : vector<1x256xf32> to vector<8x256xf32>
    %9 = arith.addf %6, %8 : vector<8x256xf32>
    %cst_6 = arith.constant 0.000000e+00 : f32
    %10 = vector.broadcast %cst_6 : f32 to vector<8x256xf32>
    %11 = arith.maximumf %9, %10 : vector<8x256xf32>
    %c0_7 = arith.constant 0 : index
    %c0_8 = arith.constant 0 : index
    %12 = vector.load %arg15[%c0_7, %c0_8] : memref<8x128xf32, #tpu.memory_space<vmem>>, vector<8x128xf32>
    %13 = arith.truncf %11 : vector<8x256xf32> to vector<8x256xbf16>
    %c0_9 = arith.constant 0 : index
    %c0_10 = arith.constant 0 : index
    %14 = vector.load %arg9[%c0_9, %c0_10] : memref<256x128xbf16, #tpu.memory_space<vmem>>, vector<256x128xbf16>
    %cst_11 = arith.constant dense<0.000000e+00> : vector<8x128xf32>
    %15 = tpu.matmul %13, %14, %cst_11 {dimension_numbers = #tpu.dot_dimension_numbers<[1], [0], [0], [1], [0, 0, 1, 1], [], []>} : vector<8x256xbf16>, vector<256x128xbf16>, vector<8x128xf32> -> vector<8x128xf32>
    %16 = arith.addf %12, %15 : vector<8x128xf32>
    %c0_12 = arith.constant 0 : index
    %c0_13 = arith.constant 0 : index
    %17 = vector.load %arg15[%c0_12, %c0_13] : memref<8x128xf32, #tpu.memory_space<vmem>>, vector<8x128xf32>
    tpu.vector_store %arg15[%c0_12, %c0_13], %16 {strides = array<i32>} : memref<8x128xf32, #tpu.memory_space<vmem>>, vector<8x128xf32>,
    %c1_i32 = arith.constant 1 : i32
    %18 = arith.cmpi eq, %arg1, %c1_i32 : i32
    %19 = arith.extui %18 : i1 to i32
    %c0_i32_14 = arith.constant 0 : i32
    %20 = arith.cmpi ne, %19, %c0_i32_14 : i32
    scf.if %20 {
      %c0_15 = arith.constant 0 : index
      %c0_16 = arith.constant 0 : index
      %21 = vector.load %arg15[%c0_15, %c0_16] : memref<8x128xf32, #tpu.memory_space<vmem>>, vector<8x128xf32>
      %c0_17 = arith.constant 0 : index
      %c0_18 = arith.constant 0 : index
      %22 = vector.load %arg10[%c0_17, %c0_18] : memref<1x128xf32, #tpu.memory_space<vmem>>, vector<1x128xf32>
      %23 = vector.broadcast %22 : vector<1x128xf32> to vector<8x128xf32>
      %24 = arith.addf %21, %23 : vector<8x128xf32>
      %c0_19 = arith.constant 0 : index
      %c0_20 = arith.constant 0 : index
      %25 = vector.load %arg14[%c0_19, %c0_20] : memref<8x128xf32, #tpu.memory_space<vmem>>, vector<8x128xf32>
      %26 = arith.addf %24, %25 : vector<8x128xf32>
      %c0_21 = arith.constant 0 : index
      %c0_22 = arith.constant 0 : index
      %27 = vector.load %arg11[%c0_21, %c0_22] : memref<1x128xf32, #tpu.memory_space<vmem>>, vector<1x128xf32>
      %c0_23 = arith.constant 0 : index
      %c0_24 = arith.constant 0 : index
      %28 = vector.load %arg12[%c0_23, %c0_24] : memref<1x128xf32, #tpu.memory_space<vmem>>, vector<1x128xf32>
      %cst_25 = arith.constant dense<0.000000e+00> : vector<8xf32>
      %29 = vector.multi_reduction <add>, %26, %cst_25 [1] : vector<8x128xf32> to vector<8xf32>
      %30 = vector.shape_cast %29 : vector<8xf32> to vector<8x1xf32>
      %cst_26 = arith.constant 1.280000e+02 : f32
      %31 = vector.broadcast %cst_26 : f32 to vector<8x1xf32>
      %32 = arith.divf %30, %31 : vector<8x1xf32>
      %33 = vector.broadcast %32 : vector<8x1xf32> to vector<8x128xf32>
      %34 = arith.subf %26, %33 : vector<8x128xf32>
      %35 = arith.mulf %34, %34 : vector<8x128xf32>
      %cst_27 = arith.constant dense<0.000000e+00> : vector<8xf32>
      %36 = vector.multi_reduction <add>, %35, %cst_27 [1] : vector<8x128xf32> to vector<8xf32>
      %37 = vector.shape_cast %36 : vector<8xf32> to vector<8x1xf32>
      %cst_28 = arith.constant 1.280000e+02 : f32
      %38 = vector.broadcast %cst_28 : f32 to vector<8x1xf32>
      %39 = arith.divf %37, %38 : vector<8x1xf32>
      %40 = vector.broadcast %32 : vector<8x1xf32> to vector<8x128xf32>
      %41 = arith.subf %26, %40 : vector<8x128xf32>
      %cst_29 = arith.constant 9.99999974E-6 : f32
      %42 = vector.broadcast %cst_29 : f32 to vector<8x1xf32>
      %43 = arith.addf %39, %42 : vector<8x1xf32>
      %44 = math.rsqrt %43 : vector<8x1xf32>
      %45 = vector.broadcast %44 : vector<8x1xf32> to vector<8x128xf32>
      %46 = arith.mulf %41, %45 : vector<8x128xf32>
      %47 = vector.broadcast %27 : vector<1x128xf32> to vector<8x128xf32>
      %48 = arith.mulf %46, %47 : vector<8x128xf32>
      %49 = vector.broadcast %28 : vector<1x128xf32> to vector<8x128xf32>
      %50 = arith.addf %48, %49 : vector<8x128xf32>
      %c0_30 = arith.constant 0 : index
      %c0_31 = arith.constant 0 : index
      %51 = vector.load %arg13[%c0_30, %c0_31] : memref<8x128xf32, #tpu.memory_space<vmem>>, vector<8x128xf32>
      tpu.vector_store %arg13[%c0_30, %c0_31], %50 {strides = array<i32>} : memref<8x128xf32, #tpu.memory_space<vmem>>, vector<8x128xf32>,
    } else {
    }
    return
  }
  func.func @transform_0(%arg0: i32, %arg1: i32) -> (i32, i32) {
    %c0_i32 = arith.constant 0 : i32
    %c0_i32_0 = arith.constant 0 : i32
    return %arg0, %c0_i32 : i32, i32
  }
  func.func @transform_1(%arg0: i32, %arg1: i32) -> (i32, i32) {
    %c0_i32 = arith.constant 0 : i32
    %c0_i32_0 = arith.constant 0 : i32
    %c0_i32_1 = arith.constant 0 : i32
    return %c0_i32, %c0_i32_0 : i32, i32
  }
  func.func @transform_2(%arg0: i32, %arg1: i32) -> (i32, i32) {
    %c0_i32 = arith.constant 0 : i32
    %c0_i32_0 = arith.constant 0 : i32
    %c0_i32_1 = arith.constant 0 : i32
    return %c0_i32, %c0_i32_0 : i32, i32
  }
  func.func @transform_3(%arg0: i32, %arg1: i32) -> (i32, i32) {
    %c0_i32 = arith.constant 0 : i32
    %c0_i32_0 = arith.constant 0 : i32
    %c0_i32_1 = arith.constant 0 : i32
    return %c0_i32, %c0_i32_0 : i32, i32
  }
  func.func @transform_4(%arg0: i32, %arg1: i32) -> (i32, i32) {
    %c0_i32 = arith.constant 0 : i32
    %c0_i32_0 = arith.constant 0 : i32
    %c0_i32_1 = arith.constant 0 : i32
    return %c0_i32, %c0_i32_0 : i32, i32
  }
  func.func @transform_5(%arg0: i32, %arg1: i32) -> (i32, i32) {
    %c0_i32 = arith.constant 0 : i32
    %c0_i32_0 = arith.constant 0 : i32
    return %c0_i32, %arg1 : i32, i32
  }
  func.func @transform_6(%arg0: i32, %arg1: i32) -> (i32, i32) {
    %c0_i32 = arith.constant 0 : i32
    %c0_i32_0 = arith.constant 0 : i32
    return %c0_i32, %arg1 : i32, i32
  }
  func.func @transform_7(%arg0: i32, %arg1: i32) -> (i32, i32) {
    %c0_i32 = arith.constant 0 : i32
    %c0_i32_0 = arith.constant 0 : i32
    return %arg1, %c0_i32 : i32, i32
  }
  func.func @transform_8(%arg0: i32, %arg1: i32) -> (i32, i32) {
    %c0_i32 = arith.constant 0 : i32
    %c0_i32_0 = arith.constant 0 : i32
    %c0_i32_1 = arith.constant 0 : i32
    return %c0_i32, %c0_i32_0 : i32, i32
  }
  func.func @transform_9(%arg0: i32, %arg1: i32) -> (i32, i32) {
    %c0_i32 = arith.constant 0 : i32
    %c0_i32_0 = arith.constant 0 : i32
    %c0_i32_1 = arith.constant 0 : i32
    return %c0_i32, %c0_i32_0 : i32, i32
  }
  func.func @transform_10(%arg0: i32, %arg1: i32) -> (i32, i32) {
    %c0_i32 = arith.constant 0 : i32
    %c0_i32_0 = arith.constant 0 : i32
    %c0_i32_1 = arith.constant 0 : i32
    return %c0_i32, %c0_i32_0 : i32, i32
  }
  func.func @transform_11(%arg0: i32, %arg1: i32) -> (i32, i32) {
    %c0_i32 = arith.constant 0 : i32
    %c0_i32_0 = arith.constant 0 : i32
    return %arg0, %c0_i32 : i32, i32
  }
}

module attributes {stable_mosaic.version = 11 : i64} {
  func.func @_head_kernel(%arg0: i32, %arg1: memref<2x128xf32, #tpu.memory_space<vmem>>, %arg2: memref<128x32xbf16, #tpu.memory_space<vmem>>, %arg3: memref<1x32xf32, #tpu.memory_space<vmem>>, %arg4: memref<1x32xf32, #tpu.memory_space<vmem>>, %arg5: memref<1x1xf32, #tpu.memory_space<vmem>>, %arg6: memref<2x1xf32, #tpu.memory_space<vmem>>) attributes {dimension_semantics = [#tpu.dimension_semantics<arbitrary>], iteration_bounds = array<i64: 1>, scalar_prefetch = 0 : i64, scratch_operands = 0 : i64, tpu.core_type = #tpu.core_type<tc>, window_params = [{pipeline_mode = #tpu.pipeline_mode<synchronous>, transform_indices = @transform_0, window_bounds = array<i64: 2, 128>}, {pipeline_mode = #tpu.pipeline_mode<synchronous>, transform_indices = @transform_1, window_bounds = array<i64: 128, 32>}, {pipeline_mode = #tpu.pipeline_mode<synchronous>, transform_indices = @transform_2, window_bounds = array<i64: 1, 32>}, {pipeline_mode = #tpu.pipeline_mode<synchronous>, transform_indices = @transform_3, window_bounds = array<i64: 1, 32>}, {pipeline_mode = #tpu.pipeline_mode<synchronous>, transform_indices = @transform_4, window_bounds = array<i64: 1, 1>}, {pipeline_mode = #tpu.pipeline_mode<synchronous>, transform_indices = @transform_5, window_bounds = array<i64: 2, 1>}]} {
    %c0 = arith.constant 0 : index
    %c0_0 = arith.constant 0 : index
    %0 = vector.load %arg1[%c0, %c0_0] : memref<2x128xf32, #tpu.memory_space<vmem>>, vector<2x128xf32>
    %1 = arith.truncf %0 : vector<2x128xf32> to vector<2x128xbf16>
    %c0_1 = arith.constant 0 : index
    %c0_2 = arith.constant 0 : index
    %2 = vector.load %arg2[%c0_1, %c0_2] : memref<128x32xbf16, #tpu.memory_space<vmem>>, vector<128x32xbf16>
    %cst = arith.constant dense<0.000000e+00> : vector<2x32xf32>
    %3 = tpu.matmul %1, %2, %cst {dimension_numbers = #tpu.dot_dimension_numbers<[1], [0], [0], [1], [0, 0, 1, 1], [], []>} : vector<2x128xbf16>, vector<128x32xbf16>, vector<2x32xf32> -> vector<2x32xf32>
    %c0_3 = arith.constant 0 : index
    %c0_4 = arith.constant 0 : index
    %4 = vector.load %arg3[%c0_3, %c0_4] : memref<1x32xf32, #tpu.memory_space<vmem>>, vector<1x32xf32>
    %5 = vector.broadcast %4 : vector<1x32xf32> to vector<2x32xf32>
    %6 = arith.addf %3, %5 : vector<2x32xf32>
    %cst_5 = arith.constant 0.000000e+00 : f32
    %7 = vector.broadcast %cst_5 : f32 to vector<2x32xf32>
    %8 = arith.maximumf %6, %7 : vector<2x32xf32>
    %c0_6 = arith.constant 0 : index
    %c0_7 = arith.constant 0 : index
    %9 = vector.load %arg4[%c0_6, %c0_7] : memref<1x32xf32, #tpu.memory_space<vmem>>, vector<1x32xf32>
    %10 = vector.broadcast %9 : vector<1x32xf32> to vector<2x32xf32>
    %11 = arith.mulf %8, %10 : vector<2x32xf32>
    %cst_8 = arith.constant dense<0.000000e+00> : vector<2xf32>
    %12 = vector.multi_reduction <add>, %11, %cst_8 [1] : vector<2x32xf32> to vector<2xf32>
    %13 = vector.shape_cast %12 : vector<2xf32> to vector<2x1xf32>
    %c0_9 = arith.constant 0 : index
    %c0_10 = arith.constant 0 : index
    %14 = vector.load %arg5[%c0_9, %c0_10] : memref<1x1xf32, #tpu.memory_space<vmem>>, vector<1x1xf32>
    %15 = vector.broadcast %14 : vector<1x1xf32> to vector<2x1xf32>
    %16 = arith.addf %13, %15 : vector<2x1xf32>
    %cst_11 = arith.constant 0.000000e+00 : f32
    %17 = vector.broadcast %cst_11 : f32 to vector<2x1xf32>
    %18 = arith.maximumf %16, %17 : vector<2x1xf32>
    %c0_12 = arith.constant 0 : index
    %c0_13 = arith.constant 0 : index
    %19 = vector.load %arg6[%c0_12, %c0_13] : memref<2x1xf32, #tpu.memory_space<vmem>>, vector<2x1xf32>
    tpu.vector_store %arg6[%c0_12, %c0_13], %18 {strides = array<i32>} : memref<2x1xf32, #tpu.memory_space<vmem>>, vector<2x1xf32>,
    return
  }
  func.func @transform_0(%arg0: i32) -> (i32, i32) {
    %c0_i32 = arith.constant 0 : i32
    %c0_i32_0 = arith.constant 0 : i32
    %c0_i32_1 = arith.constant 0 : i32
    return %c0_i32, %c0_i32_0 : i32, i32
  }
  func.func @transform_1(%arg0: i32) -> (i32, i32) {
    %c0_i32 = arith.constant 0 : i32
    %c0_i32_0 = arith.constant 0 : i32
    %c0_i32_1 = arith.constant 0 : i32
    return %c0_i32, %c0_i32_0 : i32, i32
  }
  func.func @transform_2(%arg0: i32) -> (i32, i32) {
    %c0_i32 = arith.constant 0 : i32
    %c0_i32_0 = arith.constant 0 : i32
    %c0_i32_1 = arith.constant 0 : i32
    return %c0_i32, %c0_i32_0 : i32, i32
  }
  func.func @transform_3(%arg0: i32) -> (i32, i32) {
    %c0_i32 = arith.constant 0 : i32
    %c0_i32_0 = arith.constant 0 : i32
    %c0_i32_1 = arith.constant 0 : i32
    return %c0_i32, %c0_i32_0 : i32, i32
  }
  func.func @transform_4(%arg0: i32) -> (i32, i32) {
    %c0_i32 = arith.constant 0 : i32
    %c0_i32_0 = arith.constant 0 : i32
    %c0_i32_1 = arith.constant 0 : i32
    return %c0_i32, %c0_i32_0 : i32, i32
  }
  func.func @transform_5(%arg0: i32) -> (i32, i32) {
    %c0_i32 = arith.constant 0 : i32
    %c0_i32_0 = arith.constant 0 : i32
    %c0_i32_1 = arith.constant 0 : i32
    return %c0_i32, %c0_i32_0 : i32, i32
  }
}

</mosaic_0001>

<llo_original>
// kernel: _lambda_.9
$region0: #{_lambda_.9}
  #allocation0 [shape = 'u32[]', space=smem, size = 0x4, offset = 0x4, fixed_abs, tag = 'smem constant byte address 0x4 - core index']
  #allocation1 [shape = 'u32[144,128]{1,0:T(1,128)}', space=vmem, size = 0x12000, scoped, tag = 'internal scratch']
  #allocation2 [shape = 'f32[1,1]{1,0:T(1,128)S(1)}', space=vmem, size = 0x200, scoped, tag = 'scoped memory for _lambda_.9']
  %s0 = inlined_call_operand.vmem [shape: f32[2,128], index: 0, kind: input, shape index: {}]
  %s1 = inlined_call_operand.vmem [shape: bf16[128,32], index: 1, kind: input, shape index: {}]
  %s2 = inlined_call_operand.vmem [shape: f32[1,32], index: 2, kind: input, shape index: {}]
  %s3 = inlined_call_operand.vmem [shape: f32[1,32], index: 3, kind: input, shape index: {}]
  %s4 = inlined_call_operand.<no memory space> [shape: f32[1,1], index: 4, kind: input, shape index: {}]
  %s5 = inlined_call_operand.vmem [shape: f32[2,1], index: 5, kind: output, shape index: {}]
  %s6 = sld [smem:[#allocation0]]
  $region30: #{_lambda_.9} parent=0
    _
  %s8 = ssub.s32 1, %s6
  %s9 = scalar_select 0, %s8, %s6
  %v10 = vstv %s4
  %11 = vst [vmem:[#allocation2] sm:$0x1] %v10
  // Predicated region
  $region2: #{_lambda_.9} parent=0 // pred_check
    _
  $region3: #{_lambda_.9} parent=0 // pred_check_branch
    %13 = sbr.rel (0) target = $region5
  $region4: #{_lambda_.9} parent=0 // pred_region
    _
  $region5: #{_lambda_.9} parent=0 // pred_fallthru
    _
  // Predicated region
  $region6: #{_lambda_.9} parent=0 // pred_check
    _
  $region7: #{_lambda_.9} parent=0 // pred_check_branch
    %15 = sbr.rel (0) target = $region9
  $region8: #{_lambda_.9} parent=0 // pred_region
    _
  $region9: #{_lambda_.9} parent=0 // pred_fallthru
    _
  // Predicated region
  $region10: #{_lambda_.9} parent=0 // pred_check
    _
  $region11: #{_lambda_.9} parent=0 // pred_check_branch
    %17 = sbr.rel (0) target = $region13
  $region12: #{_lambda_.9} parent=0 // pred_region
    _
  $region13: #{_lambda_.9} parent=0 // pred_fallthru
    _
  // Predicated region
  $region14: #{_lambda_.9} parent=0 // pred_check
    _
  $region15: #{_lambda_.9} parent=0 // pred_check_branch
    %19 = sbr.rel (0) target = $region17
  $region16: #{_lambda_.9} parent=0 // pred_region
    _
  $region17: #{_lambda_.9} parent=0 // pred_fallthru
    _
  // Predicated region
  $region18: #{_lambda_.9} parent=0 // pred_check
    _
  $region19: #{_lambda_.9} parent=0 // pred_check_branch
    %21 = sbr.rel (0) target = $region21
  $region20: #{_lambda_.9} parent=0 // pred_region
    _
  $region21: #{_lambda_.9} parent=0 // pred_fallthru
    _
  %v23 = vld [vmem:[%s0] sm:$0x3]
  %v24 = vpack.c.bf16 %v23, %v23
  %v25 = vld [vmem:[%s1] sm:$0xf]
  %v26 = vld [vmem:[%s1 + $0x4] sm:$0xf]
  %v27 = vld [vmem:[%s1 + $0x8] sm:$0xf]
  %v28 = vld [vmem:[%s1 + $0xc] sm:$0xf]
  %v29 = vld [vmem:[%s1 + $0x10] sm:$0xf]
  %v30 = vld [vmem:[%s1 + $0x14] sm:$0xf]
  %v31 = vld [vmem:[%s1 + $0x18] sm:$0xf]
  %v32 = vld [vmem:[%s1 + $0x1c] sm:$0xf]
  %v33 = vld [vmem:[%s1 + $0x20] sm:$0xf]
  %v34 = vld [vmem:[%s1 + $0x24] sm:$0xf]
  %v35 = vld [vmem:[%s1 + $0x28] sm:$0xf]
  %v36 = vld [vmem:[%s1 + $0x2c] sm:$0xf]
  %v37 = vld [vmem:[%s1 + $0x30] sm:$0xf]
  %v38 = vld [vmem:[%s1 + $0x34] sm:$0xf]
  %v39 = vld [vmem:[%s1 + $0x38] sm:$0xf]
  %v40 = vld [vmem:[%s1 + $0x3c] sm:$0xf]
  %v41 = vld [vmem:[%s2] sm:$0x1]
  %v43 = vlaneseq
  %v44 = vshrl.u32 %v43, 7
  %v45 = vsub.s32 0, %v44
  %v46 = vrot.slane %v41, %v45
  %v64 = vunpack.c.l.b16 %v25
  %v65 = vunpack.c.l.b16 %v26
  %v66 = vunpack.c.l.b16 %v27
  %v67 = vunpack.c.l.b16 %v28
  %v68 = vunpack.c.l.b16 %v29
  %v69 = vunpack.c.l.b16 %v30
  %v70 = vunpack.c.l.b16 %v31
  %v71 = vunpack.c.l.b16 %v32
  %v72 = vunpack.c.l.b16 %v33
  %v73 = vunpack.c.l.b16 %v34
  %v74 = vunpack.c.l.b16 %v35
  %v75 = vunpack.c.l.b16 %v36
  %v76 = vunpack.c.l.b16 %v37
  %v77 = vunpack.c.l.b16 %v38
  %v78 = vunpack.c.l.b16 %v39
  %v79 = vunpack.c.l.b16 %v40
  %v80 = vpack.c.b16 %v65, %v64
  %v81 = vpack.c.b16 %v67, %v66
  %v82 = vpack.c.b16 %v69, %v68
  %v83 = vpack.c.b16 %v71, %v70
  %v84 = vpack.c.b16 %v73, %v72
  %v85 = vpack.c.b16 %v75, %v74
  %v86 = vpack.c.b16 %v77, %v76
  %v87 = vpack.c.b16 %v79, %v78
  %96 = vmatprep.subr.bf16.mxu0 0
  %97 = vmatpush1.bf16.msra.mxu0 %v80
  %98 = vmatprep.subr.bf16.mxu0 0
  %99 = vmatpush1.bf16.msra.mxu0 %v81
  %100 = vmatprep.subr.bf16.mxu0 0
  %101 = vmatpush1.bf16.msra.mxu0 %v82
  %102 = vmatprep.subr.bf16.mxu0 0
  %103 = vmatpush1.bf16.msra.mxu0 %v83
  %104 = vmatprep.subr.bf16.mxu0 0
  %105 = vmatpush1.bf16.msra.mxu0 %v84
  %106 = vmatprep.subr.bf16.mxu0 0
  %107 = vmatpush1.bf16.msra.mxu0 %v85
  %108 = vmatprep.subr.bf16.mxu0 0
  %109 = vmatpush1.bf16.msra.mxu0 %v86
  %110 = vmatprep.subr.bf16.mxu0 0
  %111 = vmatpush1.bf16.msra.mxu0 %v87
  %112 = vmatprep.subr.bf16.mxu0 0
  %113 = vmatpush1.bf16.msra.mxu0 0
  %114 = vmatprep.subr.bf16.mxu0 0
  %115 = vmatpush1.bf16.msra.mxu0 0
  %116 = vmatprep.subr.bf16.mxu0 0
  %117 = vmatpush1.bf16.msra.mxu0 0
  %118 = vmatprep.subr.bf16.mxu0 0
  %119 = vmatpush1.bf16.msra.mxu0 0
  %120 = vmatprep.subr.bf16.mxu0 0
  %121 = vmatpush1.bf16.msra.mxu0 0
  %122 = vmatprep.subr.bf16.mxu0 0
  %123 = vmatpush1.bf16.msra.mxu0 0
  %124 = vmatprep.subr.bf16.mxu0 0
  %125 = vmatpush1.bf16.msra.mxu0 0
  %126 = vmatprep.subr.bf16.mxu0 0
  %127 = vmatpush1.bf16.msra.mxu0 0
  %128 = vmatprep.mubr.bf16.mxu0 0
  %129 = vmatmul.mubr.bf16.gmra.mrb[0].mxu0 %v24
  %v130 = vpop.f32.mrb[0].mxu0
  %v131 = vadd.f32 %v46, %v130
  %v132 = vpop.f32.mrb[0].mxu0
  %v133 = vpop.f32.mrb[0].mxu0
  %v134 = vpop.f32.mrb[0].mxu0
  %135 = vdwg.mxu0
  %v136 = vmax.f32 %v131, 0.0
  %v137 = vld [vmem:[%s3] sm:$0x1]
  %v139 = vlaneseq
  %v140 = vshrl.u32 %v139, 7
  %v141 = vsub.s32 0, %v140
  %v142 = vrot.slane %v137, %v141
  %v144 = vmul.f32 %v136, %v142
  %vm145 = vcmask 254976
  %v146 = vsel %vm145, %v144, 0.0
  %147 = vadd.xlane.f32.xlu0 %v146
  %v148 = vpop.xlane.xlu0 %147
  %v149 = vld [vmem:[#allocation2] sm:$0x1]
  %v151 = vlaneseq
  %v152 = vshrl.u32 %v151, 7
  %v153 = vsub.s32 0, %v152
  %v154 = vrot.slane %v149, %v153
  %v156 = vadd.f32 %v148, %v154
  %v157 = vmax.f32 %v156, 0.0
  %vm158 = vcmask 1024
  %159 = vst.msk [vmem:[%s5] sm:$0x3] %vm158, %v157
  // Predicated region
  $region22: #{_lambda_.9} parent=0 // pred_check
    _
  $region23: #{_lambda_.9} parent=0 // pred_check_branch
    %161 = sbr.rel (0) target = $region25
  $region24: #{_lambda_.9} parent=0 // pred_region
    _
  $region25: #{_lambda_.9} parent=0 // pred_fallthru
    _
  // Predicated region
  $region26: #{_lambda_.9} parent=0 // pred_check
    _
  $region27: #{_lambda_.9} parent=0 // pred_check_branch
    %163 = sbr.rel (0) target = $region29
  $region28: #{_lambda_.9} parent=0 // pred_region
    _
  $region29: #{_lambda_.9} parent=0 // pred_fallthru
    _

// kernel: _lambda_.6
$region0: #{_lambda_.6}
  #allocation0 [shape = 'u32[]', space=smem, size = 0x4, offset = 0x4, fixed_abs, tag = 'smem constant byte address 0x4 - core index']
  #allocation1 [shape = 'u32[144,128]{1,0:T(1,128)}', space=vmem, size = 0x12000, scoped, tag = 'internal scratch']
  #allocation2 [shape = 'f32[32,128]{1,0:T(8,128)}', space=vmem, size = 0x4000, scoped, tag = 'scratch operand']
  #allocation3 [shape = 'f32[32,128]{1,0:T(8,128)}', space=vmem, size = 0x4000, scoped, tag = 'scratch operand']
  %s0 = inlined_call_operand.vmem [shape: f32[32,128], index: 0, kind: input, shape index: {}]
  %s1 = inlined_call_operand.vmem [shape: bf16[128,128], index: 1, kind: input, shape index: {}]
  %s2 = inlined_call_operand.vmem [shape: f32[1,128], index: 2, kind: input, shape index: {}]
  %s3 = inlined_call_operand.vmem [shape: f32[1,128], index: 3, kind: input, shape index: {}]
  %s4 = inlined_call_operand.vmem [shape: f32[1,128], index: 4, kind: input, shape index: {}]
  %s5 = inlined_call_operand.vmem [shape: bf16[128,512], index: 5, kind: input, shape index: {}]
  %s6 = inlined_call_operand.vmem [shape: f32[1,512], index: 6, kind: input, shape index: {}]
  %s7 = inlined_call_operand.vmem [shape: bf16[512,128], index: 7, kind: input, shape index: {}]
  %s8 = inlined_call_operand.vmem [shape: f32[1,128], index: 8, kind: input, shape index: {}]
  %s9 = inlined_call_operand.vmem [shape: f32[1,128], index: 9, kind: input, shape index: {}]
  %s10 = inlined_call_operand.vmem [shape: f32[1,128], index: 10, kind: input, shape index: {}]
  %s11 = inlined_call_operand.vmem [shape: f32[32,128], index: 11, kind: output, shape index: {}]
  %s12 = sld [smem:[#allocation0]]
  $region123: #{_lambda_.6} parent=0
    _
  %s14 = ssub.s32 1, %s12
  %s15 = scalar_select 0, %s14, %s12
  $region1: #{_lambda_.6} parent=0
    #allocation4 [shape = 'u8[131072]{0}', space=vmem, size = 0x20000, scoped, tag = 'input window, operand 5']
    loop: start=0, step=1, limit=4
    $region2: #{_lambda_.6} parent=1 // loop_pre_header
      _
    $region3: #{_lambda_.6} parent=1 // loop_header
      %s17 = sphi 0, %s21
      %p18 = scmp.ge.s32.totalorder %s17, 4
      %s24 = sphi 0, %s36
      %s25 = sphi 0, %s32
      %s26 = sphi 0, %s24
      %s27 = sphi 0, %s25
      %s28 = sphi 0, %s26
      %s29 = sphi 0, %s27
      %s39 = sphi 0, %s41
      %s42 = sphi 0, %s39
      %s43 = sphi 0, %s42
      %s59 = sphi 0, %s43
      %s63 = sphi 0, %s63
      %s65 = sphi 0, %s63
      %s66 = sphi 0, %s65
      %s80 = sphi 0, %s66
      %s84 = sphi 0, %s84
      %s86 = sphi 0, %s84
      %s87 = sphi 0, %s86
      %s101 = sphi 0, %s87
      %s105 = sphi 0, %s105
      %s107 = sphi 0, %s105
      %s108 = sphi 0, %s107
      %s122 = sphi 0, %s108
      %s126 = sphi 0, %s126
      %s128 = sphi 0, %s126
      %s129 = sphi 0, %s128
      %s143 = sphi 0, %s129
      %s149 = sphi 0, %s151
      %s152 = sphi 0, %s149
      %s153 = sphi 0, %s152
      %s169 = sphi 0, %s153
      %s175 = sphi 0, %s177
      %s178 = sphi 0, %s175
      %s179 = sphi 0, %s178
      %s195 = sphi 0, %s179
      %s201 = sphi 0, %s203
      %s204 = sphi 0, %s201
      %s205 = sphi 0, %s204
      %s221 = sphi 0, %s205
      %s225 = sphi 0, %s225
      %s227 = sphi 0, %s225
      %s228 = sphi 0, %s227
      %s242 = sphi 0, %s228
      %s246 = sphi 0, %s246
      %s248 = sphi 0, %s246
      %s249 = sphi 0, %s248
      %s263 = sphi 0, %s249
      %s267 = sphi 0, %s267
      %s269 = sphi 0, %s267
      %s270 = sphi 0, %s269
      %s284 = sphi 0, %s270
      %s290 = sphi 0, %s292
      %s293 = sphi 0, %s290
      %s294 = sphi 0, %s293
      %s310 = sphi 0, %s294
    $region4: #{_lambda_.6} parent=1 // loop_header_branch
      %20 = sbr.rel (%p18) target = $region8
    $region5: #{_lambda_.6} parent=1 // loop_body
      %s22 = ssub.s32 %s17, 1
      %s23 = ssub.s32 %s17, 2
      %s30 = sadd.s32 1, %s25
      %p31 = scmp.ge.s32.totalorder %s30, 2
      %s32 = scalar_select %p31, 0, %s30
      %s33 = sadd.s32 1, %s24
      %s34 = scalar_select %p31, %s33, %s24
      %p35 = scmp.ge.s32.totalorder %s34, 1
      %s36 = scalar_select %p35, 0, %s34
      %s37 = ssub.s32 %s24, %s36
      %p38 = scmp.eq.s32.totalorder %s37, 0
      %s40 = sadd.s32 %s39, 1
      %s41 = scalar_select %p38, %s39, %s40
      %p44 = pneg %p38
      %p45 = scmp.eq.s32.totalorder %s17, 1
      %p46 = por %p44, %p45
      %p47 = scmp.ne.s32.totalorder %s39, %s42
      %p48 = scmp.eq.s32.totalorder %s17, 0
      %p49 = por %p47, %p48
      %p50 = scmp.ne.s32.totalorder %s39, %s42
      %p51 = scmp.eq.s32.totalorder %s22, 1
      %p52 = por %p50, %p51
      %p53 = scmp.ne.s32.totalorder %s42, %s43
      %p54 = scmp.eq.s32.totalorder %s22, 0
      %p55 = por %p53, %p54
      %p56 = scmp.ne.s32.totalorder %s42, %s43
      %p57 = scmp.eq.s32.totalorder %s23, 1
      %p58 = por %p56, %p57
      %p60 = scmp.ne.s32.totalorder %s43, %s59
      %p61 = scmp.eq.s32.totalorder %s23, 0
      %p62 = por %p60, %p61
      %s64 = sadd.s32 %s63, 1
      %p67 = scmp.eq.s32.totalorder %s17, 1
      %p68 = scmp.ne.s32.totalorder %s63, %s65
      %p69 = scmp.eq.s32.totalorder %s17, 0
      %p70 = por %p68, %p69
      %p71 = scmp.ne.s32.totalorder %s63, %s65
      %p72 = scmp.eq.s32.totalorder %s22, 1
      %p73 = por %p71, %p72
      %p74 = scmp.ne.s32.totalorder %s65, %s66
      %p75 = scmp.eq.s32.totalorder %s22, 0
      %p76 = por %p74, %p75
      %p77 = scmp.ne.s32.totalorder %s65, %s66
      %p78 = scmp.eq.s32.totalorder %s23, 1
      %p79 = por %p77, %p78
      %p81 = scmp.ne.s32.totalorder %s66, %s80
      %p82 = scmp.eq.s32.totalorder %s23, 0
      %p83 = por %p81, %p82
      %s85 = sadd.s32 %s84, 1
      %p88 = scmp.eq.s32.totalorder %s17, 1
      %p89 = scmp.ne.s32.totalorder %s84, %s86
      %p90 = scmp.eq.s32.totalorder %s17, 0
      %p91 = por %p89, %p90
      %p92 = scmp.ne.s32.totalorder %s84, %s86
      %p93 = scmp.eq.s32.totalorder %s22, 1
      %p94 = por %p92, %p93
      %p95 = scmp.ne.s32.totalorder %s86, %s87
      %p96 = scmp.eq.s32.totalorder %s22, 0
      %p97 = por %p95, %p96
      %p98 = scmp.ne.s32.totalorder %s86, %s87
      %p99 = scmp.eq.s32.totalorder %s23, 1
      %p100 = por %p98, %p99
      %p102 = scmp.ne.s32.totalorder %s87, %s101
      %p103 = scmp.eq.s32.totalorder %s23, 0
      %p104 = por %p102, %p103
      %s106 = sadd.s32 %s105, 1
      %p109 = scmp.eq.s32.totalorder %s17, 1
      %p110 = scmp.ne.s32.totalorder %s105, %s107
      %p111 = scmp.eq.s32.totalorder %s17, 0
      %p112 = por %p110, %p111
      %p113 = scmp.ne.s32.totalorder %s105, %s107
      %p114 = scmp.eq.s32.totalorder %s22, 1
      %p115 = por %p113, %p114
      %p116 = scmp.ne.s32.totalorder %s107, %s108
      %p117 = scmp.eq.s32.totalorder %s22, 0
      %p118 = por %p116, %p117
      %p119 = scmp.ne.s32.totalorder %s107, %s108
      %p120 = scmp.eq.s32.totalorder %s23, 1
      %p121 = por %p119, %p120
      %p123 = scmp.ne.s32.totalorder %s108, %s122
      %p124 = scmp.eq.s32.totalorder %s23, 0
      %p125 = por %p123, %p124
      %s127 = sadd.s32 %s126, 1
      %p130 = scmp.eq.s32.totalorder %s17, 1
      %p131 = scmp.ne.s32.totalorder %s126, %s128
      %p132 = scmp.eq.s32.totalorder %s17, 0
      %p133 = por %p131, %p132
      %p134 = scmp.ne.s32.totalorder %s126, %s128
      %p135 = scmp.eq.s32.totalorder %s22, 1
      %p136 = por %p134, %p135
      %p137 = scmp.ne.s32.totalorder %s128, %s129
      %p138 = scmp.eq.s32.totalorder %s22, 0
      %p139 = por %p137, %p138
      %p140 = scmp.ne.s32.totalorder %s128, %s129
      %p141 = scmp.eq.s32.totalorder %s23, 1
      %p142 = por %p140, %p141
      %p144 = scmp.ne.s32.totalorder %s129, %s143
      %p145 = scmp.eq.s32.totalorder %s23, 0
      %p146 = por %p144, %p145
      %s147 = ssub.s32 %s25, %s32
      %p148 = scmp.eq.s32.totalorder %s147, 0
      %s150 = sadd.s32 %s149, 1
      %s151 = scalar_select %p148, %s149, %s150
      %p154 = pneg %p148
      %p155 = scmp.eq.s32.totalorder %s17, 1
      %p156 = por %p154, %p155
      %p157 = scmp.ne.s32.totalorder %s149, %s152
      %p158 = scmp.eq.s32.totalorder %s17, 0
      %p159 = por %p157, %p158
      %p160 = scmp.ne.s32.totalorder %s149, %s152
      %p161 = scmp.eq.s32.totalorder %s22, 1
      %p162 = por %p160, %p161
      %p163 = scmp.ne.s32.totalorder %s152, %s153
      %p164 = scmp.eq.s32.totalorder %s22, 0
      %p165 = por %p163, %p164
      %p166 = scmp.ne.s32.totalorder %s152, %s153
      %p167 = scmp.eq.s32.totalorder %s23, 1
      %p168 = por %p166, %p167
      %p170 = scmp.ne.s32.totalorder %s153, %s169
      %p171 = scmp.eq.s32.totalorder %s23, 0
      %p172 = por %p170, %p171
      %s173 = ssub.s32 %s25, %s32
      %p174 = scmp.eq.s32.totalorder %s173, 0
      %s176 = sadd.s32 %s175, 1
      %s177 = scalar_select %p174, %s175, %s176
      %p180 = pneg %p174
      %p181 = scmp.eq.s32.totalorder %s17, 1
      %p182 = por %p180, %p181
      %p183 = scmp.ne.s32.totalorder %s175, %s178
      %p184 = scmp.eq.s32.totalorder %s17, 0
      %p185 = por %p183, %p184
      %p186 = scmp.ne.s32.totalorder %s175, %s178
      %p187 = scmp.eq.s32.totalorder %s22, 1
      %p188 = por %p186, %p187
      %p189 = scmp.ne.s32.totalorder %s178, %s179
      %p190 = scmp.eq.s32.totalorder %s22, 0
      %p191 = por %p189, %p190
      %p192 = scmp.ne.s32.totalorder %s178, %s179
      %p193 = scmp.eq.s32.totalorder %s23, 1
      %p194 = por %p192, %p193
      %p196 = scmp.ne.s32.totalorder %s179, %s195
      %p197 = scmp.eq.s32.totalorder %s23, 0
      %p198 = por %p196, %p197
      %s199 = ssub.s32 %s25, %s32
      %p200 = scmp.eq.s32.totalorder %s199, 0
      %s202 = sadd.s32 %s201, 1
      %s203 = scalar_select %p200, %s201, %s202
      %p206 = pneg %p200
      %p207 = scmp.eq.s32.totalorder %s17, 1
      %p208 = por %p206, %p207
      %p209 = scmp.ne.s32.totalorder %s201, %s204
      %p210 = scmp.eq.s32.totalorder %s17, 0
      %p211 = por %p209, %p210
      %p212 = scmp.ne.s32.totalorder %s201, %s204
      %p213 = scmp.eq.s32.totalorder %s22, 1
      %p214 = por %p212, %p213
      %p215 = scmp.ne.s32.totalorder %s204, %s205
      %p216 = scmp.eq.s32.totalorder %s22, 0
      %p217 = por %p215, %p216
      %p218 = scmp.ne.s32.totalorder %s204, %s205
      %p219 = scmp.eq.s32.totalorder %s23, 1
      %p220 = por %p218, %p219
      %p222 = scmp.ne.s32.totalorder %s205, %s221
      %p223 = scmp.eq.s32.totalorder %s23, 0
      %p224 = por %p222, %p223
      %s226 = sadd.s32 %s225, 1
      %p229 = scmp.eq.s32.totalorder %s17, 1
      %p230 = scmp.ne.s32.totalorder %s225, %s227
      %p231 = scmp.eq.s32.totalorder %s17, 0
      %p232 = por %p230, %p231
      %p233 = scmp.ne.s32.totalorder %s225, %s227
      %p234 = scmp.eq.s32.totalorder %s22, 1
      %p235 = por %p233, %p234
      %p236 = scmp.ne.s32.totalorder %s227, %s228
      %p237 = scmp.eq.s32.totalorder %s22, 0
      %p238 = por %p236, %p237
      %p239 = scmp.ne.s32.totalorder %s227, %s228
      %p240 = scmp.eq.s32.totalorder %s23, 1
      %p241 = por %p239, %p240
      %p243 = scmp.ne.s32.totalorder %s228, %s242
      %p244 = scmp.eq.s32.totalorder %s23, 0
      %p245 = por %p243, %p244
      %s247 = sadd.s32 %s246, 1
      %p250 = scmp.eq.s32.totalorder %s17, 1
      %p251 = scmp.ne.s32.totalorder %s246, %s248
      %p252 = scmp.eq.s32.totalorder %s17, 0
      %p253 = por %p251, %p252
      %p254 = scmp.ne.s32.totalorder %s246, %s248
      %p255 = scmp.eq.s32.totalorder %s22, 1
      %p256 = por %p254, %p255
      %p257 = scmp.ne.s32.totalorder %s248, %s249
      %p258 = scmp.eq.s32.totalorder %s22, 0
      %p259 = por %p257, %p258
      %p260 = scmp.ne.s32.totalorder %s248, %s249
      %p261 = scmp.eq.s32.totalorder %s23, 1
      %p262 = por %p260, %p261
      %p264 = scmp.ne.s32.totalorder %s249, %s263
      %p265 = scmp.eq.s32.totalorder %s23, 0
      %p266 = por %p264, %p265
      %s268 = sadd.s32 %s267, 1
      %p271 = scmp.eq.s32.totalorder %s17, 1
      %p272 = scmp.ne.s32.totalorder %s267, %s269
      %p273 = scmp.eq.s32.totalorder %s17, 0
      %p274 = por %p272, %p273
      %p275 = scmp.ne.s32.totalorder %s267, %s269
      %p276 = scmp.eq.s32.totalorder %s22, 1
      %p277 = por %p275, %p276
      %p278 = scmp.ne.s32.totalorder %s269, %s270
      %p279 = scmp.eq.s32.totalorder %s22, 0
      %p280 = por %p278, %p279
      %p281 = scmp.ne.s32.totalorder %s269, %s270
      %p282 = scmp.eq.s32.totalorder %s23, 1
      %p283 = por %p281, %p282
      %p285 = scmp.ne.s32.totalorder %s270, %s284
      %p286 = scmp.eq.s32.totalorder %s23, 0
      %p287 = por %p285, %p286
      %s288 = ssub.s32 %s24, %s36
      %p289 = scmp.eq.s32.totalorder %s288, 0
      %s291 = sadd.s32 %s290, 1
      %s292 = scalar_select %p289, %s290, %s291
      %p295 = pneg %p289
      %p296 = scmp.eq.s32.totalorder %s17, 1
      %p297 = por %p295, %p296
      %p298 = scmp.ne.s32.totalorder %s290, %s293
      %p299 = scmp.eq.s32.totalorder %s17, 0
      %p300 = por %p298, %p299
      %p301 = scmp.ne.s32.totalorder %s290, %s293
      %p302 = scmp.eq.s32.totalorder %s22, 1
      %p303 = por %p301, %p302
      %p304 = scmp.ne.s32.totalorder %s293, %s294
      %p305 = scmp.eq.s32.totalorder %s22, 0
      %p306 = por %p304, %p305
      %p307 = scmp.ne.s32.totalorder %s293, %s294
      %p308 = scmp.eq.s32.totalorder %s23, 1
      %p309 = por %p307, %p308
      %p311 = scmp.ne.s32.totalorder %s294, %s310
      %p312 = scmp.eq.s32.totalorder %s23, 0
      %p313 = por %p311, %p312
      %p314 = scmp.le.s32.totalorder 1, %s17
      %p315 = scmp.lt.s32.totalorder %s17, 3
      %p316 = pnand %p314, %p315
      %p317 = pneg %p316
      // Predicated region
      $region9: #{_lambda_.6} parent=5 // pred_check
        _
      $region10: #{_lambda_.6} parent=5 // pred_check_branch
        %319 = sbr.rel (%p316) target = $region12
      $region11: #{_lambda_.6} parent=5 // pred_region
        %s320 = ssub.s32 %s17, 1
        // Predicated region
        $region13: #{_lambda_.6} parent=11 // pred_check
          %p321 = pneg %p55
        $region14: #{_lambda_.6} parent=11 // pred_check_branch
          %323 = sbr.rel (%p321) target = $region16
        $region15: #{_lambda_.6} parent=11 // pred_region
          %s324 = smul.u32 4, %s26
          %p325 = scmp.lt.s32.totalorder %s324, 3
          %s326 = scalar_select %p325, %s324, 3
          %s327 = smul.addr %s326, 8
          %s328 = scalar_lea.vmem %s0, %s327
          %s329 = smul.u32 4, %s26
        $region16: #{_lambda_.6} parent=11 // pred_fallthru
          _
        // Predicated region
        $region17: #{_lambda_.6} parent=11 // pred_check
          %p330 = pneg %p76
        $region18: #{_lambda_.6} parent=11 // pred_check_branch
          %332 = sbr.rel (%p330) target = $region20
        $region19: #{_lambda_.6} parent=11 // pred_region
          _
        $region20: #{_lambda_.6} parent=11 // pred_fallthru
          _
        // Predicated region
        $region21: #{_lambda_.6} parent=11 // pred_check
          %p333 = pneg %p97
        $region22: #{_lambda_.6} parent=11 // pred_check_branch
          %335 = sbr.rel (%p333) target = $region24
        $region23: #{_lambda_.6} parent=11 // pred_region
          _
        $region24: #{_lambda_.6} parent=11 // pred_fallthru
          _
        // Predicated region
        $region25: #{_lambda_.6} parent=11 // pred_check
          %p336 = pneg %p118
        $region26: #{_lambda_.6} parent=11 // pred_check_branch
          %338 = sbr.rel (%p336) target = $region28
        $region27: #{_lambda_.6} parent=11 // pred_region
          _
        $region28: #{_lambda_.6} parent=11 // pred_fallthru
          _
        // Predicated region
        $region29: #{_lambda_.6} parent=11 // pred_check
          %p339 = pneg %p139
        $region30: #{_lambda_.6} parent=11 // pred_check_branch
          %341 = sbr.rel (%p339) target = $region32
        $region31: #{_lambda_.6} parent=11 // pred_region
          _
        $region32: #{_lambda_.6} parent=11 // pred_fallthru
          _
        // Predicated region
        $region33: #{_lambda_.6} parent=11 // pred_check
          %p342 = pneg %p238
        $region34: #{_lambda_.6} parent=11 // pred_check_branch
          %344 = sbr.rel (%p342) target = $region36
        $region35: #{_lambda_.6} parent=11 // pred_region
          _
        $region36: #{_lambda_.6} parent=11 // pred_fallthru
          _
        // Predicated region
        $region37: #{_lambda_.6} parent=11 // pred_check
          %p345 = pneg %p259
        $region38: #{_lambda_.6} parent=11 // pred_check_branch
          %347 = sbr.rel (%p345) target = $region40
        $region39: #{_lambda_.6} parent=11 // pred_region
          _
        $region40: #{_lambda_.6} parent=11 // pred_fallthru
          _
        // Predicated region
        $region41: #{_lambda_.6} parent=11 // pred_check
          %p348 = pneg %p280
        $region42: #{_lambda_.6} parent=11 // pred_check_branch
          %350 = sbr.rel (%p348) target = $region44
        $region43: #{_lambda_.6} parent=11 // pred_region
          _
        $region44: #{_lambda_.6} parent=11 // pred_fallthru
          _
      $region12: #{_lambda_.6} parent=5 // pred_fallthru
        _
      %p351 = scmp.lt.s32.totalorder %s17, 2
      // Predicated region
      $region45: #{_lambda_.6} parent=5 // pred_check
        %p352 = pneg %p351
      $region46: #{_lambda_.6} parent=5 // pred_check_branch
        %354 = sbr.rel (%p352) target = $region48
      $region47: #{_lambda_.6} parent=5 // pred_region
        // Predicated region
        $region49: #{_lambda_.6} parent=47 // pred_check
          %p355 = pneg %p159
        $region50: #{_lambda_.6} parent=47 // pred_check_branch
          %357 = sbr.rel (%p355) target = $region52
        $region51: #{_lambda_.6} parent=47 // pred_region
          %s358 = sand.u32 %s149, 1
          %s359 = sand.u32 %s149, 1
          %s360 = smul.addr %s359, 128
          %s361 = scalar_lea.vmem [#allocation4], %s360
          %s362 = smul.u32 2, %s25
          %s363 = smul.addr %s362, 4
          %s364 = scalar_lea.vmem %s5, %s363
          // Predicated region
          $region53: #{_lambda_.6} parent=51 // pred_check
            _
          $region54: #{_lambda_.6} parent=51 // pred_check_branch
            %366 = sbr.rel (0) target = $region56
          $region55: #{_lambda_.6} parent=51 // pred_region
            // Predicated region
            $region57: #{_lambda_.6} parent=55 // pred_check
              _
            $region58: #{_lambda_.6} parent=55 // pred_check_branch
              %368 = sbr.rel (0) target = $region60
            $region59: #{_lambda_.6} parent=55 // pred_region
              // Predicated region
              $region72: #{_lambda_.6} parent=59 // pred_check
                _
              $region73: #{_lambda_.6} parent=59 // pred_check_branch
                %413 = sbr.rel (0) target = $region75
              $region74: #{_lambda_.6} parent=59 // pred_region
                loop: start=0, step=1, limit=1
                $region76: #{_lambda_.6} parent=74 // loop_pre_header
                  _
                $region77: #{_lambda_.6} parent=74 // loop_header
                  %s415 = sphi 0, %s419
                  %p416 = scmp.ge.s32.totalorder %s415, 1
                  %s420 = sphi %s364, %s364
                  %s421 = sphi %s361, %s361
                $region78: #{_lambda_.6} parent=74 // loop_header_branch
                  %418 = sbr.rel (%p416) target = $region82
                $region79: #{_lambda_.6} parent=74 // loop_body
                  %v422 = vld [vmem:[%s420] sm:$0xff]
                  %423 = vst [vmem:[%s421] sm:$0xff] %v422
                  %v424 = vld [vmem:[%s420 + $0x10] sm:$0xff]
                  %425 = vst [vmem:[%s421 + $0x8] sm:$0xff] %v424
                  %v426 = vld [vmem:[%s420 + $0x20] sm:$0xff]
                  %427 = vst [vmem:[%s421 + $0x10] sm:$0xff] %v426
                  %v428 = vld [vmem:[%s420 + $0x30] sm:$0xff]
                  %429 = vst [vmem:[%s421 + $0x18] sm:$0xff] %v428
                  %v430 = vld [vmem:[%s420 + $0x40] sm:$0xff]
                  %431 = vst [vmem:[%s421 + $0x20] sm:$0xff] %v430
                  %v432 = vld [vmem:[%s420 + $0x50] sm:$0xff]
                  %433 = vst [vmem:[%s421 + $0x28] sm:$0xff] %v432
                  %v434 = vld [vmem:[%s420 + $0x60] sm:$0xff]
                  %435 = vst [vmem:[%s421 + $0x30] sm:$0xff] %v434
                  %v436 = vld [vmem:[%s420 + $0x70] sm:$0xff]
                  %437 = vst [vmem:[%s421 + $0x38] sm:$0xff] %v436
                  %v438 = vld [vmem:[%s420 + $0x80] sm:$0xff]
                  %439 = vst [vmem:[%s421 + $0x40] sm:$0xff] %v438
                  %v440 = vld [vmem:[%s420 + $0x90] sm:$0xff]
                  %441 = vst [vmem:[%s421 + $0x48] sm:$0xff] %v440
                  %v442 = vld [vmem:[%s420 + $0xa0] sm:$0xff]
                  %443 = vst [vmem:[%s421 + $0x50] sm:$0xff] %v442
                  %v444 = vld [vmem:[%s420 + $0xb0] sm:$0xff]
                  %445 = vst [vmem:[%s421 + $0x58] sm:$0xff] %v444
                  %v446 = vld [vmem:[%s420 + $0xc0] sm:$0xff]
                  %447 = vst [vmem:[%s421 + $0x60] sm:$0xff] %v446
                  %v448 = vld [vmem:[%s420 + $0xd0] sm:$0xff]
                  %449 = vst [vmem:[%s421 + $0x68] sm:$0xff] %v448
                  %v450 = vld [vmem:[%s420 + $0xe0] sm:$0xff]
                  %451 = vst [vmem:[%s421 + $0x70] sm:$0xff] %v450
                  %v452 = vld [vmem:[%s420 + $0xf0] sm:$0xff]
                  %453 = vst [vmem:[%s421 + $0x78] sm:$0xff] %v452
                $region80: #{_lambda_.6} parent=74 // loop_footer
                  %s419 = sadd.s32 1, %s415
                $region81: #{_lambda_.6} parent=74 // loop_footer_branch
                  %414 = sbr.rel target = $region77
                $region82: #{_lambda_.6} parent=74 // loop_exit
                  _
              $region75: #{_lambda_.6} parent=59 // pred_fallthru
                _
              // Predicated region
              $region83: #{_lambda_.6} parent=59 // pred_check
                _
              $region84: #{_lambda_.6} parent=59 // pred_check_branch
                %455 = sbr.rel target = $region86
              $region85: #{_lambda_.6} parent=59 // pred_region
                _
              $region86: #{_lambda_.6} parent=59 // pred_fallthru
                _
            $region60: #{_lambda_.6} parent=55 // pred_fallthru
              _
            // Predicated region
            $region61: #{_lambda_.6} parent=55 // pred_check
              _
            $region62: #{_lambda_.6} parent=55 // pred_check_branch
              %370 = sbr.rel target = $region64
            $region63: #{_lambda_.6} parent=55 // pred_region
              loop: start=0, step=1, limit=1
              $region65: #{_lambda_.6} parent=63 // loop_pre_header
                _
              $region66: #{_lambda_.6} parent=63 // loop_header
                %s373 = sphi 0, %s377
                %p374 = scmp.ge.s32.totalorder %s373, 1
                %s378 = sphi %s364, %s364
                %s379 = sphi %s361, %s361
              $region67: #{_lambda_.6} parent=63 // loop_header_branch
                %376 = sbr.rel (%p374) target = $region71
              $region68: #{_lambda_.6} parent=63 // loop_body
                %v380 = vld [vmem:[%s378] sm:$0xff]
                %381 = vst [vmem:[%s379] sm:$0xff] %v380
                %v382 = vld [vmem:[%s378 + $0x10] sm:$0xff]
                %383 = vst [vmem:[%s379 + $0x8] sm:$0xff] %v382
                %v384 = vld [vmem:[%s378 + $0x20] sm:$0xff]
                %385 = vst [vmem:[%s379 + $0x10] sm:$0xff] %v384
                %v386 = vld [vmem:[%s378 + $0x30] sm:$0xff]
                %387 = vst [vmem:[%s379 + $0x18] sm:$0xff] %v386
                %v388 = vld [vmem:[%s378 + $0x40] sm:$0xff]
                %389 = vst [vmem:[%s379 + $0x20] sm:$0xff] %v388
                %v390 = vld [vmem:[%s378 + $0x50] sm:$0xff]
                %391 = vst [vmem:[%s379 + $0x28] sm:$0xff] %v390
                %v392 = vld [vmem:[%s378 + $0x60] sm:$0xff]
                %393 = vst [vmem:[%s379 + $0x30] sm:$0xff] %v392
                %v394 = vld [vmem:[%s378 + $0x70] sm:$0xff]
                %395 = vst [vmem:[%s379 + $0x38] sm:$0xff] %v394
                %v396 = vld [vmem:[%s378 + $0x80] sm:$0xff]
                %397 = vst [vmem:[%s379 + $0x40] sm:$0xff] %v396
                %v398 = vld [vmem:[%s378 + $0x90] sm:$0xff]
                %399 = vst [vmem:[%s379 + $0x48] sm:$0xff] %v398
                %v400 = vld [vmem:[%s378 + $0xa0] sm:$0xff]
                %401 = vst [vmem:[%s379 + $0x50] sm:$0xff] %v400
                %v402 = vld [vmem:[%s378 + $0xb0] sm:$0xff]
                %403 = vst [vmem:[%s379 + $0x58] sm:$0xff] %v402
                %v404 = vld [vmem:[%s378 + $0xc0] sm:$0xff]
                %405 = vst [vmem:[%s379 + $0x60] sm:$0xff] %v404
                %v406 = vld [vmem:[%s378 + $0xd0] sm:$0xff]
                %407 = vst [vmem:[%s379 + $0x68] sm:$0xff] %v406
                %v408 = vld [vmem:[%s378 + $0xe0] sm:$0xff]
                %409 = vst [vmem:[%s379 + $0x70] sm:$0xff] %v408
                %v410 = vld [vmem:[%s378 + $0xf0] sm:$0xff]
                %411 = vst [vmem:[%s379 + $0x78] sm:$0xff] %v410
              $region69: #{_lambda_.6} parent=63 // loop_footer
                %s377 = sadd.s32 1, %s373
              $region70: #{_lambda_.6} parent=63 // loop_footer_branch
                %372 = sbr.rel target = $region66
              $region71: #{_lambda_.6} parent=63 // loop_exit
                _
            $region64: #{_lambda_.6} parent=55 // pred_fallthru
              _
          $region56: #{_lambda_.6} parent=51 // pred_fallthru
            _
          %456 = vnop
        $region52: #{_lambda_.6} parent=47 // pred_fallthru
          _
        // Predicated region
        $region87: #{_lambda_.6} parent=47 // pred_check
          %p457 = pneg %p185
        $region88: #{_lambda_.6} parent=47 // pred_check_branch
          %459 = sbr.rel (%p457) target = $region90
        $region89: #{_lambda_.6} parent=47 // pred_region
          %s460 = smul.u32 2, %s25
          %p461 = scmp.lt.s32.totalorder %s460, 3
          %s462 = scalar_select %p461, %s460, 3
          %s463 = scalar_lea.vmem %s6, %s462
          %s464 = smul.u32 2, %s25
        $region90: #{_lambda_.6} parent=47 // pred_fallthru
          _
        // Predicated region
        $region91: #{_lambda_.6} parent=47 // pred_check
          %p465 = pneg %p211
        $region92: #{_lambda_.6} parent=47 // pred_check_branch
          %467 = sbr.rel (%p465) target = $region94
        $region93: #{_lambda_.6} parent=47 // pred_region
          %s468 = smul.u32 32, %s25
          %p469 = scmp.lt.s32.totalorder %s468, 63
          %s470 = scalar_select %p469, %s468, 63
          %s471 = smul.addr %s470, 4
          %s472 = scalar_lea.vmem %s7, %s471
          %s473 = smul.u32 32, %s25
        $region94: #{_lambda_.6} parent=47 // pred_fallthru
          _
      $region48: #{_lambda_.6} parent=5 // pred_fallthru
        _
      %p474 = scmp.le.s32.totalorder 1, %s17
      %p475 = scmp.lt.s32.totalorder %s17, 3
      %p476 = pnand %p474, %p475
      %p477 = pneg %p476
      // Predicated region
      $region95: #{_lambda_.6} parent=5 // pred_check
        _
      $region96: #{_lambda_.6} parent=5 // pred_check_branch
        %479 = sbr.rel (%p476) target = $region98
      $region97: #{_lambda_.6} parent=5 // pred_region
        %s480 = ssub.s32 %s17, 1
        %s481 = sand.u32 %s152, 1
        %s482 = sand.u32 %s152, 1
        %s483 = smul.addr %s482, 128
        %s484 = scalar_lea.vmem [#allocation4], %s483
        // Predicated region
        $region99: #{_lambda_.6} parent=97 // pred_check
          %p485 = pneg %p165
        $region100: #{_lambda_.6} parent=97 // pred_check_branch
          %487 = sbr.rel (%p485) target = $region102
        $region101: #{_lambda_.6} parent=97 // pred_region
          _
        $region102: #{_lambda_.6} parent=97 // pred_fallthru
          _
        %s488 = smul.u32 4, %s26
        %p489 = scmp.lt.s32.totalorder %s488, 3
        %s490 = scalar_select %p489, %s488, 3
        %s491 = smul.addr %s490, 8
        %s492 = scalar_lea.vmem %s0, %s491
        %p493 = pneg %p55
        %p494 = pneg %p52
        %p495 = pneg %p76
        %p496 = pneg %p73
        %p497 = pneg %p97
        %p498 = pneg %p94
        %p499 = pneg %p118
        %p500 = pneg %p115
        %p501 = pneg %p139
        %p502 = pneg %p136
        %s503 = sand.u32 %s152, 1
        %s504 = sand.u32 %s152, 1
        %s505 = smul.addr %s504, 128
        %s506 = scalar_lea.vmem [#allocation4], %s505
        %p507 = pneg %p165
        %p508 = pneg %p162
        %s509 = smul.u32 2, %s27
        %p510 = scmp.lt.s32.totalorder %s509, 3
        %s511 = scalar_select %p510, %s509, 3
        %s512 = scalar_lea.vmem %s6, %s511
        %p513 = pneg %p191
        %p514 = pneg %p188
        %s515 = smul.u32 32, %s27
        %p516 = scmp.lt.s32.totalorder %s515, 63
        %s517 = scalar_select %p516, %s515, 63
        %s518 = smul.addr %s517, 4
        %s519 = scalar_lea.vmem %s7, %s518
        %p520 = pneg %p217
        %p521 = pneg %p214
        %p522 = pneg %p238
        %p523 = pneg %p235
        %p524 = pneg %p259
        %p525 = pneg %p256
        %p526 = pneg %p280
        %p527 = pneg %p277
        %p528 = pneg %p306
        %p529 = pneg %p303
        %s530 = smul.u32 4, %s26
        %p531 = scmp.lt.s32.totalorder %s530, 3
        %s532 = scalar_select %p531, %s530, 3
        %s533 = smul.addr %s532, 8
        %s534 = scalar_lea.vmem %s11, %s533
        %s535 = smul.u32 4, %s26
        %p536 = scmp.lt.s32.totalorder %s535, 3
        %s537 = scalar_select %p536, %s535, 3
        %s538 = smul.addr %s537, 8
        %s539 = scalar_lea.vmem %s0, %s538
        %s540 = smul.u32 4, %s26
        %s541 = smul.u32 2, %s27
        %s542 = smul.u32 2, %s27
        %p543 = scmp.lt.s32.totalorder %s542, 3
        %s544 = scalar_select %p543, %s542, 3
        %s545 = scalar_lea.vmem %s6, %s544
        %s546 = smul.u32 2, %s27
        %s547 = smul.u32 32, %s27
        %p548 = scmp.lt.s32.totalorder %s547, 63
        %s549 = scalar_select %p548, %s547, 63
        %s550 = smul.addr %s549, 4
        %s551 = scalar_lea.vmem %s7, %s550
        %s552 = smul.u32 32, %s27
        %s553 = smul.u32 4, %s26
        %p554 = scmp.lt.s32.totalorder %s553, 3
        %s555 = scalar_select %p554, %s553, 3
        %s556 = smul.addr %s555, 8
        %s557 = scalar_lea.vmem %s11, %s556
        %s558 = smul.u32 4, %s26
        %p560 = scmp.eq.s32.totalorder %s27, 0
        // Predicated region
        $region103: #{_lambda_.6} parent=97 // pred_check
          %p561 = pneg %p560
        $region104: #{_lambda_.6} parent=97 // pred_check_branch
          %563 = sbr.rel (%p561) target = $region106
        $region105: #{_lambda_.6} parent=97 // pred_region
          %v564 = vld [vmem:[%s539] sm:$0xff]
          %v565 = vld [vmem:[%s539 + $0x8] sm:$0xff]
          %v566 = vld [vmem:[%s539 + $0x10] sm:$0xff]
          %v567 = vld [vmem:[%s539 + $0x18] sm:$0xff]
          %v568 = vpack.c.bf16 %v565, %v564
          %v569 = vpack.c.bf16 %v567, %v566
          %v570 = vld [vmem:[%s1] sm:$0xf]
          %v571 = vld [vmem:[%s1 + $0x4] sm:$0xf]
          %v572 = vld [vmem:[%s1 + $0x8] sm:$0xf]
          %v573 = vld [vmem:[%s1 + $0xc] sm:$0xf]
          %v574 = vld [vmem:[%s1 + $0x10] sm:$0xf]
          %v575 = vld [vmem:[%s1 + $0x14] sm:$0xf]
          %v576 = vld [vmem:[%s1 + $0x18] sm:$0xf]
          %v577 = vld [vmem:[%s1 + $0x1c] sm:$0xf]
          %v578 = vld [vmem:[%s1 + $0x20] sm:$0xf]
          %v579 = vld [vmem:[%s1 + $0x24] sm:$0xf]
          %v580 = vld [vmem:[%s1 + $0x28] sm:$0xf]
          %v581 = vld [vmem:[%s1 + $0x2c] sm:$0xf]
          %v582 = vld [vmem:[%s1 + $0x30] sm:$0xf]
          %v583 = vld [vmem:[%s1 + $0x34] sm:$0xf]
          %v584 = vld [vmem:[%s1 + $0x38] sm:$0xf]
          %v585 = vld [vmem:[%s1 + $0x3c] sm:$0xf]
          %v586 = vld [vmem:[%s2] sm:$0x1]
          %v588 = vlaneseq
          %v589 = vshrl.u32 %v588, 7
          %v590 = vsub.s32 0, %v589
          %v591 = vrot.slane %v586, %v590
          %v609 = vunpack.c.l.b16 %v570
          %v610 = vunpack.c.l.b16 %v571
          %v611 = vunpack.c.l.b16 %v572
          %v612 = vunpack.c.l.b16 %v573
          %v613 = vunpack.c.l.b16 %v574
          %v614 = vunpack.c.l.b16 %v575
          %v615 = vunpack.c.l.b16 %v576
          %v616 = vunpack.c.l.b16 %v577
          %v617 = vunpack.c.l.b16 %v578
          %v618 = vunpack.c.l.b16 %v579
          %v619 = vunpack.c.l.b16 %v580
          %v620 = vunpack.c.l.b16 %v581
          %v621 = vunpack.c.l.b16 %v582
          %v622 = vunpack.c.l.b16 %v583
          %v623 = vunpack.c.l.b16 %v584
          %v624 = vunpack.c.l.b16 %v585
          %v625 = vpack.c.b16 %v610, %v609
          %v626 = vpack.c.b16 %v612, %v611
          %v627 = vpack.c.b16 %v614, %v613
          %v628 = vpack.c.b16 %v616, %v615
          %v629 = vpack.c.b16 %v618, %v617
          %v630 = vpack.c.b16 %v620, %v619
          %v631 = vpack.c.b16 %v622, %v621
          %v632 = vpack.c.b16 %v624, %v623
          %641 = vmatprep.subr.bf16.mxu0 0
          %642 = vmatpush1.bf16.msra.mxu0 %v625
          %643 = vmatprep.subr.bf16.mxu0 0
          %644 = vmatpush1.bf16.msra.mxu0 %v626
          %645 = vmatprep.subr.bf16.mxu0 0
          %646 = vmatpush1.bf16.msra.mxu0 %v627
          %647 = vmatprep.subr.bf16.mxu0 0
          %648 = vmatpush1.bf16.msra.mxu0 %v628
          %649 = vmatprep.subr.bf16.mxu0 0
          %650 = vmatpush1.bf16.msra.mxu0 %v629
          %651 = vmatprep.subr.bf16.mxu0 0
          %652 = vmatpush1.bf16.msra.mxu0 %v630
          %653 = vmatprep.subr.bf16.mxu0 0
          %654 = vmatpush1.bf16.msra.mxu0 %v631
          %655 = vmatprep.subr.bf16.mxu0 0
          %656 = vmatpush1.bf16.msra.mxu0 %v632
          %657 = vmatprep.subr.bf16.mxu0 0
          %658 = vmatpush1.bf16.msra.mxu0 0
          %659 = vmatprep.subr.bf16.mxu0 0
          %660 = vmatpush1.bf16.msra.mxu0 0
          %661 = vmatprep.subr.bf16.mxu0 0
          %662 = vmatpush1.bf16.msra.mxu0 0
          %663 = vmatprep.subr.bf16.mxu0 0
          %664 = vmatpush1.bf16.msra.mxu0 0
          %665 = vmatprep.subr.bf16.mxu0 0
          %666 = vmatpush1.bf16.msra.mxu0 0
          %667 = vmatprep.subr.bf16.mxu0 0
          %668 = vmatpush1.bf16.msra.mxu0 0
          %669 = vmatprep.subr.bf16.mxu0 0
          %670 = vmatpush1.bf16.msra.mxu0 0
          %671 = vmatprep.subr.bf16.mxu0 0
          %672 = vmatpush1.bf16.msra.mxu0 0
          %673 = vmatprep.mubr.bf16.mxu0 0
          %674 = vmatmul.mubr.bf16.gmra.mrb[0].mxu0 %v568
          %v675 = vpop.f32.mrb[0].mxu0
          %v676 = vadd.f32 %v591, %v675
          %v677 = vpop.f32.mrb[0].mxu0
          %v678 = vpop.f32.mrb[0].mxu0
          %v679 = vadd.f32 %v591, %v678
          %v680 = vpop.f32.mrb[0].mxu0
          %681 = vmatprep.mubr.bf16.mxu0 0
          %682 = vmatmul.mubr.bf16.gmra.mrb[0].mxu0 %v569
          %v683 = vpop.f32.mrb[0].mxu0
          %v684 = vadd.f32 %v591, %v683
          %v685 = vpop.f32.mrb[0].mxu0
          %v686 = vpop.f32.mrb[0].mxu0
          %v687 = vadd.f32 %v591, %v686
          %v688 = vpop.f32.mrb[0].mxu0
          %689 = vdwg.mxu0
          %v690 = vadd.f32 %v676, %v564
          %v691 = vadd.f32 %v679, %v565
          %v692 = vadd.f32 %v684, %v566
          %v693 = vadd.f32 %v687, %v567
          %v694 = vld [vmem:[%s3] sm:$0x1]
          %v695 = vld [vmem:[%s4] sm:$0x1]
          %696 = vadd.xlane.f32.xlu0 %v690
          %v697 = vpop.xlane.xlu0 %696
          %698 = vadd.xlane.f32.xlu0 %v691
          %v699 = vpop.xlane.xlu0 %698
          %700 = vadd.xlane.f32.xlu0 %v692
          %v701 = vpop.xlane.xlu0 %700
          %702 = vadd.xlane.f32.xlu0 %v693
          %v703 = vpop.xlane.xlu0 %702
          %v704 = vrcp.pop 128.0
          %v705 = vmul.f32 %v697, %v704
          %v706 = vmul.f32 %v699, %v704
          %v707 = vmul.f32 %v701, %v704
          %v708 = vmul.f32 %v703, %v704
          %v709 = vsub.f32 %v690, %v705
          %v710 = vsub.f32 %v691, %v706
          %v711 = vsub.f32 %v692, %v707
          %v712 = vsub.f32 %v693, %v708
          %v713 = vmul.f32 %v709, %v709
          %v714 = vmul.f32 %v710, %v710
          %v715 = vmul.f32 %v711, %v711
          %v716 = vmul.f32 %v712, %v712
          %717 = vadd.xlane.f32.xlu0 %v713
          %v718 = vpop.xlane.xlu0 %717
          %719 = vadd.xlane.f32.xlu0 %v714
          %v720 = vpop.xlane.xlu0 %719
          %721 = vadd.xlane.f32.xlu0 %v715
          %v722 = vpop.xlane.xlu0 %721
          %723 = vadd.xlane.f32.xlu0 %v716
          %v724 = vpop.xlane.xlu0 %723
          %v725 = vmul.f32 %v718, %v704
          %v726 = vmul.f32 %v720, %v704
          %v727 = vmul.f32 %v722, %v704
          %v728 = vmul.f32 %v724, %v704
          %v729 = vadd.f32 %v725, 1e-05
          %v730 = vadd.f32 %v726, 1e-05
          %v731 = vadd.f32 %v727, 1e-05
          %v732 = vadd.f32 %v728, 1e-05
          %v733 = vrsqrt.pop %v729
          %v734 = vrsqrt.pop %v730
          %v735 = vrsqrt.pop %v731
          %v736 = vrsqrt.pop %v732
          %v737 = vmul.f32 %v709, %v733
          %v738 = vmul.f32 %v710, %v734
          %v739 = vmul.f32 %v711, %v735
          %v740 = vmul.f32 %v712, %v736
          %v742 = vlaneseq
          %v743 = vshrl.u32 %v742, 7
          %v744 = vsub.s32 0, %v743
          %v745 = vrot.slane %v694, %v744
          %v747 = vmul.f32 %v737, %v745
          %v748 = vmul.f32 %v738, %v745
          %v749 = vmul.f32 %v739, %v745
          %v750 = vmul.f32 %v740, %v745
          %v752 = vlaneseq
          %v753 = vshrl.u32 %v752, 7
          %v754 = vsub.s32 0, %v753
          %v755 = vrot.slane %v695, %v754
          %v757 = vadd.f32 %v747, %v755
          %v758 = vadd.f32 %v748, %v755
          %v759 = vadd.f32 %v749, %v755
          %v760 = vadd.f32 %v750, %v755
          %761 = vst [vmem:[#allocation2] sm:$0xff] %v757
          %762 = vst [vmem:[#allocation2 + $0x8] sm:$0xff] %v758
          %763 = vst [vmem:[#allocation2 + $0x10] sm:$0xff] %v759
          %764 = vst [vmem:[#allocation2 + $0x18] sm:$0xff] %v760
          %765 = vst [vmem:[#allocation3] sm:$0xff] 0.0
          %766 = vst [vmem:[#allocation3 + $0x8] sm:$0xff] 0.0
          %767 = vst [vmem:[#allocation3 + $0x10] sm:$0xff] 0.0
          %768 = vst [vmem:[#allocation3 + $0x18] sm:$0xff] 0.0
        $region106: #{_lambda_.6} parent=97 // pred_fallthru
          _
        %v769 = vld [vmem:[#allocation2] sm:$0xff]
        %v770 = vld [vmem:[#allocation2 + $0x8] sm:$0xff]
        %v771 = vld [vmem:[#allocation2 + $0x10] sm:$0xff]
        %v772 = vld [vmem:[#allocation2 + $0x18] sm:$0xff]
        %v773 = vpack.c.bf16 %v770, %v769
        %v774 = vpack.c.bf16 %v772, %v771
        %v775 = vld [vmem:[%s484] sm:$0xff]
        %v776 = vld [vmem:[%s484 + $0x8] sm:$0xff]
        %v777 = vld [vmem:[%s484 + $0x10] sm:$0xff]
        %v778 = vld [vmem:[%s484 + $0x18] sm:$0xff]
        %v779 = vld [vmem:[%s484 + $0x20] sm:$0xff]
        %v780 = vld [vmem:[%s484 + $0x28] sm:$0xff]
        %v781 = vld [vmem:[%s484 + $0x30] sm:$0xff]
        %v782 = vld [vmem:[%s484 + $0x38] sm:$0xff]
        %v783 = vld [vmem:[%s484 + $0x40] sm:$0xff]
        %v784 = vld [vmem:[%s484 + $0x48] sm:$0xff]
        %v785 = vld [vmem:[%s484 + $0x50] sm:$0xff]
        %v786 = vld [vmem:[%s484 + $0x58] sm:$0xff]
        %v787 = vld [vmem:[%s484 + $0x60] sm:$0xff]
        %v788 = vld [vmem:[%s484 + $0x68] sm:$0xff]
        %v789 = vld [vmem:[%s484 + $0x70] sm:$0xff]
        %v790 = vld [vmem:[%s484 + $0x78] sm:$0xff]
        %v791 = vld [vmem:[%s545] sm:$0x3]
        %v793 = vlaneseq
        %v794 = vshrl.u32 %v793, 7
        %v795 = vsub.s32 0, %v794
        %v796 = vrot.slane %v791, %v795
        %v797 = vlaneseq
        %v798 = vshrl.u32 %v797, 7
        %v799 = vsub.s32 1, %v798
        %v800 = vrot.slane %v791, %v799
        %v819 = vunpack.c.l.b16 %v775
        %v820 = vunpack.c.h.b16 %v775
        %v821 = vunpack.c.l.b16 %v776
        %v822 = vunpack.c.h.b16 %v776
        %v823 = vunpack.c.l.b16 %v777
        %v824 = vunpack.c.h.b16 %v777
        %v825 = vunpack.c.l.b16 %v778
        %v826 = vunpack.c.h.b16 %v778
        %v827 = vunpack.c.l.b16 %v779
        %v828 = vunpack.c.h.b16 %v779
        %v829 = vunpack.c.l.b16 %v780
        %v830 = vunpack.c.h.b16 %v780
        %v831 = vunpack.c.l.b16 %v781
        %v832 = vunpack.c.h.b16 %v781
        %v833 = vunpack.c.l.b16 %v782
        %v834 = vunpack.c.h.b16 %v782
        %v835 = vunpack.c.l.b16 %v783
        %v836 = vunpack.c.h.b16 %v783
        %v837 = vunpack.c.l.b16 %v784
        %v838 = vunpack.c.h.b16 %v784
        %v839 = vunpack.c.l.b16 %v785
        %v840 = vunpack.c.h.b16 %v785
        %v841 = vunpack.c.l.b16 %v786
        %v842 = vunpack.c.h.b16 %v786
        %v843 = vunpack.c.l.b16 %v787
        %v844 = vunpack.c.h.b16 %v787
        %v845 = vunpack.c.l.b16 %v788
        %v846 = vunpack.c.h.b16 %v788
        %v847 = vunpack.c.l.b16 %v789
        %v848 = vunpack.c.h.b16 %v789
        %v849 = vunpack.c.l.b16 %v790
        %v850 = vunpack.c.h.b16 %v790
        %v851 = vpack.c.b16 %v821, %v819
        %v852 = vpack.c.b16 %v822, %v820
        %v853 = vpack.c.b16 %v825, %v823
        %v854 = vpack.c.b16 %v826, %v824
        %v855 = vpack.c.b16 %v829, %v827
        %v856 = vpack.c.b16 %v830, %v828
        %v857 = vpack.c.b16 %v833, %v831
        %v858 = vpack.c.b16 %v834, %v832
        %v859 = vpack.c.b16 %v837, %v835
        %v860 = vpack.c.b16 %v838, %v836
        %v861 = vpack.c.b16 %v841, %v839
        %v862 = vpack.c.b16 %v842, %v840
        %v863 = vpack.c.b16 %v845, %v843
        %v864 = vpack.c.b16 %v846, %v844
        %v865 = vpack.c.b16 %v849, %v847
        %v866 = vpack.c.b16 %v850, %v848
        %883 = vmatprep.subr.bf16.mxu0 %v852
        %884 = vmatpush1.bf16.msra.mxu0 %v851
        %885 = vmatprep.subr.bf16.mxu0 %v854
        %886 = vmatpush1.bf16.msra.mxu0 %v853
        %887 = vmatprep.subr.bf16.mxu0 %v856
        %888 = vmatpush1.bf16.msra.mxu0 %v855
        %889 = vmatprep.subr.bf16.mxu0 %v858
        %890 = vmatpush1.bf16.msra.mxu0 %v857
        %891 = vmatprep.subr.bf16.mxu0 %v860
        %892 = vmatpush1.bf16.msra.mxu0 %v859
        %893 = vmatprep.subr.bf16.mxu0 %v862
        %894 = vmatpush1.bf16.msra.mxu0 %v861
        %895 = vmatprep.subr.bf16.mxu0 %v864
        %896 = vmatpush1.bf16.msra.mxu0 %v863
        %897 = vmatprep.subr.bf16.mxu0 %v866
        %898 = vmatpush1.bf16.msra.mxu0 %v865
        %899 = vmatprep.subr.bf16.mxu0 0
        %900 = vmatpush1.bf16.msra.mxu0 0
        %901 = vmatprep.subr.bf16.mxu0 0
        %902 = vmatpush1.bf16.msra.mxu0 0
        %903 = vmatprep.subr.bf16.mxu0 0
        %904 = vmatpush1.bf16.msra.mxu0 0
        %905 = vmatprep.subr.bf16.mxu0 0
        %906 = vmatpush1.bf16.msra.mxu0 0
        %907 = vmatprep.subr.bf16.mxu0 0
        %908 = vmatpush1.bf16.msra.mxu0 0
        %909 = vmatprep.subr.bf16.mxu0 0
        %910 = vmatpush1.bf16.msra.mxu0 0
        %911 = vmatprep.subr.bf16.mxu0 0
        %912 = vmatpush1.bf16.msra.mxu0 0
        %913 = vmatprep.subr.bf16.mxu0 0
        %914 = vmatpush1.bf16.msra.mxu0 0
        %915 = vmatprep.mubr.bf16.mxu0 0
        %916 = vmatmul.mubr.bf16.gmra.mrb[0].mxu0 %v773
        %v917 = vpop.f32.mrb[0].mxu0
        %v918 = vadd.f32 %v796, %v917
        %v919 = vpop.f32.mrb[0].mxu0
        %v920 = vadd.f32 %v800, %v919
        %v921 = vpop.f32.mrb[0].mxu0
        %v922 = vadd.f32 %v796, %v921
        %v923 = vpop.f32.mrb[0].mxu0
        %v924 = vadd.f32 %v800, %v923
        %925 = vmatprep.mubr.bf16.mxu0 0
        %926 = vmatmul.mubr.bf16.gmra.mrb[0].mxu0 %v774
        %v927 = vpop.f32.mrb[0].mxu0
        %v928 = vadd.f32 %v796, %v927
        %v929 = vpop.f32.mrb[0].mxu0
        %v930 = vadd.f32 %v800, %v929
        %v931 = vpop.f32.mrb[0].mxu0
        %v932 = vadd.f32 %v796, %v931
        %v933 = vpop.f32.mrb[0].mxu0
        %v934 = vadd.f32 %v800, %v933
        %935 = vdwg.mxu0
        %v936 = vmax.f32 %v918, 0.0
        %v937 = vmax.f32 %v920, 0.0
        %v938 = vmax.f32 %v922, 0.0
        %v939 = vmax.f32 %v924, 0.0
        %v940 = vmax.f32 %v928, 0.0
        %v941 = vmax.f32 %v930, 0.0
        %v942 = vmax.f32 %v932, 0.0
        %v943 = vmax.f32 %v934, 0.0
        %v944 = vld [vmem:[#allocation3] sm:$0xff]
        %v945 = vld [vmem:[#allocation3 + $0x8] sm:$0xff]
        %v946 = vld [vmem:[#allocation3 + $0x10] sm:$0xff]
        %v947 = vld [vmem:[#allocation3 + $0x18] sm:$0xff]
        %v948 = vpack.c.bf16 %v938, %v936
        %v949 = vpack.c.bf16 %v939, %v937
        %v950 = vpack.c.bf16 %v942, %v940
        %v951 = vpack.c.bf16 %v943, %v941
        %v952 = vld [vmem:[%s551] sm:$0xf]
        %v953 = vld [vmem:[%s551 + $0x4] sm:$0xf]
        %v954 = vld [vmem:[%s551 + $0x8] sm:$0xf]
        %v955 = vld [vmem:[%s551 + $0xc] sm:$0xf]
        %v956 = vld [vmem:[%s551 + $0x10] sm:$0xf]
        %v957 = vld [vmem:[%s551 + $0x14] sm:$0xf]
        %v958 = vld [vmem:[%s551 + $0x18] sm:$0xf]
        %v959 = vld [vmem:[%s551 + $0x1c] sm:$0xf]
        %v960 = vld [vmem:[%s551 + $0x20] sm:$0xf]
        %v961 = vld [vmem:[%s551 + $0x24] sm:$0xf]
        %v962 = vld [vmem:[%s551 + $0x28] sm:$0xf]
        %v963 = vld [vmem:[%s551 + $0x2c] sm:$0xf]
        %v964 = vld [vmem:[%s551 + $0x30] sm:$0xf]
        %v965 = vld [vmem:[%s551 + $0x34] sm:$0xf]
        %v966 = vld [vmem:[%s551 + $0x38] sm:$0xf]
        %v967 = vld [vmem:[%s551 + $0x3c] sm:$0xf]
        %v968 = vld [vmem:[%s551 + $0x40] sm:$0xf]
        %v969 = vld [vmem:[%s551 + $0x44] sm:$0xf]
        %v970 = vld [vmem:[%s551 + $0x48] sm:$0xf]
        %v971 = vld [vmem:[%s551 + $0x4c] sm:$0xf]
        %v972 = vld [vmem:[%s551 + $0x50] sm:$0xf]
        %v973 = vld [vmem:[%s551 + $0x54] sm:$0xf]
        %v974 = vld [vmem:[%s551 + $0x58] sm:$0xf]
        %v975 = vld [vmem:[%s551 + $0x5c] sm:$0xf]
        %v976 = vld [vmem:[%s551 + $0x60] sm:$0xf]
        %v977 = vld [vmem:[%s551 + $0x64] sm:$0xf]
        %v978 = vld [vmem:[%s551 + $0x68] sm:$0xf]
        %v979 = vld [vmem:[%s551 + $0x6c] sm:$0xf]
        %v980 = vld [vmem:[%s551 + $0x70] sm:$0xf]
        %v981 = vld [vmem:[%s551 + $0x74] sm:$0xf]
        %v982 = vld [vmem:[%s551 + $0x78] sm:$0xf]
        %v983 = vld [vmem:[%s551 + $0x7c] sm:$0xf]
        %v1016 = vunpack.c.l.b16 %v952
        %v1017 = vunpack.c.l.b16 %v953
        %v1018 = vunpack.c.l.b16 %v954
        %v1019 = vunpack.c.l.b16 %v955
        %v1020 = vunpack.c.l.b16 %v956
        %v1021 = vunpack.c.l.b16 %v957
        %v1022 = vunpack.c.l.b16 %v958
        %v1023 = vunpack.c.l.b16 %v959
        %v1024 = vunpack.c.l.b16 %v960
        %v1025 = vunpack.c.l.b16 %v961
        %v1026 = vunpack.c.l.b16 %v962
        %v1027 = vunpack.c.l.b16 %v963
        %v1028 = vunpack.c.l.b16 %v964
        %v1029 = vunpack.c.l.b16 %v965
        %v1030 = vunpack.c.l.b16 %v966
        %v1031 = vunpack.c.l.b16 %v967
        %v1032 = vunpack.c.l.b16 %v968
        %v1033 = vunpack.c.l.b16 %v969
        %v1034 = vunpack.c.l.b16 %v970
        %v1035 = vunpack.c.l.b16 %v971
        %v1036 = vunpack.c.l.b16 %v972
        %v1037 = vunpack.c.l.b16 %v973
        %v1038 = vunpack.c.l.b16 %v974
        %v1039 = vunpack.c.l.b16 %v975
        %v1040 = vunpack.c.l.b16 %v976
        %v1041 = vunpack.c.l.b16 %v977
        %v1042 = vunpack.c.l.b16 %v978
        %v1043 = vunpack.c.l.b16 %v979
        %v1044 = vunpack.c.l.b16 %v980
        %v1045 = vunpack.c.l.b16 %v981
        %v1046 = vunpack.c.l.b16 %v982
        %v1047 = vunpack.c.l.b16 %v983
        %v1048 = vpack.c.b16 %v1017, %v1016
        %v1049 = vpack.c.b16 %v1019, %v1018
        %v1050 = vpack.c.b16 %v1021, %v1020
        %v1051 = vpack.c.b16 %v1023, %v1022
        %v1052 = vpack.c.b16 %v1025, %v1024
        %v1053 = vpack.c.b16 %v1027, %v1026
        %v1054 = vpack.c.b16 %v1029, %v1028
        %v1055 = vpack.c.b16 %v1031, %v1030
        %v1056 = vpack.c.b16 %v1033, %v1032
        %v1057 = vpack.c.b16 %v1035, %v1034
        %v1058 = vpack.c.b16 %v1037, %v1036
        %v1059 = vpack.c.b16 %v1039, %v1038
        %v1060 = vpack.c.b16 %v1041, %v1040
        %v1061 = vpack.c.b16 %v1043, %v1042
        %v1062 = vpack.c.b16 %v1045, %v1044
        %v1063 = vpack.c.b16 %v1047, %v1046
        %1080 = vmatprep.subr.bf16.mxu0 0
        %1081 = vmatpush1.bf16.msra.mxu0 %v1048
        %1082 = vmatprep.subr.bf16.mxu0 0
        %1083 = vmatpush1.bf16.msra.mxu0 %v1049
        %1084 = vmatprep.subr.bf16.mxu0 0
        %1085 = vmatpush1.bf16.msra.mxu0 %v1050
        %1086 = vmatprep.subr.bf16.mxu0 0
        %1087 = vmatpush1.bf16.msra.mxu0 %v1051
        %1088 = vmatprep.subr.bf16.mxu0 0
        %1089 = vmatpush1.bf16.msra.mxu0 %v1052
        %1090 = vmatprep.subr.bf16.mxu0 0
        %1091 = vmatpush1.bf16.msra.mxu0 %v1053
        %1092 = vmatprep.subr.bf16.mxu0 0
        %1093 = vmatpush1.bf16.msra.mxu0 %v1054
        %1094 = vmatprep.subr.bf16.mxu0 0
        %1095 = vmatpush1.bf16.msra.mxu0 %v1055
        %1096 = vmatprep.subr.bf16.mxu0 0
        %1097 = vmatpush1.bf16.msra.mxu0 %v1056
        %1098 = vmatprep.subr.bf16.mxu0 0
        %1099 = vmatpush1.bf16.msra.mxu0 %v1057
        %1100 = vmatprep.subr.bf16.mxu0 0
        %1101 = vmatpush1.bf16.msra.mxu0 %v1058
        %1102 = vmatprep.subr.bf16.mxu0 0
        %1103 = vmatpush1.bf16.msra.mxu0 %v1059
        %1104 = vmatprep.subr.bf16.mxu0 0
        %1105 = vmatpush1.bf16.msra.mxu0 %v1060
        %1106 = vmatprep.subr.bf16.mxu0 0
        %1107 = vmatpush1.bf16.msra.mxu0 %v1061
        %1108 = vmatprep.subr.bf16.mxu0 0
        %1109 = vmatpush1.bf16.msra.mxu0 %v1062
        %1110 = vmatprep.subr.bf16.mxu0 0
        %1111 = vmatpush1.bf16.msra.mxu0 %v1063
        %1112 = vmatprep.mubr.bf16.mxu0 %v949
        %1113 = vmatmul.mubr.bf16.gmra.mrb[0].mxu0 %v948
        %v1114 = vpop.f32.mrb[0].mxu0
        %v1115 = vadd.f32 0.0, %v1114
        %v1116 = vpop.f32.mrb[0].mxu0
        %v1117 = vpop.f32.mrb[0].mxu0
        %v1118 = vadd.f32 0.0, %v1117
        %v1119 = vpop.f32.mrb[0].mxu0
        %1120 = vmatprep.mubr.bf16.mxu0 %v951
        %1121 = vmatmul.mubr.bf16.gmra.mrb[0].mxu0 %v950
        %v1122 = vpop.f32.mrb[0].mxu0
        %v1123 = vadd.f32 0.0, %v1122
        %v1124 = vpop.f32.mrb[0].mxu0
        %v1125 = vpop.f32.mrb[0].mxu0
        %v1126 = vadd.f32 0.0, %v1125
        %v1127 = vpop.f32.mrb[0].mxu0
        %1128 = vdwg.mxu0
        %v1129 = vadd.f32 %v944, %v1115
        %v1130 = vadd.f32 %v945, %v1118
        %v1131 = vadd.f32 %v946, %v1123
        %v1132 = vadd.f32 %v947, %v1126
        %1133 = vst [vmem:[#allocation3] sm:$0xff] %v1129
        %1134 = vst [vmem:[#allocation3 + $0x8] sm:$0xff] %v1130
        %1135 = vst [vmem:[#allocation3 + $0x10] sm:$0xff] %v1131
        %1136 = vst [vmem:[#allocation3 + $0x18] sm:$0xff] %v1132
        %p1137 = scmp.eq.s32.totalorder %s27, 1
        // Predicated region
        $region107: #{_lambda_.6} parent=97 // pred_check
          %p1138 = pneg %p1137
        $region108: #{_lambda_.6} parent=97 // pred_check_branch
          %1140 = sbr.rel (%p1138) target = $region110
        $region109: #{_lambda_.6} parent=97 // pred_region
          %v1141 = vld [vmem:[#allocation3] sm:$0xff]
          %v1142 = vld [vmem:[#allocation3 + $0x8] sm:$0xff]
          %v1143 = vld [vmem:[#allocation3 + $0x10] sm:$0xff]
          %v1144 = vld [vmem:[#allocation3 + $0x18] sm:$0xff]
          %v1145 = vld [vmem:[%s8] sm:$0x1]
          %v1147 = vlaneseq
          %v1148 = vshrl.u32 %v1147, 7
          %v1149 = vsub.s32 0, %v1148
          %v1150 = vrot.slane %v1145, %v1149
          %v1152 = vadd.f32 %v1141, %v1150
          %v1153 = vadd.f32 %v1142, %v1150
          %v1154 = vadd.f32 %v1143, %v1150
          %v1155 = vadd.f32 %v1144, %v1150
          %v1156 = vld [vmem:[#allocation2] sm:$0xff]
          %v1157 = vld [vmem:[#allocation2 + $0x8] sm:$0xff]
          %v1158 = vld [vmem:[#allocation2 + $0x10] sm:$0xff]
          %v1159 = vld [vmem:[#allocation2 + $0x18] sm:$0xff]
          %v1160 = vadd.f32 %v1152, %v1156
          %v1161 = vadd.f32 %v1153, %v1157
          %v1162 = vadd.f32 %v1154, %v1158
          %v1163 = vadd.f32 %v1155, %v1159
          %v1164 = vld [vmem:[%s9] sm:$0x1]
          %v1165 = vld [vmem:[%s10] sm:$0x1]
          %1166 = vadd.xlane.f32.xlu0 %v1160
          %v1167 = vpop.xlane.xlu0 %1166
          %1168 = vadd.xlane.f32.xlu0 %v1161
          %v1169 = vpop.xlane.xlu0 %1168
          %1170 = vadd.xlane.f32.xlu0 %v1162
          %v1171 = vpop.xlane.xlu0 %1170
          %1172 = vadd.xlane.f32.xlu0 %v1163
          %v1173 = vpop.xlane.xlu0 %1172
          %v1174 = vrcp.pop 128.0
          %v1175 = vmul.f32 %v1167, %v1174
          %v1176 = vmul.f32 %v1169, %v1174
          %v1177 = vmul.f32 %v1171, %v1174
          %v1178 = vmul.f32 %v1173, %v1174
          %v1179 = vsub.f32 %v1160, %v1175
          %v1180 = vsub.f32 %v1161, %v1176
          %v1181 = vsub.f32 %v1162, %v1177
          %v1182 = vsub.f32 %v1163, %v1178
          %v1183 = vmul.f32 %v1179, %v1179
          %v1184 = vmul.f32 %v1180, %v1180
          %v1185 = vmul.f32 %v1181, %v1181
          %v1186 = vmul.f32 %v1182, %v1182
          %1187 = vadd.xlane.f32.xlu0 %v1183
          %v1188 = vpop.xlane.xlu0 %1187
          %1189 = vadd.xlane.f32.xlu0 %v1184
          %v1190 = vpop.xlane.xlu0 %1189
          %1191 = vadd.xlane.f32.xlu0 %v1185
          %v1192 = vpop.xlane.xlu0 %1191
          %1193 = vadd.xlane.f32.xlu0 %v1186
          %v1194 = vpop.xlane.xlu0 %1193
          %v1195 = vmul.f32 %v1188, %v1174
          %v1196 = vmul.f32 %v1190, %v1174
          %v1197 = vmul.f32 %v1192, %v1174
          %v1198 = vmul.f32 %v1194, %v1174
          %v1199 = vadd.f32 %v1195, 1e-05
          %v1200 = vadd.f32 %v1196, 1e-05
          %v1201 = vadd.f32 %v1197, 1e-05
          %v1202 = vadd.f32 %v1198, 1e-05
          %v1203 = vrsqrt.pop %v1199
          %v1204 = vrsqrt.pop %v1200
          %v1205 = vrsqrt.pop %v1201
          %v1206 = vrsqrt.pop %v1202
          %v1207 = vmul.f32 %v1179, %v1203
          %v1208 = vmul.f32 %v1180, %v1204
          %v1209 = vmul.f32 %v1181, %v1205
          %v1210 = vmul.f32 %v1182, %v1206
          %v1212 = vlaneseq
          %v1213 = vshrl.u32 %v1212, 7
          %v1214 = vsub.s32 0, %v1213
          %v1215 = vrot.slane %v1164, %v1214
          %v1217 = vmul.f32 %v1207, %v1215
          %v1218 = vmul.f32 %v1208, %v1215
          %v1219 = vmul.f32 %v1209, %v1215
          %v1220 = vmul.f32 %v1210, %v1215
          %v1222 = vlaneseq
          %v1223 = vshrl.u32 %v1222, 7
          %v1224 = vsub.s32 0, %v1223
          %v1225 = vrot.slane %v1165, %v1224
          %v1227 = vadd.f32 %v1217, %v1225
          %v1228 = vadd.f32 %v1218, %v1225
          %v1229 = vadd.f32 %v1219, %v1225
          %v1230 = vadd.f32 %v1220, %v1225
          %1231 = vst [vmem:[%s557] sm:$0xff] %v1227
          %1232 = vst [vmem:[%s557 + $0x8] sm:$0xff] %v1228
          %1233 = vst [vmem:[%s557 + $0x10] sm:$0xff] %v1229
          %1234 = vst [vmem:[%s557 + $0x18] sm:$0xff] %v1230
        $region110: #{_lambda_.6} parent=97 // pred_fallthru
          _
        %s1235 = smul.u32 4, %s26
        %p1236 = scmp.lt.s32.totalorder %s1235, 3
        %s1237 = scalar_select %p1236, %s1235, 3
        %s1238 = smul.addr %s1237, 8
        %s1239 = scalar_lea.vmem %s11, %s1238
        // Predicated region
        $region111: #{_lambda_.6} parent=97 // pred_check
          %p1240 = pneg %p303
        $region112: #{_lambda_.6} parent=97 // pred_check_branch
          %1242 = sbr.rel (%p1240) target = $region114
        $region113: #{_lambda_.6} parent=97 // pred_region
          %s1243 = smul.u32 4, %s26
        $region114: #{_lambda_.6} parent=97 // pred_fallthru
          _
        // Predicated region
        $region115: #{_lambda_.6} parent=97 // pred_check
          %p1244 = pneg %p303
        $region116: #{_lambda_.6} parent=97 // pred_check_branch
          %1246 = sbr.rel (%p1244) target = $region118
        $region117: #{_lambda_.6} parent=97 // pred_region
          %s1247 = smul.u32 4, %s26
          %p1248 = scmp.lt.s32.totalorder %s1247, 3
          %s1249 = scalar_select %p1248, %s1247, 3
          %s1250 = smul.addr %s1249, 8
          %s1251 = scalar_lea.vmem %s11, %s1250
        $region118: #{_lambda_.6} parent=97 // pred_fallthru
          _
      $region98: #{_lambda_.6} parent=5 // pred_fallthru
        _
      %p1252 = scmp.le.s32.totalorder 2, %s17
      // Predicated region
      $region119: #{_lambda_.6} parent=5 // pred_check
        %p1253 = pneg %p1252
      $region120: #{_lambda_.6} parent=5 // pred_check_branch
        %1255 = sbr.rel (%p1253) target = $region122
      $region121: #{_lambda_.6} parent=5 // pred_region
        %s1256 = ssub.s32 %s17, 2
      $region122: #{_lambda_.6} parent=5 // pred_fallthru
        _
    $region6: #{_lambda_.6} parent=1 // loop_footer
      %s21 = sadd.s32 1, %s17
    $region7: #{_lambda_.6} parent=1 // loop_footer_branch
      %16 = sbr.rel target = $region3
    $region8: #{_lambda_.6} parent=1 // loop_exit
      _

// kernel: _lambda_.5
$region0: #{_lambda_.5}
  #allocation0 [shape = 'u32[]', space=smem, size = 0x4, offset = 0x4, fixed_abs, tag = 'smem constant byte address 0x4 - core index']
  #allocation1 [shape = 'u32[144,128]{1,0:T(1,128)}', space=vmem, size = 0x12000, scoped, tag = 'internal scratch']
  #allocation2 [shape = 'f32[16,128]{1,0:T(8,128)}', space=vmem, size = 0x2000, scoped, tag = 'scratch operand']
  #allocation3 [shape = 'f32[16,128]{1,0:T(8,128)}', space=vmem, size = 0x2000, scoped, tag = 'scratch operand']
  %s0 = inlined_call_operand.hbm [shape: f32[2,16,128], index: 0, kind: input, shape index: {}]
  %s1 = inlined_call_operand.vmem [shape: f32[16,128], index: 1, kind: input, shape index: {}]
  %s2 = inlined_call_operand.hbm [shape: bf16[128,128], index: 2, kind: input, shape index: {}]
  %s3 = inlined_call_operand.vmem [shape: f32[1,128], index: 3, kind: input, shape index: {}]
  %s4 = inlined_call_operand.vmem [shape: f32[1,128], index: 4, kind: input, shape index: {}]
  %s5 = inlined_call_operand.vmem [shape: f32[1,128], index: 5, kind: input, shape index: {}]
  %s6 = inlined_call_operand.hbm [shape: bf16[128,512], index: 6, kind: input, shape index: {}]
  %s7 = inlined_call_operand.vmem [shape: f32[1,512], index: 7, kind: input, shape index: {}]
  %s8 = inlined_call_operand.hbm [shape: bf16[512,128], index: 8, kind: input, shape index: {}]
  %s9 = inlined_call_operand.vmem [shape: f32[1,128], index: 9, kind: input, shape index: {}]
  %s10 = inlined_call_operand.vmem [shape: f32[1,128], index: 10, kind: input, shape index: {}]
  %s11 = inlined_call_operand.vmem [shape: f32[1,128], index: 11, kind: input, shape index: {}]
  %s12 = inlined_call_operand.vmem [shape: f32[2,16,128], index: 12, kind: output, shape index: {}]
  %s13 = sld [smem:[#allocation0]]
  $region105: #{_lambda_.5} parent=0
    _
  %s15 = ssub.s32 1, %s13
  %s16 = scalar_select 0, %s15, %s13
  $region1: #{_lambda_.5} parent=0
    #allocation4 [shape = 'u8[16384]{0}', space=vmem, size = 0x4000, scoped, tag = 'input window, operand 0']
    #allocation5 [shape = 's32[2]{0}', space=sflag, size = 0x8, scoped, tag = 'scoped memory for _lambda_.5']
    #allocation6 [shape = 'u8[32768]{0}', space=vmem, size = 0x8000, scoped, tag = 'input window, operand 2, single buffered']
    #allocation7 [shape = 's32[1]{0}', space=sflag, size = 0x4, scoped, tag = 'scoped memory for _lambda_.5']
    #allocation8 [shape = 'u8[131072]{0}', space=vmem, size = 0x20000, scoped, tag = 'input window, operand 6']
    #allocation9 [shape = 'u8[131072]{0}', space=vmem, size = 0x20000, scoped, tag = 'input window, operand 8']
    %17 = vsyncpa [#allocation5], 0
    %s18 = scalar_lea.sflag [#allocation5], 1
    %19 = vsyncpa %s18, 0
    %20 = vsyncpa [#allocation7], 0
    loop: start=0, step=1, limit=6
    $region2: #{_lambda_.5} parent=1 // loop_pre_header
      _
    $region3: #{_lambda_.5} parent=1 // loop_header
      %s22 = sphi 0, %s26
      %p23 = scmp.ge.s32.totalorder %s22, 6
      %s29 = sphi 0, %s48
      %s30 = sphi 0, %s44
      %s31 = sphi 0, %s40
      %s32 = sphi 0, %s29
      %s33 = sphi 0, %s30
      %s34 = sphi 0, %s31
      %s35 = sphi 0, %s32
      %s36 = sphi 0, %s33
      %s37 = sphi 0, %s34
      %s53 = sphi 0, %s55
      %s56 = sphi 0, %s53
      %s57 = sphi 0, %s56
      %s73 = sphi 0, %s57
      %s79 = sphi 0, %s81
      %s82 = sphi 0, %s79
      %s83 = sphi 0, %s82
      %s99 = sphi 0, %s83
      %s103 = sphi 0, %s103
      %s105 = sphi 0, %s103
      %s106 = sphi 0, %s105
      %s120 = sphi 0, %s106
      %s124 = sphi 0, %s124
      %s126 = sphi 0, %s124
      %s127 = sphi 0, %s126
      %s141 = sphi 0, %s127
      %s145 = sphi 0, %s145
      %s147 = sphi 0, %s145
      %s148 = sphi 0, %s147
      %s162 = sphi 0, %s148
      %s166 = sphi 0, %s166
      %s168 = sphi 0, %s166
      %s169 = sphi 0, %s168
      %s183 = sphi 0, %s169
      %s189 = sphi 0, %s191
      %s192 = sphi 0, %s189
      %s193 = sphi 0, %s192
      %s209 = sphi 0, %s193
      %s215 = sphi 0, %s217
      %s218 = sphi 0, %s215
      %s219 = sphi 0, %s218
      %s235 = sphi 0, %s219
      %s241 = sphi 0, %s243
      %s244 = sphi 0, %s241
      %s245 = sphi 0, %s244
      %s261 = sphi 0, %s245
      %s265 = sphi 0, %s265
      %s267 = sphi 0, %s265
      %s268 = sphi 0, %s267
      %s282 = sphi 0, %s268
      %s286 = sphi 0, %s286
      %s288 = sphi 0, %s286
      %s289 = sphi 0, %s288
      %s303 = sphi 0, %s289
      %s307 = sphi 0, %s307
      %s309 = sphi 0, %s307
      %s310 = sphi 0, %s309
      %s324 = sphi 0, %s310
      %s332 = sphi 0, %s334
      %s335 = sphi 0, %s332
      %s336 = sphi 0, %s335
      %s352 = sphi 0, %s336
    $region4: #{_lambda_.5} parent=1 // loop_header_branch
      %25 = sbr.rel (%p23) target = $region8
    $region5: #{_lambda_.5} parent=1 // loop_body
      %s27 = ssub.s32 %s22, 1
      %s28 = ssub.s32 %s22, 2
      %s38 = sadd.s32 1, %s31
      %p39 = scmp.ge.s32.totalorder %s38, 2
      %s40 = scalar_select %p39, 0, %s38
      %s41 = sadd.s32 1, %s30
      %s42 = scalar_select %p39, %s41, %s30
      %p43 = scmp.ge.s32.totalorder %s42, 1
      %s44 = scalar_select %p43, 0, %s42
      %s45 = sadd.s32 1, %s29
      %s46 = scalar_select %p43, %s45, %s29
      %p47 = scmp.ge.s32.totalorder %s46, 2
      %s48 = scalar_select %p47, 0, %s46
      %s49 = ssub.s32 %s29, %s48
      %s50 = ssub.s32 %s30, %s44
      %s51 = sor.u32 %s49, %s50
      %p52 = scmp.eq.s32.totalorder %s51, 0
      %s54 = sadd.s32 %s53, 1
      %s55 = scalar_select %p52, %s53, %s54
      %p58 = pneg %p52
      %p59 = scmp.eq.s32.totalorder %s22, 3
      %p60 = por %p58, %p59
      %p61 = scmp.ne.s32.totalorder %s53, %s56
      %p62 = scmp.eq.s32.totalorder %s22, 0
      %p63 = por %p61, %p62
      %p64 = scmp.ne.s32.totalorder %s53, %s56
      %p65 = scmp.eq.s32.totalorder %s27, 3
      %p66 = por %p64, %p65
      %p67 = scmp.ne.s32.totalorder %s56, %s57
      %p68 = scmp.eq.s32.totalorder %s27, 0
      %p69 = por %p67, %p68
      %p70 = scmp.ne.s32.totalorder %s56, %s57
      %p71 = scmp.eq.s32.totalorder %s28, 3
      %p72 = por %p70, %p71
      %p74 = scmp.ne.s32.totalorder %s57, %s73
      %p75 = scmp.eq.s32.totalorder %s28, 0
      %p76 = por %p74, %p75
      %s77 = ssub.s32 %s30, %s44
      %p78 = scmp.eq.s32.totalorder %s77, 0
      %s80 = sadd.s32 %s79, 1
      %s81 = scalar_select %p78, %s79, %s80
      %p84 = pneg %p78
      %p85 = scmp.eq.s32.totalorder %s22, 3
      %p86 = por %p84, %p85
      %p87 = scmp.ne.s32.totalorder %s79, %s82
      %p88 = scmp.eq.s32.totalorder %s22, 0
      %p89 = por %p87, %p88
      %p90 = scmp.ne.s32.totalorder %s79, %s82
      %p91 = scmp.eq.s32.totalorder %s27, 3
      %p92 = por %p90, %p91
      %p93 = scmp.ne.s32.totalorder %s82, %s83
      %p94 = scmp.eq.s32.totalorder %s27, 0
      %p95 = por %p93, %p94
      %p96 = scmp.ne.s32.totalorder %s82, %s83
      %p97 = scmp.eq.s32.totalorder %s28, 3
      %p98 = por %p96, %p97
      %p100 = scmp.ne.s32.totalorder %s83, %s99
      %p101 = scmp.eq.s32.totalorder %s28, 0
      %p102 = por %p100, %p101
      %s104 = sadd.s32 %s103, 1
      %p107 = scmp.eq.s32.totalorder %s22, 3
      %p108 = scmp.ne.s32.totalorder %s103, %s105
      %p109 = scmp.eq.s32.totalorder %s22, 0
      %p110 = por %p108, %p109
      %p111 = scmp.ne.s32.totalorder %s103, %s105
      %p112 = scmp.eq.s32.totalorder %s27, 3
      %p113 = por %p111, %p112
      %p114 = scmp.ne.s32.totalorder %s105, %s106
      %p115 = scmp.eq.s32.totalorder %s27, 0
      %p116 = por %p114, %p115
      %p117 = scmp.ne.s32.totalorder %s105, %s106
      %p118 = scmp.eq.s32.totalorder %s28, 3
      %p119 = por %p117, %p118
      %p121 = scmp.ne.s32.totalorder %s106, %s120
      %p122 = scmp.eq.s32.totalorder %s28, 0
      %p123 = por %p121, %p122
      %s125 = sadd.s32 %s124, 1
      %p128 = scmp.eq.s32.totalorder %s22, 3
      %p129 = scmp.ne.s32.totalorder %s124, %s126
      %p130 = scmp.eq.s32.totalorder %s22, 0
      %p131 = por %p129, %p130
      %p132 = scmp.ne.s32.totalorder %s124, %s126
      %p133 = scmp.eq.s32.totalorder %s27, 3
      %p134 = por %p132, %p133
      %p135 = scmp.ne.s32.totalorder %s126, %s127
      %p136 = scmp.eq.s32.totalorder %s27, 0
      %p137 = por %p135, %p136
      %p138 = scmp.ne.s32.totalorder %s126, %s127
      %p139 = scmp.eq.s32.totalorder %s28, 3
      %p140 = por %p138, %p139
      %p142 = scmp.ne.s32.totalorder %s127, %s141
      %p143 = scmp.eq.s32.totalorder %s28, 0
      %p144 = por %p142, %p143
      %s146 = sadd.s32 %s145, 1
      %p149 = scmp.eq.s32.totalorder %s22, 3
      %p150 = scmp.ne.s32.totalorder %s145, %s147
      %p151 = scmp.eq.s32.totalorder %s22, 0
      %p152 = por %p150, %p151
      %p153 = scmp.ne.s32.totalorder %s145, %s147
      %p154 = scmp.eq.s32.totalorder %s27, 3
      %p155 = por %p153, %p154
      %p156 = scmp.ne.s32.totalorder %s147, %s148
      %p157 = scmp.eq.s32.totalorder %s27, 0
      %p158 = por %p156, %p157
      %p159 = scmp.ne.s32.totalorder %s147, %s148
      %p160 = scmp.eq.s32.totalorder %s28, 3
      %p161 = por %p159, %p160
      %p163 = scmp.ne.s32.totalorder %s148, %s162
      %p164 = scmp.eq.s32.totalorder %s28, 0
      %p165 = por %p163, %p164
      %s167 = sadd.s32 %s166, 1
      %p170 = scmp.eq.s32.totalorder %s22, 3
      %p171 = scmp.ne.s32.totalorder %s166, %s168
      %p172 = scmp.eq.s32.totalorder %s22, 0
      %p173 = por %p171, %p172
      %p174 = scmp.ne.s32.totalorder %s166, %s168
      %p175 = scmp.eq.s32.totalorder %s27, 3
      %p176 = por %p174, %p175
      %p177 = scmp.ne.s32.totalorder %s168, %s169
      %p178 = scmp.eq.s32.totalorder %s27, 0
      %p179 = por %p177, %p178
      %p180 = scmp.ne.s32.totalorder %s168, %s169
      %p181 = scmp.eq.s32.totalorder %s28, 3
      %p182 = por %p180, %p181
      %p184 = scmp.ne.s32.totalorder %s169, %s183
      %p185 = scmp.eq.s32.totalorder %s28, 0
      %p186 = por %p184, %p185
      %s187 = ssub.s32 %s31, %s40
      %p188 = scmp.eq.s32.totalorder %s187, 0
      %s190 = sadd.s32 %s189, 1
      %s191 = scalar_select %p188, %s189, %s190
      %p194 = pneg %p188
      %p195 = scmp.eq.s32.totalorder %s22, 3
      %p196 = por %p194, %p195
      %p197 = scmp.ne.s32.totalorder %s189, %s192
      %p198 = scmp.eq.s32.totalorder %s22, 0
      %p199 = por %p197, %p198
      %p200 = scmp.ne.s32.totalorder %s189, %s192
      %p201 = scmp.eq.s32.totalorder %s27, 3
      %p202 = por %p200, %p201
      %p203 = scmp.ne.s32.totalorder %s192, %s193
      %p204 = scmp.eq.s32.totalorder %s27, 0
      %p205 = por %p203, %p204
      %p206 = scmp.ne.s32.totalorder %s192, %s193
      %p207 = scmp.eq.s32.totalorder %s28, 3
      %p208 = por %p206, %p207
      %p210 = scmp.ne.s32.totalorder %s193, %s209
      %p211 = scmp.eq.s32.totalorder %s28, 0
      %p212 = por %p210, %p211
      %s213 = ssub.s32 %s31, %s40
      %p214 = scmp.eq.s32.totalorder %s213, 0
      %s216 = sadd.s32 %s215, 1
      %s217 = scalar_select %p214, %s215, %s216
      %p220 = pneg %p214
      %p221 = scmp.eq.s32.totalorder %s22, 3
      %p222 = por %p220, %p221
      %p223 = scmp.ne.s32.totalorder %s215, %s218
      %p224 = scmp.eq.s32.totalorder %s22, 0
      %p225 = por %p223, %p224
      %p226 = scmp.ne.s32.totalorder %s215, %s218
      %p227 = scmp.eq.s32.totalorder %s27, 3
      %p228 = por %p226, %p227
      %p229 = scmp.ne.s32.totalorder %s218, %s219
      %p230 = scmp.eq.s32.totalorder %s27, 0
      %p231 = por %p229, %p230
      %p232 = scmp.ne.s32.totalorder %s218, %s219
      %p233 = scmp.eq.s32.totalorder %s28, 3
      %p234 = por %p232, %p233
      %p236 = scmp.ne.s32.totalorder %s219, %s235
      %p237 = scmp.eq.s32.totalorder %s28, 0
      %p238 = por %p236, %p237
      %s239 = ssub.s32 %s31, %s40
      %p240 = scmp.eq.s32.totalorder %s239, 0
      %s242 = sadd.s32 %s241, 1
      %s243 = scalar_select %p240, %s241, %s242
      %p246 = pneg %p240
      %p247 = scmp.eq.s32.totalorder %s22, 3
      %p248 = por %p246, %p247
      %p249 = scmp.ne.s32.totalorder %s241, %s244
      %p250 = scmp.eq.s32.totalorder %s22, 0
      %p251 = por %p249, %p250
      %p252 = scmp.ne.s32.totalorder %s241, %s244
      %p253 = scmp.eq.s32.totalorder %s27, 3
      %p254 = por %p252, %p253
      %p255 = scmp.ne.s32.totalorder %s244, %s245
      %p256 = scmp.eq.s32.totalorder %s27, 0
      %p257 = por %p255, %p256
      %p258 = scmp.ne.s32.totalorder %s244, %s245
      %p259 = scmp.eq.s32.totalorder %s28, 3
      %p260 = por %p258, %p259
      %p262 = scmp.ne.s32.totalorder %s245, %s261
      %p263 = scmp.eq.s32.totalorder %s28, 0
      %p264 = por %p262, %p263
      %s266 = sadd.s32 %s265, 1
      %p269 = scmp.eq.s32.totalorder %s22, 3
      %p270 = scmp.ne.s32.totalorder %s265, %s267
      %p271 = scmp.eq.s32.totalorder %s22, 0
      %p272 = por %p270, %p271
      %p273 = scmp.ne.s32.totalorder %s265, %s267
      %p274 = scmp.eq.s32.totalorder %s27, 3
      %p275 = por %p273, %p274
      %p276 = scmp.ne.s32.totalorder %s267, %s268
      %p277 = scmp.eq.s32.totalorder %s27, 0
      %p278 = por %p276, %p277
      %p279 = scmp.ne.s32.totalorder %s267, %s268
      %p280 = scmp.eq.s32.totalorder %s28, 3
      %p281 = por %p279, %p280
      %p283 = scmp.ne.s32.totalorder %s268, %s282
      %p284 = scmp.eq.s32.totalorder %s28, 0
      %p285 = por %p283, %p284
      %s287 = sadd.s32 %s286, 1
      %p290 = scmp.eq.s32.totalorder %s22, 3
      %p291 = scmp.ne.s32.totalorder %s286, %s288
      %p292 = scmp.eq.s32.totalorder %s22, 0
      %p293 = por %p291, %p292
      %p294 = scmp.ne.s32.totalorder %s286, %s288
      %p295 = scmp.eq.s32.totalorder %s27, 3
      %p296 = por %p294, %p295
      %p297 = scmp.ne.s32.totalorder %s288, %s289
      %p298 = scmp.eq.s32.totalorder %s27, 0
      %p299 = por %p297, %p298
      %p300 = scmp.ne.s32.totalorder %s288, %s289
      %p301 = scmp.eq.s32.totalorder %s28, 3
      %p302 = por %p300, %p301
      %p304 = scmp.ne.s32.totalorder %s289, %s303
      %p305 = scmp.eq.s32.totalorder %s28, 0
      %p306 = por %p304, %p305
      %s308 = sadd.s32 %s307, 1
      %p311 = scmp.eq.s32.totalorder %s22, 3
      %p312 = scmp.ne.s32.totalorder %s307, %s309
      %p313 = scmp.eq.s32.totalorder %s22, 0
      %p314 = por %p312, %p313
      %p315 = scmp.ne.s32.totalorder %s307, %s309
      %p316 = scmp.eq.s32.totalorder %s27, 3
      %p317 = por %p315, %p316
      %p318 = scmp.ne.s32.totalorder %s309, %s310
      %p319 = scmp.eq.s32.totalorder %s27, 0
      %p320 = por %p318, %p319
      %p321 = scmp.ne.s32.totalorder %s309, %s310
      %p322 = scmp.eq.s32.totalorder %s28, 3
      %p323 = por %p321, %p322
      %p325 = scmp.ne.s32.totalorder %s310, %s324
      %p326 = scmp.eq.s32.totalorder %s28, 0
      %p327 = por %p325, %p326
      %s328 = ssub.s32 %s29, %s48
      %s329 = ssub.s32 %s30, %s44
      %s330 = sor.u32 %s328, %s329
      %p331 = scmp.eq.s32.totalorder %s330, 0
      %s333 = sadd.s32 %s332, 1
      %s334 = scalar_select %p331, %s332, %s333
      %p337 = pneg %p331
      %p338 = scmp.eq.s32.totalorder %s22, 3
      %p339 = por %p337, %p338
      %p340 = scmp.ne.s32.totalorder %s332, %s335
      %p341 = scmp.eq.s32.totalorder %s22, 0
      %p342 = por %p340, %p341
      %p343 = scmp.ne.s32.totalorder %s332, %s335
      %p344 = scmp.eq.s32.totalorder %s27, 3
      %p345 = por %p343, %p344
      %p346 = scmp.ne.s32.totalorder %s335, %s336
      %p347 = scmp.eq.s32.totalorder %s27, 0
      %p348 = por %p346, %p347
      %p349 = scmp.ne.s32.totalorder %s335, %s336
      %p350 = scmp.eq.s32.totalorder %s28, 3
      %p351 = por %p349, %p350
      %p353 = scmp.ne.s32.totalorder %s336, %s352
      %p354 = scmp.eq.s32.totalorder %s28, 0
      %p355 = por %p353, %p354
      %p356 = scmp.le.s32.totalorder 1, %s22
      %p357 = scmp.lt.s32.totalorder %s22, 5
      %p358 = pnand %p356, %p357
      %p359 = pneg %p358
      // Predicated region
      $region9: #{_lambda_.5} parent=5 // pred_check
        _
      $region10: #{_lambda_.5} parent=5 // pred_check_branch
        %361 = sbr.rel (%p358) target = $region12
      $region11: #{_lambda_.5} parent=5 // pred_region
        %s362 = ssub.s32 %s22, 1
        // Predicated region
        $region13: #{_lambda_.5} parent=11 // pred_check
          %p363 = pneg %p95
        $region14: #{_lambda_.5} parent=11 // pred_check_branch
          %365 = sbr.rel (%p363) target = $region16
        $region15: #{_lambda_.5} parent=11 // pred_region
          %s366 = smul.u32 2, %s33
          %p367 = scmp.lt.s32.totalorder %s366, 1
          %s368 = scalar_select %p367, %s366, 1
          %s369 = smul.addr %s368, 8
          %s370 = scalar_lea.vmem %s1, %s369
          %s371 = smul.u32 2, %s33
        $region16: #{_lambda_.5} parent=11 // pred_fallthru
          _
        // Predicated region
        $region17: #{_lambda_.5} parent=11 // pred_check
          %p372 = pneg %p116
        $region18: #{_lambda_.5} parent=11 // pred_check_branch
          %374 = sbr.rel (%p372) target = $region20
        $region19: #{_lambda_.5} parent=11 // pred_region
          %s376 = ssub.s32 1024, 1024
          %377 = vsyncadd [#allocation7], %s376
          %s378 = sshll.u32 [#allocation6], 4
          %s379 = int_to_ptr.vmem [resolvable:$true] %s378
          %384 = dma.hbm_to_vmem [thread:$0]  %s2, 1024, %s379, [#allocation7], 64, 64, 4
        $region20: #{_lambda_.5} parent=11 // pred_fallthru
          _
        // Predicated region
        $region21: #{_lambda_.5} parent=11 // pred_check
          %p385 = pneg %p137
        $region22: #{_lambda_.5} parent=11 // pred_check_branch
          %387 = sbr.rel (%p385) target = $region24
        $region23: #{_lambda_.5} parent=11 // pred_region
          _
        $region24: #{_lambda_.5} parent=11 // pred_fallthru
          _
        // Predicated region
        $region25: #{_lambda_.5} parent=11 // pred_check
          %p388 = pneg %p158
        $region26: #{_lambda_.5} parent=11 // pred_check_branch
          %390 = sbr.rel (%p388) target = $region28
        $region27: #{_lambda_.5} parent=11 // pred_region
          _
        $region28: #{_lambda_.5} parent=11 // pred_fallthru
          _
        // Predicated region
        $region29: #{_lambda_.5} parent=11 // pred_check
          %p391 = pneg %p179
        $region30: #{_lambda_.5} parent=11 // pred_check_branch
          %393 = sbr.rel (%p391) target = $region32
        $region31: #{_lambda_.5} parent=11 // pred_region
          _
        $region32: #{_lambda_.5} parent=11 // pred_fallthru
          _
        // Predicated region
        $region33: #{_lambda_.5} parent=11 // pred_check
          %p394 = pneg %p278
        $region34: #{_lambda_.5} parent=11 // pred_check_branch
          %396 = sbr.rel (%p394) target = $region36
        $region35: #{_lambda_.5} parent=11 // pred_region
          _
        $region36: #{_lambda_.5} parent=11 // pred_fallthru
          _
        // Predicated region
        $region37: #{_lambda_.5} parent=11 // pred_check
          %p397 = pneg %p299
        $region38: #{_lambda_.5} parent=11 // pred_check_branch
          %399 = sbr.rel (%p397) target = $region40
        $region39: #{_lambda_.5} parent=11 // pred_region
          _
        $region40: #{_lambda_.5} parent=11 // pred_fallthru
          _
        // Predicated region
        $region41: #{_lambda_.5} parent=11 // pred_check
          %p400 = pneg %p320
        $region42: #{_lambda_.5} parent=11 // pred_check_branch
          %402 = sbr.rel (%p400) target = $region44
        $region43: #{_lambda_.5} parent=11 // pred_region
          _
        $region44: #{_lambda_.5} parent=11 // pred_fallthru
          _
      $region12: #{_lambda_.5} parent=5 // pred_fallthru
        _
      %p403 = scmp.lt.s32.totalorder %s22, 4
      // Predicated region
      $region45: #{_lambda_.5} parent=5 // pred_check
        %p404 = pneg %p403
      $region46: #{_lambda_.5} parent=5 // pred_check_branch
        %406 = sbr.rel (%p404) target = $region48
      $region47: #{_lambda_.5} parent=5 // pred_region
        // Predicated region
        $region49: #{_lambda_.5} parent=47 // pred_check
          %p407 = pneg %p63
        $region50: #{_lambda_.5} parent=47 // pred_check_branch
          %409 = sbr.rel (%p407) target = $region52
        $region51: #{_lambda_.5} parent=47 // pred_region
          %s410 = sand.u32 %s22, 1
          %s411 = scalar_lea.sflag [#allocation5], %s410
          %s412 = sand.u32 %s53, 1
          %s413 = smul.addr %s412, 16
          %s414 = scalar_lea.vmem [#allocation4], %s413
          %s415 = smul.u32 2, %s30
          %s417 = ssub.s32 256, 256
          %418 = vsyncadd %s411, %s417
          %s419 = smul.addr %s29, 2
          %s420 = sadd.s32 %s415, %s419
          %s421 = smul.addr %s420, 128
          %s422 = scalar_lea.hbm %s0, %s421
          %s423 = sshll.u32 %s414, 4
          %s424 = int_to_ptr.vmem [resolvable:$true] %s423
          %429 = dma.hbm_to_vmem [thread:$0]  %s422, 256, %s424, %s411, 128, 128, 8
        $region52: #{_lambda_.5} parent=47 // pred_fallthru
          _
        // Predicated region
        $region53: #{_lambda_.5} parent=47 // pred_check
          %p430 = pneg %p199
        $region54: #{_lambda_.5} parent=47 // pred_check_branch
          %432 = sbr.rel (%p430) target = $region56
        $region55: #{_lambda_.5} parent=47 // pred_region
          %s433 = sand.u32 %s22, 1
          %s434 = scalar_lea.sflag [#allocation5], %s433
          %s435 = sand.u32 %s189, 1
          %s436 = smul.addr %s435, 128
          %s437 = scalar_lea.vmem [#allocation8], %s436
          %s438 = smul.u32 2, %s31
          %s440 = ssub.s32 2048, 2048
          %441 = vsyncadd %s434, %s440
          %s442 = smul.addr %s438, 64
          %s443 = scalar_lea.hbm %s6, %s442
          %s444 = sshll.u32 %s437, 4
          %s445 = int_to_ptr.vmem [resolvable:$true] %s444
          %450 = dma.hbm_to_vmem [thread:$0]  %s443, 2048, %s445, %s434, 256, 128, 8
        $region56: #{_lambda_.5} parent=47 // pred_fallthru
          _
        // Predicated region
        $region57: #{_lambda_.5} parent=47 // pred_check
          %p451 = pneg %p225
        $region58: #{_lambda_.5} parent=47 // pred_check_branch
          %453 = sbr.rel (%p451) target = $region60
        $region59: #{_lambda_.5} parent=47 // pred_region
          %s454 = smul.u32 2, %s31
          %p455 = scmp.lt.s32.totalorder %s454, 3
          %s456 = scalar_select %p455, %s454, 3
          %s457 = scalar_lea.vmem %s7, %s456
          %s458 = smul.u32 2, %s31
        $region60: #{_lambda_.5} parent=47 // pred_fallthru
          _
        // Predicated region
        $region61: #{_lambda_.5} parent=47 // pred_check
          %p459 = pneg %p251
        $region62: #{_lambda_.5} parent=47 // pred_check_branch
          %461 = sbr.rel (%p459) target = $region64
        $region63: #{_lambda_.5} parent=47 // pred_region
          %s462 = sand.u32 %s22, 1
          %s463 = scalar_lea.sflag [#allocation5], %s462
          %s464 = sand.u32 %s241, 1
          %s465 = smul.addr %s464, 128
          %s466 = scalar_lea.vmem [#allocation9], %s465
          %s467 = smul.u32 32, %s31
          %s469 = ssub.s32 2048, 2048
          %470 = vsyncadd %s463, %s469
          %s471 = smul.addr %s467, 64
          %s472 = scalar_lea.hbm %s8, %s471
          %s473 = sshll.u32 %s466, 4
          %s474 = int_to_ptr.vmem [resolvable:$true] %s473
          %479 = dma.hbm_to_vmem [thread:$0]  %s472, 2048, %s474, %s463, 64, 64, 4
        $region64: #{_lambda_.5} parent=47 // pred_fallthru
          _
      $region48: #{_lambda_.5} parent=5 // pred_fallthru
        _
      %p480 = scmp.le.s32.totalorder 1, %s22
      %p481 = scmp.lt.s32.totalorder %s22, 5
      %p482 = pnand %p480, %p481
      %p483 = pneg %p482
      // Predicated region
      $region65: #{_lambda_.5} parent=5 // pred_check
        _
      $region66: #{_lambda_.5} parent=5 // pred_check_branch
        %485 = sbr.rel (%p482) target = $region68
      $region67: #{_lambda_.5} parent=5 // pred_region
        %s486 = ssub.s32 %s22, 1
        %s487 = sand.u32 %s27, 1
        %s488 = scalar_lea.sflag [#allocation5], %s487
        %s489 = sand.u32 %s56, 1
        %s490 = smul.addr %s489, 16
        %s491 = scalar_lea.vmem [#allocation4], %s490
        // Predicated region
        $region69: #{_lambda_.5} parent=67 // pred_check
          %p492 = pneg %p69
        $region70: #{_lambda_.5} parent=67 // pred_check_branch
          %494 = sbr.rel (%p492) target = $region72
        $region71: #{_lambda_.5} parent=67 // pred_region
          %495 = dma.done %s488, 256
        $region72: #{_lambda_.5} parent=67 // pred_fallthru
          _
        // Predicated region
        $region73: #{_lambda_.5} parent=67 // pred_check
          %p496 = pneg %p116
        $region74: #{_lambda_.5} parent=67 // pred_check_branch
          %498 = sbr.rel (%p496) target = $region76
        $region75: #{_lambda_.5} parent=67 // pred_region
          %499 = dma.done [#allocation7], 1024
        $region76: #{_lambda_.5} parent=67 // pred_fallthru
          _
        %s500 = sand.u32 %s27, 1
        %s501 = scalar_lea.sflag [#allocation5], %s500
        %s502 = sand.u32 %s192, 1
        %s503 = smul.addr %s502, 128
        %s504 = scalar_lea.vmem [#allocation8], %s503
        // Predicated region
        $region77: #{_lambda_.5} parent=67 // pred_check
          %p505 = pneg %p205
        $region78: #{_lambda_.5} parent=67 // pred_check_branch
          %507 = sbr.rel (%p505) target = $region80
        $region79: #{_lambda_.5} parent=67 // pred_region
          %508 = dma.done %s501, 2048
        $region80: #{_lambda_.5} parent=67 // pred_fallthru
          _
        %s509 = sand.u32 %s27, 1
        %s510 = scalar_lea.sflag [#allocation5], %s509
        %s511 = sand.u32 %s244, 1
        %s512 = smul.addr %s511, 128
        %s513 = scalar_lea.vmem [#allocation9], %s512
        // Predicated region
        $region81: #{_lambda_.5} parent=67 // pred_check
          %p514 = pneg %p257
        $region82: #{_lambda_.5} parent=67 // pred_check_branch
          %516 = sbr.rel (%p514) target = $region84
        $region83: #{_lambda_.5} parent=67 // pred_region
          %517 = dma.done %s510, 2048
        $region84: #{_lambda_.5} parent=67 // pred_fallthru
          _
        %s518 = sand.u32 %s27, 1
        %s519 = scalar_lea.sflag [#allocation5], %s518
        %s520 = sand.u32 %s56, 1
        %s521 = smul.addr %s520, 16
        %s522 = scalar_lea.vmem [#allocation4], %s521
        %p523 = pneg %p69
        %p524 = pneg %p66
        %s525 = smul.u32 2, %s33
        %p526 = scmp.lt.s32.totalorder %s525, 1
        %s527 = scalar_select %p526, %s525, 1
        %s528 = smul.addr %s527, 8
        %s529 = scalar_lea.vmem %s1, %s528
        %p530 = pneg %p95
        %p531 = pneg %p92
        %p532 = pneg %p116
        %p533 = pneg %p113
        %p534 = pneg %p137
        %p535 = pneg %p134
        %p536 = pneg %p158
        %p537 = pneg %p155
        %p538 = pneg %p179
        %p539 = pneg %p176
        %s540 = sand.u32 %s27, 1
        %s541 = scalar_lea.sflag [#allocation5], %s540
        %s542 = sand.u32 %s192, 1
        %s543 = smul.addr %s542, 128
        %s544 = scalar_lea.vmem [#allocation8], %s543
        %p545 = pneg %p205
        %p546 = pneg %p202
        %s547 = smul.u32 2, %s34
        %p548 = scmp.lt.s32.totalorder %s547, 3
        %s549 = scalar_select %p548, %s547, 3
        %s550 = scalar_lea.vmem %s7, %s549
        %p551 = pneg %p231
        %p552 = pneg %p228
        %s553 = sand.u32 %s27, 1
        %s554 = scalar_lea.sflag [#allocation5], %s553
        %s555 = sand.u32 %s244, 1
        %s556 = smul.addr %s555, 128
        %s557 = scalar_lea.vmem [#allocation9], %s556
        %p558 = pneg %p257
        %p559 = pneg %p254
        %p560 = pneg %p278
        %p561 = pneg %p275
        %p562 = pneg %p299
        %p563 = pneg %p296
        %p564 = pneg %p320
        %p565 = pneg %p317
        %p566 = pneg %p348
        %p567 = pneg %p345
        %s568 = smul.u32 2, %s33
        %p569 = scmp.lt.s32.totalorder %s32, 1
        %s570 = scalar_select %p569, %s32, 1
        %p571 = scmp.lt.s32.totalorder %s568, 1
        %s572 = scalar_select %p571, %s568, 1
        %s573 = smul.addr %s570, 2
        %s574 = sadd.s32 %s572, %s573
        %s575 = smul.addr %s574, 8
        %s576 = scalar_lea.vmem %s12, %s575
        %s577 = smul.u32 2, %s33
        %s578 = smul.u32 2, %s33
        %p579 = scmp.lt.s32.totalorder %s578, 1
        %s580 = scalar_select %p579, %s578, 1
        %s581 = smul.addr %s580, 8
        %s582 = scalar_lea.vmem %s1, %s581
        %s583 = smul.u32 2, %s33
        %s584 = smul.u32 2, %s34
        %s585 = smul.u32 2, %s34
        %p586 = scmp.lt.s32.totalorder %s585, 3
        %s587 = scalar_select %p586, %s585, 3
        %s588 = scalar_lea.vmem %s7, %s587
        %s589 = smul.u32 2, %s34
        %s590 = smul.u32 32, %s34
        %s591 = smul.u32 2, %s33
        %p592 = scmp.lt.s32.totalorder %s32, 1
        %s593 = scalar_select %p592, %s32, 1
        %p594 = scmp.lt.s32.totalorder %s591, 1
        %s595 = scalar_select %p594, %s591, 1
        %s596 = smul.addr %s593, 2
        %s597 = sadd.s32 %s595, %s596
        %s598 = smul.addr %s597, 8
        %s599 = scalar_lea.vmem %s12, %s598
        %s600 = smul.u32 2, %s33
        %p602 = scmp.eq.s32.totalorder %s34, 0
        // Predicated region
        $region85: #{_lambda_.5} parent=67 // pred_check
          %p603 = pneg %p602
        $region86: #{_lambda_.5} parent=67 // pred_check_branch
          %605 = sbr.rel (%p603) target = $region88
        $region87: #{_lambda_.5} parent=67 // pred_region
          %v606 = vld [vmem:[%s491] sm:$0xff]
          %v607 = vld [vmem:[%s491 + $0x8] sm:$0xff]
          %v608 = vld [vmem:[%s582] sm:$0xff]
          %v609 = vld [vmem:[%s582 + $0x8] sm:$0xff]
          %v610 = vadd.f32 %v606, %v608
          %v611 = vadd.f32 %v607, %v609
          %v612 = vpack.c.bf16 %v611, %v610
          %v613 = vld [vmem:[#allocation6] sm:$0xf]
          %v614 = vld [vmem:[#allocation6 + $0x4] sm:$0xf]
          %v615 = vld [vmem:[#allocation6 + $0x8] sm:$0xf]
          %v616 = vld [vmem:[#allocation6 + $0xc] sm:$0xf]
          %v617 = vld [vmem:[#allocation6 + $0x10] sm:$0xf]
          %v618 = vld [vmem:[#allocation6 + $0x14] sm:$0xf]
          %v619 = vld [vmem:[#allocation6 + $0x18] sm:$0xf]
          %v620 = vld [vmem:[#allocation6 + $0x1c] sm:$0xf]
          %v621 = vld [vmem:[#allocation6 + $0x20] sm:$0xf]
          %v622 = vld [vmem:[#allocation6 + $0x24] sm:$0xf]
          %v623 = vld [vmem:[#allocation6 + $0x28] sm:$0xf]
          %v624 = vld [vmem:[#allocation6 + $0x2c] sm:$0xf]
          %v625 = vld [vmem:[#allocation6 + $0x30] sm:$0xf]
          %v626 = vld [vmem:[#allocation6 + $0x34] sm:$0xf]
          %v627 = vld [vmem:[#allocation6 + $0x38] sm:$0xf]
          %v628 = vld [vmem:[#allocation6 + $0x3c] sm:$0xf]
          %v629 = vld [vmem:[%s3] sm:$0x1]
          %v631 = vlaneseq
          %v632 = vshrl.u32 %v631, 7
          %v633 = vsub.s32 0, %v632
          %v634 = vrot.slane %v629, %v633
          %v652 = vunpack.c.l.b16 %v613
          %v653 = vunpack.c.l.b16 %v614
          %v654 = vunpack.c.l.b16 %v615
          %v655 = vunpack.c.l.b16 %v616
          %v656 = vunpack.c.l.b16 %v617
          %v657 = vunpack.c.l.b16 %v618
          %v658 = vunpack.c.l.b16 %v619
          %v659 = vunpack.c.l.b16 %v620
          %v660 = vunpack.c.l.b16 %v621
          %v661 = vunpack.c.l.b16 %v622
          %v662 = vunpack.c.l.b16 %v623
          %v663 = vunpack.c.l.b16 %v624
          %v664 = vunpack.c.l.b16 %v625
          %v665 = vunpack.c.l.b16 %v626
          %v666 = vunpack.c.l.b16 %v627
          %v667 = vunpack.c.l.b16 %v628
          %v668 = vpack.c.b16 %v653, %v652
          %v669 = vpack.c.b16 %v655, %v654
          %v670 = vpack.c.b16 %v657, %v656
          %v671 = vpack.c.b16 %v659, %v658
          %v672 = vpack.c.b16 %v661, %v660
          %v673 = vpack.c.b16 %v663, %v662
          %v674 = vpack.c.b16 %v665, %v664
          %v675 = vpack.c.b16 %v667, %v666
          %684 = vmatprep.subr.bf16.mxu0 0
          %685 = vmatpush1.bf16.msra.mxu0 %v668
          %686 = vmatprep.subr.bf16.mxu0 0
          %687 = vmatpush1.bf16.msra.mxu0 %v669
          %688 = vmatprep.subr.bf16.mxu0 0
          %689 = vmatpush1.bf16.msra.mxu0 %v670
          %690 = vmatprep.subr.bf16.mxu0 0
          %691 = vmatpush1.bf16.msra.mxu0 %v671
          %692 = vmatprep.subr.bf16.mxu0 0
          %693 = vmatpush1.bf16.msra.mxu0 %v672
          %694 = vmatprep.subr.bf16.mxu0 0
          %695 = vmatpush1.bf16.msra.mxu0 %v673
          %696 = vmatprep.subr.bf16.mxu0 0
          %697 = vmatpush1.bf16.msra.mxu0 %v674
          %698 = vmatprep.subr.bf16.mxu0 0
          %699 = vmatpush1.bf16.msra.mxu0 %v675
          %700 = vmatprep.subr.bf16.mxu0 0
          %701 = vmatpush1.bf16.msra.mxu0 0
          %702 = vmatprep.subr.bf16.mxu0 0
          %703 = vmatpush1.bf16.msra.mxu0 0
          %704 = vmatprep.subr.bf16.mxu0 0
          %705 = vmatpush1.bf16.msra.mxu0 0
          %706 = vmatprep.subr.bf16.mxu0 0
          %707 = vmatpush1.bf16.msra.mxu0 0
          %708 = vmatprep.subr.bf16.mxu0 0
          %709 = vmatpush1.bf16.msra.mxu0 0
          %710 = vmatprep.subr.bf16.mxu0 0
          %711 = vmatpush1.bf16.msra.mxu0 0
          %712 = vmatprep.subr.bf16.mxu0 0
          %713 = vmatpush1.bf16.msra.mxu0 0
          %714 = vmatprep.subr.bf16.mxu0 0
          %715 = vmatpush1.bf16.msra.mxu0 0
          %716 = vmatprep.mubr.bf16.mxu0 0
          %717 = vmatmul.mubr.bf16.gmra.mrb[0].mxu0 %v612
          %v718 = vpop.f32.mrb[0].mxu0
          %v719 = vadd.f32 %v634, %v718
          %v720 = vpop.f32.mrb[0].mxu0
          %v721 = vpop.f32.mrb[0].mxu0
          %v722 = vadd.f32 %v634, %v721
          %v723 = vpop.f32.mrb[0].mxu0
          %724 = vdwg.mxu0
          %v725 = vadd.f32 %v719, %v610
          %v726 = vadd.f32 %v722, %v611
          %v727 = vld [vmem:[%s4] sm:$0x1]
          %v728 = vld [vmem:[%s5] sm:$0x1]
          %729 = vadd.xlane.f32.xlu0 %v725
          %v730 = vpop.xlane.xlu0 %729
          %731 = vadd.xlane.f32.xlu0 %v726
          %v732 = vpop.xlane.xlu0 %731
          %v733 = vrcp.pop 128.0
          %v734 = vmul.f32 %v730, %v733
          %v735 = vmul.f32 %v732, %v733
          %v736 = vsub.f32 %v725, %v734
          %v737 = vsub.f32 %v726, %v735
          %v738 = vmul.f32 %v736, %v736
          %v739 = vmul.f32 %v737, %v737
          %740 = vadd.xlane.f32.xlu0 %v738
          %v741 = vpop.xlane.xlu0 %740
          %742 = vadd.xlane.f32.xlu0 %v739
          %v743 = vpop.xlane.xlu0 %742
          %v744 = vmul.f32 %v741, %v733
          %v745 = vmul.f32 %v743, %v733
          %v746 = vadd.f32 %v744, 1e-05
          %v747 = vadd.f32 %v745, 1e-05
          %v748 = vrsqrt.pop %v746
          %v749 = vrsqrt.pop %v747
          %v750 = vmul.f32 %v736, %v748
          %v751 = vmul.f32 %v737, %v749
          %v753 = vlaneseq
          %v754 = vshrl.u32 %v753, 7
          %v755 = vsub.s32 0, %v754
          %v756 = vrot.slane %v727, %v755
          %v758 = vmul.f32 %v750, %v756
          %v759 = vmul.f32 %v751, %v756
          %v761 = vlaneseq
          %v762 = vshrl.u32 %v761, 7
          %v763 = vsub.s32 0, %v762
          %v764 = vrot.slane %v728, %v763
          %v766 = vadd.f32 %v758, %v764
          %v767 = vadd.f32 %v759, %v764
          %768 = vst [vmem:[#allocation2] sm:$0xff] %v766
          %769 = vst [vmem:[#allocation2 + $0x8] sm:$0xff] %v767
          %770 = vst [vmem:[#allocation3] sm:$0xff] 0.0
          %771 = vst [vmem:[#allocation3 + $0x8] sm:$0xff] 0.0
        $region88: #{_lambda_.5} parent=67 // pred_fallthru
          _
        %v772 = vld [vmem:[#allocation2] sm:$0xff]
        %v773 = vld [vmem:[#allocation2 + $0x8] sm:$0xff]
        %v774 = vpack.c.bf16 %v773, %v772
        %v775 = vld [vmem:[%s504] sm:$0xff]
        %v776 = vld [vmem:[%s504 + $0x8] sm:$0xff]
        %v777 = vld [vmem:[%s504 + $0x10] sm:$0xff]
        %v778 = vld [vmem:[%s504 + $0x18] sm:$0xff]
        %v779 = vld [vmem:[%s504 + $0x20] sm:$0xff]
        %v780 = vld [vmem:[%s504 + $0x28] sm:$0xff]
        %v781 = vld [vmem:[%s504 + $0x30] sm:$0xff]
        %v782 = vld [vmem:[%s504 + $0x38] sm:$0xff]
        %v783 = vld [vmem:[%s504 + $0x40] sm:$0xff]
        %v784 = vld [vmem:[%s504 + $0x48] sm:$0xff]
        %v785 = vld [vmem:[%s504 + $0x50] sm:$0xff]
        %v786 = vld [vmem:[%s504 + $0x58] sm:$0xff]
        %v787 = vld [vmem:[%s504 + $0x60] sm:$0xff]
        %v788 = vld [vmem:[%s504 + $0x68] sm:$0xff]
        %v789 = vld [vmem:[%s504 + $0x70] sm:$0xff]
        %v790 = vld [vmem:[%s504 + $0x78] sm:$0xff]
        %v791 = vld [vmem:[%s588] sm:$0x3]
        %v793 = vlaneseq
        %v794 = vshrl.u32 %v793, 7
        %v795 = vsub.s32 0, %v794
        %v796 = vrot.slane %v791, %v795
        %v797 = vlaneseq
        %v798 = vshrl.u32 %v797, 7
        %v799 = vsub.s32 1, %v798
        %v800 = vrot.slane %v791, %v799
        %v819 = vunpack.c.l.b16 %v775
        %v820 = vunpack.c.h.b16 %v775
        %v821 = vunpack.c.l.b16 %v776
        %v822 = vunpack.c.h.b16 %v776
        %v823 = vunpack.c.l.b16 %v777
        %v824 = vunpack.c.h.b16 %v777
        %v825 = vunpack.c.l.b16 %v778
        %v826 = vunpack.c.h.b16 %v778
        %v827 = vunpack.c.l.b16 %v779
        %v828 = vunpack.c.h.b16 %v779
        %v829 = vunpack.c.l.b16 %v780
        %v830 = vunpack.c.h.b16 %v780
        %v831 = vunpack.c.l.b16 %v781
        %v832 = vunpack.c.h.b16 %v781
        %v833 = vunpack.c.l.b16 %v782
        %v834 = vunpack.c.h.b16 %v782
        %v835 = vunpack.c.l.b16 %v783
        %v836 = vunpack.c.h.b16 %v783
        %v837 = vunpack.c.l.b16 %v784
        %v838 = vunpack.c.h.b16 %v784
        %v839 = vunpack.c.l.b16 %v785
        %v840 = vunpack.c.h.b16 %v785
        %v841 = vunpack.c.l.b16 %v786
        %v842 = vunpack.c.h.b16 %v786
        %v843 = vunpack.c.l.b16 %v787
        %v844 = vunpack.c.h.b16 %v787
        %v845 = vunpack.c.l.b16 %v788
        %v846 = vunpack.c.h.b16 %v788
        %v847 = vunpack.c.l.b16 %v789
        %v848 = vunpack.c.h.b16 %v789
        %v849 = vunpack.c.l.b16 %v790
        %v850 = vunpack.c.h.b16 %v790
        %v851 = vpack.c.b16 %v821, %v819
        %v852 = vpack.c.b16 %v822, %v820
        %v853 = vpack.c.b16 %v825, %v823
        %v854 = vpack.c.b16 %v826, %v824
        %v855 = vpack.c.b16 %v829, %v827
        %v856 = vpack.c.b16 %v830, %v828
        %v857 = vpack.c.b16 %v833, %v831
        %v858 = vpack.c.b16 %v834, %v832
        %v859 = vpack.c.b16 %v837, %v835
        %v860 = vpack.c.b16 %v838, %v836
        %v861 = vpack.c.b16 %v841, %v839
        %v862 = vpack.c.b16 %v842, %v840
        %v863 = vpack.c.b16 %v845, %v843
        %v864 = vpack.c.b16 %v846, %v844
        %v865 = vpack.c.b16 %v849, %v847
        %v866 = vpack.c.b16 %v850, %v848
        %883 = vmatprep.subr.bf16.mxu0 %v852
        %884 = vmatpush1.bf16.msra.mxu0 %v851
        %885 = vmatprep.subr.bf16.mxu0 %v854
        %886 = vmatpush1.bf16.msra.mxu0 %v853
        %887 = vmatprep.subr.bf16.mxu0 %v856
        %888 = vmatpush1.bf16.msra.mxu0 %v855
        %889 = vmatprep.subr.bf16.mxu0 %v858
        %890 = vmatpush1.bf16.msra.mxu0 %v857
        %891 = vmatprep.subr.bf16.mxu0 %v860
        %892 = vmatpush1.bf16.msra.mxu0 %v859
        %893 = vmatprep.subr.bf16.mxu0 %v862
        %894 = vmatpush1.bf16.msra.mxu0 %v861
        %895 = vmatprep.subr.bf16.mxu0 %v864
        %896 = vmatpush1.bf16.msra.mxu0 %v863
        %897 = vmatprep.subr.bf16.mxu0 %v866
        %898 = vmatpush1.bf16.msra.mxu0 %v865
        %899 = vmatprep.subr.bf16.mxu0 0
        %900 = vmatpush1.bf16.msra.mxu0 0
        %901 = vmatprep.subr.bf16.mxu0 0
        %902 = vmatpush1.bf16.msra.mxu0 0
        %903 = vmatprep.subr.bf16.mxu0 0
        %904 = vmatpush1.bf16.msra.mxu0 0
        %905 = vmatprep.subr.bf16.mxu0 0
        %906 = vmatpush1.bf16.msra.mxu0 0
        %907 = vmatprep.subr.bf16.mxu0 0
        %908 = vmatpush1.bf16.msra.mxu0 0
        %909 = vmatprep.subr.bf16.mxu0 0
        %910 = vmatpush1.bf16.msra.mxu0 0
        %911 = vmatprep.subr.bf16.mxu0 0
        %912 = vmatpush1.bf16.msra.mxu0 0
        %913 = vmatprep.subr.bf16.mxu0 0
        %914 = vmatpush1.bf16.msra.mxu0 0
        %915 = vmatprep.mubr.bf16.mxu0 0
        %916 = vmatmul.mubr.bf16.gmra.mrb[0].mxu0 %v774
        %v917 = vpop.f32.mrb[0].mxu0
        %v918 = vadd.f32 %v796, %v917
        %v919 = vpop.f32.mrb[0].mxu0
        %v920 = vadd.f32 %v800, %v919
        %v921 = vpop.f32.mrb[0].mxu0
        %v922 = vadd.f32 %v796, %v921
        %v923 = vpop.f32.mrb[0].mxu0
        %v924 = vadd.f32 %v800, %v923
        %925 = vdwg.mxu0
        %v926 = vmax.f32 %v918, 0.0
        %v927 = vmax.f32 %v920, 0.0
        %v928 = vmax.f32 %v922, 0.0
        %v929 = vmax.f32 %v924, 0.0
        %v930 = vld [vmem:[#allocation3] sm:$0xff]
        %v931 = vld [vmem:[#allocation3 + $0x8] sm:$0xff]
        %v932 = vpack.c.bf16 %v928, %v926
        %v933 = vpack.c.bf16 %v929, %v927
        %v934 = vld [vmem:[%s513] sm:$0xf]
        %v935 = vld [vmem:[%s513 + $0x4] sm:$0xf]
        %v936 = vld [vmem:[%s513 + $0x8] sm:$0xf]
        %v937 = vld [vmem:[%s513 + $0xc] sm:$0xf]
        %v938 = vld [vmem:[%s513 + $0x10] sm:$0xf]
        %v939 = vld [vmem:[%s513 + $0x14] sm:$0xf]
        %v940 = vld [vmem:[%s513 + $0x18] sm:$0xf]
        %v941 = vld [vmem:[%s513 + $0x1c] sm:$0xf]
        %v942 = vld [vmem:[%s513 + $0x20] sm:$0xf]
        %v943 = vld [vmem:[%s513 + $0x24] sm:$0xf]
        %v944 = vld [vmem:[%s513 + $0x28] sm:$0xf]
        %v945 = vld [vmem:[%s513 + $0x2c] sm:$0xf]
        %v946 = vld [vmem:[%s513 + $0x30] sm:$0xf]
        %v947 = vld [vmem:[%s513 + $0x34] sm:$0xf]
        %v948 = vld [vmem:[%s513 + $0x38] sm:$0xf]
        %v949 = vld [vmem:[%s513 + $0x3c] sm:$0xf]
        %v950 = vld [vmem:[%s513 + $0x40] sm:$0xf]
        %v951 = vld [vmem:[%s513 + $0x44] sm:$0xf]
        %v952 = vld [vmem:[%s513 + $0x48] sm:$0xf]
        %v953 = vld [vmem:[%s513 + $0x4c] sm:$0xf]
        %v954 = vld [vmem:[%s513 + $0x50] sm:$0xf]
        %v955 = vld [vmem:[%s513 + $0x54] sm:$0xf]
        %v956 = vld [vmem:[%s513 + $0x58] sm:$0xf]
        %v957 = vld [vmem:[%s513 + $0x5c] sm:$0xf]
        %v958 = vld [vmem:[%s513 + $0x60] sm:$0xf]
        %v959 = vld [vmem:[%s513 + $0x64] sm:$0xf]
        %v960 = vld [vmem:[%s513 + $0x68] sm:$0xf]
        %v961 = vld [vmem:[%s513 + $0x6c] sm:$0xf]
        %v962 = vld [vmem:[%s513 + $0x70] sm:$0xf]
        %v963 = vld [vmem:[%s513 + $0x74] sm:$0xf]
        %v964 = vld [vmem:[%s513 + $0x78] sm:$0xf]
        %v965 = vld [vmem:[%s513 + $0x7c] sm:$0xf]
        %v998 = vunpack.c.l.b16 %v934
        %v999 = vunpack.c.l.b16 %v935
        %v1000 = vunpack.c.l.b16 %v936
        %v1001 = vunpack.c.l.b16 %v937
        %v1002 = vunpack.c.l.b16 %v938
        %v1003 = vunpack.c.l.b16 %v939
        %v1004 = vunpack.c.l.b16 %v940
        %v1005 = vunpack.c.l.b16 %v941
        %v1006 = vunpack.c.l.b16 %v942
        %v1007 = vunpack.c.l.b16 %v943
        %v1008 = vunpack.c.l.b16 %v944
        %v1009 = vunpack.c.l.b16 %v945
        %v1010 = vunpack.c.l.b16 %v946
        %v1011 = vunpack.c.l.b16 %v947
        %v1012 = vunpack.c.l.b16 %v948
        %v1013 = vunpack.c.l.b16 %v949
        %v1014 = vunpack.c.l.b16 %v950
        %v1015 = vunpack.c.l.b16 %v951
        %v1016 = vunpack.c.l.b16 %v952
        %v1017 = vunpack.c.l.b16 %v953
        %v1018 = vunpack.c.l.b16 %v954
        %v1019 = vunpack.c.l.b16 %v955
        %v1020 = vunpack.c.l.b16 %v956
        %v1021 = vunpack.c.l.b16 %v957
        %v1022 = vunpack.c.l.b16 %v958
        %v1023 = vunpack.c.l.b16 %v959
        %v1024 = vunpack.c.l.b16 %v960
        %v1025 = vunpack.c.l.b16 %v961
        %v1026 = vunpack.c.l.b16 %v962
        %v1027 = vunpack.c.l.b16 %v963
        %v1028 = vunpack.c.l.b16 %v964
        %v1029 = vunpack.c.l.b16 %v965
        %v1030 = vpack.c.b16 %v999, %v998
        %v1031 = vpack.c.b16 %v1001, %v1000
        %v1032 = vpack.c.b16 %v1003, %v1002
        %v1033 = vpack.c.b16 %v1005, %v1004
        %v1034 = vpack.c.b16 %v1007, %v1006
        %v1035 = vpack.c.b16 %v1009, %v1008
        %v1036 = vpack.c.b16 %v1011, %v1010
        %v1037 = vpack.c.b16 %v1013, %v1012
        %v1038 = vpack.c.b16 %v1015, %v1014
        %v1039 = vpack.c.b16 %v1017, %v1016
        %v1040 = vpack.c.b16 %v1019, %v1018
        %v1041 = vpack.c.b16 %v1021, %v1020
        %v1042 = vpack.c.b16 %v1023, %v1022
        %v1043 = vpack.c.b16 %v1025, %v1024
        %v1044 = vpack.c.b16 %v1027, %v1026
        %v1045 = vpack.c.b16 %v1029, %v1028
        %1062 = vmatprep.subr.bf16.mxu0 0
        %1063 = vmatpush1.bf16.msra.mxu0 %v1030
        %1064 = vmatprep.subr.bf16.mxu0 0
        %1065 = vmatpush1.bf16.msra.mxu0 %v1031
        %1066 = vmatprep.subr.bf16.mxu0 0
        %1067 = vmatpush1.bf16.msra.mxu0 %v1032
        %1068 = vmatprep.subr.bf16.mxu0 0
        %1069 = vmatpush1.bf16.msra.mxu0 %v1033
        %1070 = vmatprep.subr.bf16.mxu0 0
        %1071 = vmatpush1.bf16.msra.mxu0 %v1034
        %1072 = vmatprep.subr.bf16.mxu0 0
        %1073 = vmatpush1.bf16.msra.mxu0 %v1035
        %1074 = vmatprep.subr.bf16.mxu0 0
        %1075 = vmatpush1.bf16.msra.mxu0 %v1036
        %1076 = vmatprep.subr.bf16.mxu0 0
        %1077 = vmatpush1.bf16.msra.mxu0 %v1037
        %1078 = vmatprep.subr.bf16.mxu0 0
        %1079 = vmatpush1.bf16.msra.mxu0 %v1038
        %1080 = vmatprep.subr.bf16.mxu0 0
        %1081 = vmatpush1.bf16.msra.mxu0 %v1039
        %1082 = vmatprep.subr.bf16.mxu0 0
        %1083 = vmatpush1.bf16.msra.mxu0 %v1040
        %1084 = vmatprep.subr.bf16.mxu0 0
        %1085 = vmatpush1.bf16.msra.mxu0 %v1041
        %1086 = vmatprep.subr.bf16.mxu0 0
        %1087 = vmatpush1.bf16.msra.mxu0 %v1042
        %1088 = vmatprep.subr.bf16.mxu0 0
        %1089 = vmatpush1.bf16.msra.mxu0 %v1043
        %1090 = vmatprep.subr.bf16.mxu0 0
        %1091 = vmatpush1.bf16.msra.mxu0 %v1044
        %1092 = vmatprep.subr.bf16.mxu0 0
        %1093 = vmatpush1.bf16.msra.mxu0 %v1045
        %1094 = vmatprep.mubr.bf16.mxu0 %v933
        %1095 = vmatmul.mubr.bf16.gmra.mrb[0].mxu0 %v932
        %v1096 = vpop.f32.mrb[0].mxu0
        %v1097 = vadd.f32 0.0, %v1096
        %v1098 = vpop.f32.mrb[0].mxu0
        %v1099 = vpop.f32.mrb[0].mxu0
        %v1100 = vadd.f32 0.0, %v1099
        %v1101 = vpop.f32.mrb[0].mxu0
        %1102 = vdwg.mxu0
        %v1103 = vadd.f32 %v930, %v1097
        %v1104 = vadd.f32 %v931, %v1100
        %1105 = vst [vmem:[#allocation3] sm:$0xff] %v1103
        %1106 = vst [vmem:[#allocation3 + $0x8] sm:$0xff] %v1104
        %p1107 = scmp.eq.s32.totalorder %s34, 1
        // Predicated region
        $region89: #{_lambda_.5} parent=67 // pred_check
          %p1108 = pneg %p1107
        $region90: #{_lambda_.5} parent=67 // pred_check_branch
          %1110 = sbr.rel (%p1108) target = $region92
        $region91: #{_lambda_.5} parent=67 // pred_region
          %v1111 = vld [vmem:[#allocation3] sm:$0xff]
          %v1112 = vld [vmem:[#allocation3 + $0x8] sm:$0xff]
          %v1113 = vld [vmem:[%s9] sm:$0x1]
          %v1115 = vlaneseq
          %v1116 = vshrl.u32 %v1115, 7
          %v1117 = vsub.s32 0, %v1116
          %v1118 = vrot.slane %v1113, %v1117
          %v1120 = vadd.f32 %v1111, %v1118
          %v1121 = vadd.f32 %v1112, %v1118
          %v1122 = vld [vmem:[#allocation2] sm:$0xff]
          %v1123 = vld [vmem:[#allocation2 + $0x8] sm:$0xff]
          %v1124 = vadd.f32 %v1120, %v1122
          %v1125 = vadd.f32 %v1121, %v1123
          %v1126 = vld [vmem:[%s10] sm:$0x1]
          %v1127 = vld [vmem:[%s11] sm:$0x1]
          %1128 = vadd.xlane.f32.xlu0 %v1124
          %v1129 = vpop.xlane.xlu0 %1128
          %1130 = vadd.xlane.f32.xlu0 %v1125
          %v1131 = vpop.xlane.xlu0 %1130
          %v1132 = vrcp.pop 128.0
          %v1133 = vmul.f32 %v1129, %v1132
          %v1134 = vmul.f32 %v1131, %v1132
          %v1135 = vsub.f32 %v1124, %v1133
          %v1136 = vsub.f32 %v1125, %v1134
          %v1137 = vmul.f32 %v1135, %v1135
          %v1138 = vmul.f32 %v1136, %v1136
          %1139 = vadd.xlane.f32.xlu0 %v1137
          %v1140 = vpop.xlane.xlu0 %1139
          %1141 = vadd.xlane.f32.xlu0 %v1138
          %v1142 = vpop.xlane.xlu0 %1141
          %v1143 = vmul.f32 %v1140, %v1132
          %v1144 = vmul.f32 %v1142, %v1132
          %v1145 = vadd.f32 %v1143, 1e-05
          %v1146 = vadd.f32 %v1144, 1e-05
          %v1147 = vrsqrt.pop %v1145
          %v1148 = vrsqrt.pop %v1146
          %v1149 = vmul.f32 %v1135, %v1147
          %v1150 = vmul.f32 %v1136, %v1148
          %v1152 = vlaneseq
          %v1153 = vshrl.u32 %v1152, 7
          %v1154 = vsub.s32 0, %v1153
          %v1155 = vrot.slane %v1126, %v1154
          %v1157 = vmul.f32 %v1149, %v1155
          %v1158 = vmul.f32 %v1150, %v1155
          %v1160 = vlaneseq
          %v1161 = vshrl.u32 %v1160, 7
          %v1162 = vsub.s32 0, %v1161
          %v1163 = vrot.slane %v1127, %v1162
          %v1165 = vadd.f32 %v1157, %v1163
          %v1166 = vadd.f32 %v1158, %v1163
          %1167 = vst [vmem:[%s599] sm:$0xff] %v1165
          %1168 = vst [vmem:[%s599 + $0x8] sm:$0xff] %v1166
        $region92: #{_lambda_.5} parent=67 // pred_fallthru
          _
        %s1169 = smul.u32 2, %s33
        %p1170 = scmp.lt.s32.totalorder %s32, 1
        %s1171 = scalar_select %p1170, %s32, 1
        %p1172 = scmp.lt.s32.totalorder %s1169, 1
        %s1173 = scalar_select %p1172, %s1169, 1
        %s1174 = smul.addr %s1171, 2
        %s1175 = sadd.s32 %s1173, %s1174
        %s1176 = smul.addr %s1175, 8
        %s1177 = scalar_lea.vmem %s12, %s1176
        // Predicated region
        $region93: #{_lambda_.5} parent=67 // pred_check
          %p1178 = pneg %p345
        $region94: #{_lambda_.5} parent=67 // pred_check_branch
          %1180 = sbr.rel (%p1178) target = $region96
        $region95: #{_lambda_.5} parent=67 // pred_region
          %s1181 = smul.u32 2, %s33
        $region96: #{_lambda_.5} parent=67 // pred_fallthru
          _
      $region68: #{_lambda_.5} parent=5 // pred_fallthru
        _
      %p1182 = scmp.le.s32.totalorder 2, %s22
      // Predicated region
      $region97: #{_lambda_.5} parent=5 // pred_check
        %p1183 = pneg %p1182
      $region98: #{_lambda_.5} parent=5 // pred_check_branch
        %1185 = sbr.rel (%p1183) target = $region100
      $region99: #{_lambda_.5} parent=5 // pred_region
        %s1186 = ssub.s32 %s22, 2
        // Predicated region
        $region101: #{_lambda_.5} parent=99 // pred_check
          %p1187 = pneg %p351
        $region102: #{_lambda_.5} parent=99 // pred_check_branch
          %1189 = sbr.rel (%p1187) target = $region104
        $region103: #{_lambda_.5} parent=99 // pred_region
          %s1190 = smul.u32 2, %s36
          %p1191 = scmp.lt.s32.totalorder %s35, 1
          %s1192 = scalar_select %p1191, %s35, 1
          %p1193 = scmp.lt.s32.totalorder %s1190, 1
          %s1194 = scalar_select %p1193, %s1190, 1
          %s1195 = smul.addr %s1192, 2
          %s1196 = sadd.s32 %s1194, %s1195
          %s1197 = smul.addr %s1196, 8
          %s1198 = scalar_lea.vmem %s12, %s1197
        $region104: #{_lambda_.5} parent=99 // pred_fallthru
          _
      $region100: #{_lambda_.5} parent=5 // pred_fallthru
        _
    $region6: #{_lambda_.5} parent=1 // loop_footer
      %s26 = sadd.s32 1, %s22
    $region7: #{_lambda_.5} parent=1 // loop_footer_branch
      %21 = sbr.rel target = $region3
    $region8: #{_lambda_.5} parent=1 // loop_exit
      _
    %1199 = vsyncpa [#allocation5], 1
    %s1200 = scalar_lea.sflag [#allocation5], 1
    %1201 = vsyncpa %s1200, 1
    %1202 = vsyncpa [#allocation7], 1

// kernel: _lambda_.8
$region0: #{_lambda_.8}
  #allocation0 [shape = 'u32[]', space=smem, size = 0x4, offset = 0x4, fixed_abs, tag = 'smem constant byte address 0x4 - core index']
  #allocation1 [shape = 'u32[144,128]{1,0:T(1,128)}', space=vmem, size = 0x12000, scoped, tag = 'internal scratch']
  #allocation2 [shape = 'f32[8,128]{1,0:T(8,128)}', space=vmem, size = 0x1000, scoped, tag = 'scratch operand']
  #allocation3 [shape = 'f32[8,128]{1,0:T(8,128)}', space=vmem, size = 0x1000, scoped, tag = 'scratch operand']
  %s0 = inlined_call_operand.vmem [shape: f32[8,128], index: 0, kind: input, shape index: {}]
  %s1 = inlined_call_operand.vmem [shape: bf16[128,128], index: 1, kind: input, shape index: {}]
  %s2 = inlined_call_operand.vmem [shape: f32[1,128], index: 2, kind: input, shape index: {}]
  %s3 = inlined_call_operand.vmem [shape: f32[1,128], index: 3, kind: input, shape index: {}]
  %s4 = inlined_call_operand.vmem [shape: f32[1,128], index: 4, kind: input, shape index: {}]
  %s5 = inlined_call_operand.vmem [shape: bf16[128,512], index: 5, kind: input, shape index: {}]
  %s6 = inlined_call_operand.vmem [shape: f32[1,512], index: 6, kind: input, shape index: {}]
  %s7 = inlined_call_operand.vmem [shape: bf16[512,128], index: 7, kind: input, shape index: {}]
  %s8 = inlined_call_operand.vmem [shape: f32[1,128], index: 8, kind: input, shape index: {}]
  %s9 = inlined_call_operand.vmem [shape: f32[1,128], index: 9, kind: input, shape index: {}]
  %s10 = inlined_call_operand.vmem [shape: f32[1,128], index: 10, kind: input, shape index: {}]
  %s11 = inlined_call_operand.vmem [shape: f32[8,128], index: 11, kind: output, shape index: {}]
  %s12 = sld [smem:[#allocation0]]
  $region123: #{_lambda_.8} parent=0
    _
  %s14 = ssub.s32 1, %s12
  %s15 = scalar_select 0, %s14, %s12
  $region1: #{_lambda_.8} parent=0
    #allocation4 [shape = 'u8[131072]{0}', space=vmem, size = 0x20000, scoped, tag = 'input window, operand 5']
    loop: start=0, step=1, limit=4
    $region2: #{_lambda_.8} parent=1 // loop_pre_header
      _
    $region3: #{_lambda_.8} parent=1 // loop_header
      %s17 = sphi 0, %s21
      %p18 = scmp.ge.s32.totalorder %s17, 4
      %s24 = sphi 0, %s36
      %s25 = sphi 0, %s32
      %s26 = sphi 0, %s24
      %s27 = sphi 0, %s25
      %s28 = sphi 0, %s26
      %s29 = sphi 0, %s27
      %s39 = sphi 0, %s41
      %s42 = sphi 0, %s39
      %s43 = sphi 0, %s42
      %s59 = sphi 0, %s43
      %s63 = sphi 0, %s63
      %s65 = sphi 0, %s63
      %s66 = sphi 0, %s65
      %s80 = sphi 0, %s66
      %s84 = sphi 0, %s84
      %s86 = sphi 0, %s84
      %s87 = sphi 0, %s86
      %s101 = sphi 0, %s87
      %s105 = sphi 0, %s105
      %s107 = sphi 0, %s105
      %s108 = sphi 0, %s107
      %s122 = sphi 0, %s108
      %s126 = sphi 0, %s126
      %s128 = sphi 0, %s126
      %s129 = sphi 0, %s128
      %s143 = sphi 0, %s129
      %s149 = sphi 0, %s151
      %s152 = sphi 0, %s149
      %s153 = sphi 0, %s152
      %s169 = sphi 0, %s153
      %s175 = sphi 0, %s177
      %s178 = sphi 0, %s175
      %s179 = sphi 0, %s178
      %s195 = sphi 0, %s179
      %s201 = sphi 0, %s203
      %s204 = sphi 0, %s201
      %s205 = sphi 0, %s204
      %s221 = sphi 0, %s205
      %s225 = sphi 0, %s225
      %s227 = sphi 0, %s225
      %s228 = sphi 0, %s227
      %s242 = sphi 0, %s228
      %s246 = sphi 0, %s246
      %s248 = sphi 0, %s246
      %s249 = sphi 0, %s248
      %s263 = sphi 0, %s249
      %s267 = sphi 0, %s267
      %s269 = sphi 0, %s267
      %s270 = sphi 0, %s269
      %s284 = sphi 0, %s270
      %s290 = sphi 0, %s292
      %s293 = sphi 0, %s290
      %s294 = sphi 0, %s293
      %s310 = sphi 0, %s294
    $region4: #{_lambda_.8} parent=1 // loop_header_branch
      %20 = sbr.rel (%p18) target = $region8
    $region5: #{_lambda_.8} parent=1 // loop_body
      %s22 = ssub.s32 %s17, 1
      %s23 = ssub.s32 %s17, 2
      %s30 = sadd.s32 1, %s25
      %p31 = scmp.ge.s32.totalorder %s30, 2
      %s32 = scalar_select %p31, 0, %s30
      %s33 = sadd.s32 1, %s24
      %s34 = scalar_select %p31, %s33, %s24
      %p35 = scmp.ge.s32.totalorder %s34, 1
      %s36 = scalar_select %p35, 0, %s34
      %s37 = ssub.s32 %s24, %s36
      %p38 = scmp.eq.s32.totalorder %s37, 0
      %s40 = sadd.s32 %s39, 1
      %s41 = scalar_select %p38, %s39, %s40
      %p44 = pneg %p38
      %p45 = scmp.eq.s32.totalorder %s17, 1
      %p46 = por %p44, %p45
      %p47 = scmp.ne.s32.totalorder %s39, %s42
      %p48 = scmp.eq.s32.totalorder %s17, 0
      %p49 = por %p47, %p48
      %p50 = scmp.ne.s32.totalorder %s39, %s42
      %p51 = scmp.eq.s32.totalorder %s22, 1
      %p52 = por %p50, %p51
      %p53 = scmp.ne.s32.totalorder %s42, %s43
      %p54 = scmp.eq.s32.totalorder %s22, 0
      %p55 = por %p53, %p54
      %p56 = scmp.ne.s32.totalorder %s42, %s43
      %p57 = scmp.eq.s32.totalorder %s23, 1
      %p58 = por %p56, %p57
      %p60 = scmp.ne.s32.totalorder %s43, %s59
      %p61 = scmp.eq.s32.totalorder %s23, 0
      %p62 = por %p60, %p61
      %s64 = sadd.s32 %s63, 1
      %p67 = scmp.eq.s32.totalorder %s17, 1
      %p68 = scmp.ne.s32.totalorder %s63, %s65
      %p69 = scmp.eq.s32.totalorder %s17, 0
      %p70 = por %p68, %p69
      %p71 = scmp.ne.s32.totalorder %s63, %s65
      %p72 = scmp.eq.s32.totalorder %s22, 1
      %p73 = por %p71, %p72
      %p74 = scmp.ne.s32.totalorder %s65, %s66
      %p75 = scmp.eq.s32.totalorder %s22, 0
      %p76 = por %p74, %p75
      %p77 = scmp.ne.s32.totalorder %s65, %s66
      %p78 = scmp.eq.s32.totalorder %s23, 1
      %p79 = por %p77, %p78
      %p81 = scmp.ne.s32.totalorder %s66, %s80
      %p82 = scmp.eq.s32.totalorder %s23, 0
      %p83 = por %p81, %p82
      %s85 = sadd.s32 %s84, 1
      %p88 = scmp.eq.s32.totalorder %s17, 1
      %p89 = scmp.ne.s32.totalorder %s84, %s86
      %p90 = scmp.eq.s32.totalorder %s17, 0
      %p91 = por %p89, %p90
      %p92 = scmp.ne.s32.totalorder %s84, %s86
      %p93 = scmp.eq.s32.totalorder %s22, 1
      %p94 = por %p92, %p93
      %p95 = scmp.ne.s32.totalorder %s86, %s87
      %p96 = scmp.eq.s32.totalorder %s22, 0
      %p97 = por %p95, %p96
      %p98 = scmp.ne.s32.totalorder %s86, %s87
      %p99 = scmp.eq.s32.totalorder %s23, 1
      %p100 = por %p98, %p99
      %p102 = scmp.ne.s32.totalorder %s87, %s101
      %p103 = scmp.eq.s32.totalorder %s23, 0
      %p104 = por %p102, %p103
      %s106 = sadd.s32 %s105, 1
      %p109 = scmp.eq.s32.totalorder %s17, 1
      %p110 = scmp.ne.s32.totalorder %s105, %s107
      %p111 = scmp.eq.s32.totalorder %s17, 0
      %p112 = por %p110, %p111
      %p113 = scmp.ne.s32.totalorder %s105, %s107
      %p114 = scmp.eq.s32.totalorder %s22, 1
      %p115 = por %p113, %p114
      %p116 = scmp.ne.s32.totalorder %s107, %s108
      %p117 = scmp.eq.s32.totalorder %s22, 0
      %p118 = por %p116, %p117
      %p119 = scmp.ne.s32.totalorder %s107, %s108
      %p120 = scmp.eq.s32.totalorder %s23, 1
      %p121 = por %p119, %p120
      %p123 = scmp.ne.s32.totalorder %s108, %s122
      %p124 = scmp.eq.s32.totalorder %s23, 0
      %p125 = por %p123, %p124
      %s127 = sadd.s32 %s126, 1
      %p130 = scmp.eq.s32.totalorder %s17, 1
      %p131 = scmp.ne.s32.totalorder %s126, %s128
      %p132 = scmp.eq.s32.totalorder %s17, 0
      %p133 = por %p131, %p132
      %p134 = scmp.ne.s32.totalorder %s126, %s128
      %p135 = scmp.eq.s32.totalorder %s22, 1
      %p136 = por %p134, %p135
      %p137 = scmp.ne.s32.totalorder %s128, %s129
      %p138 = scmp.eq.s32.totalorder %s22, 0
      %p139 = por %p137, %p138
      %p140 = scmp.ne.s32.totalorder %s128, %s129
      %p141 = scmp.eq.s32.totalorder %s23, 1
      %p142 = por %p140, %p141
      %p144 = scmp.ne.s32.totalorder %s129, %s143
      %p145 = scmp.eq.s32.totalorder %s23, 0
      %p146 = por %p144, %p145
      %s147 = ssub.s32 %s25, %s32
      %p148 = scmp.eq.s32.totalorder %s147, 0
      %s150 = sadd.s32 %s149, 1
      %s151 = scalar_select %p148, %s149, %s150
      %p154 = pneg %p148
      %p155 = scmp.eq.s32.totalorder %s17, 1
      %p156 = por %p154, %p155
      %p157 = scmp.ne.s32.totalorder %s149, %s152
      %p158 = scmp.eq.s32.totalorder %s17, 0
      %p159 = por %p157, %p158
      %p160 = scmp.ne.s32.totalorder %s149, %s152
      %p161 = scmp.eq.s32.totalorder %s22, 1
      %p162 = por %p160, %p161
      %p163 = scmp.ne.s32.totalorder %s152, %s153
      %p164 = scmp.eq.s32.totalorder %s22, 0
      %p165 = por %p163, %p164
      %p166 = scmp.ne.s32.totalorder %s152, %s153
      %p167 = scmp.eq.s32.totalorder %s23, 1
      %p168 = por %p166, %p167
      %p170 = scmp.ne.s32.totalorder %s153, %s169
      %p171 = scmp.eq.s32.totalorder %s23, 0
      %p172 = por %p170, %p171
      %s173 = ssub.s32 %s25, %s32
      %p174 = scmp.eq.s32.totalorder %s173, 0
      %s176 = sadd.s32 %s175, 1
      %s177 = scalar_select %p174, %s175, %s176
      %p180 = pneg %p174
      %p181 = scmp.eq.s32.totalorder %s17, 1
      %p182 = por %p180, %p181
      %p183 = scmp.ne.s32.totalorder %s175, %s178
      %p184 = scmp.eq.s32.totalorder %s17, 0
      %p185 = por %p183, %p184
      %p186 = scmp.ne.s32.totalorder %s175, %s178
      %p187 = scmp.eq.s32.totalorder %s22, 1
      %p188 = por %p186, %p187
      %p189 = scmp.ne.s32.totalorder %s178, %s179
      %p190 = scmp.eq.s32.totalorder %s22, 0
      %p191 = por %p189, %p190
      %p192 = scmp.ne.s32.totalorder %s178, %s179
      %p193 = scmp.eq.s32.totalorder %s23, 1
      %p194 = por %p192, %p193
      %p196 = scmp.ne.s32.totalorder %s179, %s195
      %p197 = scmp.eq.s32.totalorder %s23, 0
      %p198 = por %p196, %p197
      %s199 = ssub.s32 %s25, %s32
      %p200 = scmp.eq.s32.totalorder %s199, 0
      %s202 = sadd.s32 %s201, 1
      %s203 = scalar_select %p200, %s201, %s202
      %p206 = pneg %p200
      %p207 = scmp.eq.s32.totalorder %s17, 1
      %p208 = por %p206, %p207
      %p209 = scmp.ne.s32.totalorder %s201, %s204
      %p210 = scmp.eq.s32.totalorder %s17, 0
      %p211 = por %p209, %p210
      %p212 = scmp.ne.s32.totalorder %s201, %s204
      %p213 = scmp.eq.s32.totalorder %s22, 1
      %p214 = por %p212, %p213
      %p215 = scmp.ne.s32.totalorder %s204, %s205
      %p216 = scmp.eq.s32.totalorder %s22, 0
      %p217 = por %p215, %p216
      %p218 = scmp.ne.s32.totalorder %s204, %s205
      %p219 = scmp.eq.s32.totalorder %s23, 1
      %p220 = por %p218, %p219
      %p222 = scmp.ne.s32.totalorder %s205, %s221
      %p223 = scmp.eq.s32.totalorder %s23, 0
      %p224 = por %p222, %p223
      %s226 = sadd.s32 %s225, 1
      %p229 = scmp.eq.s32.totalorder %s17, 1
      %p230 = scmp.ne.s32.totalorder %s225, %s227
      %p231 = scmp.eq.s32.totalorder %s17, 0
      %p232 = por %p230, %p231
      %p233 = scmp.ne.s32.totalorder %s225, %s227
      %p234 = scmp.eq.s32.totalorder %s22, 1
      %p235 = por %p233, %p234
      %p236 = scmp.ne.s32.totalorder %s227, %s228
      %p237 = scmp.eq.s32.totalorder %s22, 0
      %p238 = por %p236, %p237
      %p239 = scmp.ne.s32.totalorder %s227, %s228
      %p240 = scmp.eq.s32.totalorder %s23, 1
      %p241 = por %p239, %p240
      %p243 = scmp.ne.s32.totalorder %s228, %s242
      %p244 = scmp.eq.s32.totalorder %s23, 0
      %p245 = por %p243, %p244
      %s247 = sadd.s32 %s246, 1
      %p250 = scmp.eq.s32.totalorder %s17, 1
      %p251 = scmp.ne.s32.totalorder %s246, %s248
      %p252 = scmp.eq.s32.totalorder %s17, 0
      %p253 = por %p251, %p252
      %p254 = scmp.ne.s32.totalorder %s246, %s248
      %p255 = scmp.eq.s32.totalorder %s22, 1
      %p256 = por %p254, %p255
      %p257 = scmp.ne.s32.totalorder %s248, %s249
      %p258 = scmp.eq.s32.totalorder %s22, 0
      %p259 = por %p257, %p258
      %p260 = scmp.ne.s32.totalorder %s248, %s249
      %p261 = scmp.eq.s32.totalorder %s23, 1
      %p262 = por %p260, %p261
      %p264 = scmp.ne.s32.totalorder %s249, %s263
      %p265 = scmp.eq.s32.totalorder %s23, 0
      %p266 = por %p264, %p265
      %s268 = sadd.s32 %s267, 1
      %p271 = scmp.eq.s32.totalorder %s17, 1
      %p272 = scmp.ne.s32.totalorder %s267, %s269
      %p273 = scmp.eq.s32.totalorder %s17, 0
      %p274 = por %p272, %p273
      %p275 = scmp.ne.s32.totalorder %s267, %s269
      %p276 = scmp.eq.s32.totalorder %s22, 1
      %p277 = por %p275, %p276
      %p278 = scmp.ne.s32.totalorder %s269, %s270
      %p279 = scmp.eq.s32.totalorder %s22, 0
      %p280 = por %p278, %p279
      %p281 = scmp.ne.s32.totalorder %s269, %s270
      %p282 = scmp.eq.s32.totalorder %s23, 1
      %p283 = por %p281, %p282
      %p285 = scmp.ne.s32.totalorder %s270, %s284
      %p286 = scmp.eq.s32.totalorder %s23, 0
      %p287 = por %p285, %p286
      %s288 = ssub.s32 %s24, %s36
      %p289 = scmp.eq.s32.totalorder %s288, 0
      %s291 = sadd.s32 %s290, 1
      %s292 = scalar_select %p289, %s290, %s291
      %p295 = pneg %p289
      %p296 = scmp.eq.s32.totalorder %s17, 1
      %p297 = por %p295, %p296
      %p298 = scmp.ne.s32.totalorder %s290, %s293
      %p299 = scmp.eq.s32.totalorder %s17, 0
      %p300 = por %p298, %p299
      %p301 = scmp.ne.s32.totalorder %s290, %s293
      %p302 = scmp.eq.s32.totalorder %s22, 1
      %p303 = por %p301, %p302
      %p304 = scmp.ne.s32.totalorder %s293, %s294
      %p305 = scmp.eq.s32.totalorder %s22, 0
      %p306 = por %p304, %p305
      %p307 = scmp.ne.s32.totalorder %s293, %s294
      %p308 = scmp.eq.s32.totalorder %s23, 1
      %p309 = por %p307, %p308
      %p311 = scmp.ne.s32.totalorder %s294, %s310
      %p312 = scmp.eq.s32.totalorder %s23, 0
      %p313 = por %p311, %p312
      %p314 = scmp.le.s32.totalorder 1, %s17
      %p315 = scmp.lt.s32.totalorder %s17, 3
      %p316 = pnand %p314, %p315
      %p317 = pneg %p316
      // Predicated region
      $region9: #{_lambda_.8} parent=5 // pred_check
        _
      $region10: #{_lambda_.8} parent=5 // pred_check_branch
        %319 = sbr.rel (%p316) target = $region12
      $region11: #{_lambda_.8} parent=5 // pred_region
        %s320 = ssub.s32 %s17, 1
        // Predicated region
        $region13: #{_lambda_.8} parent=11 // pred_check
          %p321 = pneg %p55
        $region14: #{_lambda_.8} parent=11 // pred_check_branch
          %323 = sbr.rel (%p321) target = $region16
        $region15: #{_lambda_.8} parent=11 // pred_region
          %p324 = scmp.lt.s32.totalorder %s26, 0
          %s325 = scalar_select %p324, %s26, 0
          %s326 = smul.addr %s325, 8
          %s327 = scalar_lea.vmem %s0, %s326
        $region16: #{_lambda_.8} parent=11 // pred_fallthru
          _
        // Predicated region
        $region17: #{_lambda_.8} parent=11 // pred_check
          %p328 = pneg %p76
        $region18: #{_lambda_.8} parent=11 // pred_check_branch
          %330 = sbr.rel (%p328) target = $region20
        $region19: #{_lambda_.8} parent=11 // pred_region
          _
        $region20: #{_lambda_.8} parent=11 // pred_fallthru
          _
        // Predicated region
        $region21: #{_lambda_.8} parent=11 // pred_check
          %p331 = pneg %p97
        $region22: #{_lambda_.8} parent=11 // pred_check_branch
          %333 = sbr.rel (%p331) target = $region24
        $region23: #{_lambda_.8} parent=11 // pred_region
          _
        $region24: #{_lambda_.8} parent=11 // pred_fallthru
          _
        // Predicated region
        $region25: #{_lambda_.8} parent=11 // pred_check
          %p334 = pneg %p118
        $region26: #{_lambda_.8} parent=11 // pred_check_branch
          %336 = sbr.rel (%p334) target = $region28
        $region27: #{_lambda_.8} parent=11 // pred_region
          _
        $region28: #{_lambda_.8} parent=11 // pred_fallthru
          _
        // Predicated region
        $region29: #{_lambda_.8} parent=11 // pred_check
          %p337 = pneg %p139
        $region30: #{_lambda_.8} parent=11 // pred_check_branch
          %339 = sbr.rel (%p337) target = $region32
        $region31: #{_lambda_.8} parent=11 // pred_region
          _
        $region32: #{_lambda_.8} parent=11 // pred_fallthru
          _
        // Predicated region
        $region33: #{_lambda_.8} parent=11 // pred_check
          %p340 = pneg %p238
        $region34: #{_lambda_.8} parent=11 // pred_check_branch
          %342 = sbr.rel (%p340) target = $region36
        $region35: #{_lambda_.8} parent=11 // pred_region
          _
        $region36: #{_lambda_.8} parent=11 // pred_fallthru
          _
        // Predicated region
        $region37: #{_lambda_.8} parent=11 // pred_check
          %p343 = pneg %p259
        $region38: #{_lambda_.8} parent=11 // pred_check_branch
          %345 = sbr.rel (%p343) target = $region40
        $region39: #{_lambda_.8} parent=11 // pred_region
          _
        $region40: #{_lambda_.8} parent=11 // pred_fallthru
          _
        // Predicated region
        $region41: #{_lambda_.8} parent=11 // pred_check
          %p346 = pneg %p280
        $region42: #{_lambda_.8} parent=11 // pred_check_branch
          %348 = sbr.rel (%p346) target = $region44
        $region43: #{_lambda_.8} parent=11 // pred_region
          _
        $region44: #{_lambda_.8} parent=11 // pred_fallthru
          _
      $region12: #{_lambda_.8} parent=5 // pred_fallthru
        _
      %p349 = scmp.lt.s32.totalorder %s17, 2
      // Predicated region
      $region45: #{_lambda_.8} parent=5 // pred_check
        %p350 = pneg %p349
      $region46: #{_lambda_.8} parent=5 // pred_check_branch
        %352 = sbr.rel (%p350) target = $region48
      $region47: #{_lambda_.8} parent=5 // pred_region
        // Predicated region
        $region49: #{_lambda_.8} parent=47 // pred_check
          %p353 = pneg %p159
        $region50: #{_lambda_.8} parent=47 // pred_check_branch
          %355 = sbr.rel (%p353) target = $region52
        $region51: #{_lambda_.8} parent=47 // pred_region
          %s356 = sand.u32 %s149, 1
          %s357 = sand.u32 %s149, 1
          %s358 = smul.addr %s357, 128
          %s359 = scalar_lea.vmem [#allocation4], %s358
          %s360 = smul.u32 2, %s25
          %s361 = smul.addr %s360, 4
          %s362 = scalar_lea.vmem %s5, %s361
          // Predicated region
          $region53: #{_lambda_.8} parent=51 // pred_check
            _
          $region54: #{_lambda_.8} parent=51 // pred_check_branch
            %364 = sbr.rel (0) target = $region56
          $region55: #{_lambda_.8} parent=51 // pred_region
            // Predicated region
            $region57: #{_lambda_.8} parent=55 // pred_check
              _
            $region58: #{_lambda_.8} parent=55 // pred_check_branch
              %366 = sbr.rel (0) target = $region60
            $region59: #{_lambda_.8} parent=55 // pred_region
              // Predicated region
              $region72: #{_lambda_.8} parent=59 // pred_check
                _
              $region73: #{_lambda_.8} parent=59 // pred_check_branch
                %411 = sbr.rel (0) target = $region75
              $region74: #{_lambda_.8} parent=59 // pred_region
                loop: start=0, step=1, limit=1
                $region76: #{_lambda_.8} parent=74 // loop_pre_header
                  _
                $region77: #{_lambda_.8} parent=74 // loop_header
                  %s413 = sphi 0, %s417
                  %p414 = scmp.ge.s32.totalorder %s413, 1
                  %s418 = sphi %s362, %s362
                  %s419 = sphi %s359, %s359
                $region78: #{_lambda_.8} parent=74 // loop_header_branch
                  %416 = sbr.rel (%p414) target = $region82
                $region79: #{_lambda_.8} parent=74 // loop_body
                  %v420 = vld [vmem:[%s418] sm:$0xff]
                  %421 = vst [vmem:[%s419] sm:$0xff] %v420
                  %v422 = vld [vmem:[%s418 + $0x10] sm:$0xff]
                  %423 = vst [vmem:[%s419 + $0x8] sm:$0xff] %v422
                  %v424 = vld [vmem:[%s418 + $0x20] sm:$0xff]
                  %425 = vst [vmem:[%s419 + $0x10] sm:$0xff] %v424
                  %v426 = vld [vmem:[%s418 + $0x30] sm:$0xff]
                  %427 = vst [vmem:[%s419 + $0x18] sm:$0xff] %v426
                  %v428 = vld [vmem:[%s418 + $0x40] sm:$0xff]
                  %429 = vst [vmem:[%s419 + $0x20] sm:$0xff] %v428
                  %v430 = vld [vmem:[%s418 + $0x50] sm:$0xff]
                  %431 = vst [vmem:[%s419 + $0x28] sm:$0xff] %v430
                  %v432 = vld [vmem:[%s418 + $0x60] sm:$0xff]
                  %433 = vst [vmem:[%s419 + $0x30] sm:$0xff] %v432
                  %v434 = vld [vmem:[%s418 + $0x70] sm:$0xff]
                  %435 = vst [vmem:[%s419 + $0x38] sm:$0xff] %v434
                  %v436 = vld [vmem:[%s418 + $0x80] sm:$0xff]
                  %437 = vst [vmem:[%s419 + $0x40] sm:$0xff] %v436
                  %v438 = vld [vmem:[%s418 + $0x90] sm:$0xff]
                  %439 = vst [vmem:[%s419 + $0x48] sm:$0xff] %v438
                  %v440 = vld [vmem:[%s418 + $0xa0] sm:$0xff]
                  %441 = vst [vmem:[%s419 + $0x50] sm:$0xff] %v440
                  %v442 = vld [vmem:[%s418 + $0xb0] sm:$0xff]
                  %443 = vst [vmem:[%s419 + $0x58] sm:$0xff] %v442
                  %v444 = vld [vmem:[%s418 + $0xc0] sm:$0xff]
                  %445 = vst [vmem:[%s419 + $0x60] sm:$0xff] %v444
                  %v446 = vld [vmem:[%s418 + $0xd0] sm:$0xff]
                  %447 = vst [vmem:[%s419 + $0x68] sm:$0xff] %v446
                  %v448 = vld [vmem:[%s418 + $0xe0] sm:$0xff]
                  %449 = vst [vmem:[%s419 + $0x70] sm:$0xff] %v448
                  %v450 = vld [vmem:[%s418 + $0xf0] sm:$0xff]
                  %451 = vst [vmem:[%s419 + $0x78] sm:$0xff] %v450
                $region80: #{_lambda_.8} parent=74 // loop_footer
                  %s417 = sadd.s32 1, %s413
                $region81: #{_lambda_.8} parent=74 // loop_footer_branch
                  %412 = sbr.rel target = $region77
                $region82: #{_lambda_.8} parent=74 // loop_exit
                  _
              $region75: #{_lambda_.8} parent=59 // pred_fallthru
                _
              // Predicated region
              $region83: #{_lambda_.8} parent=59 // pred_check
                _
              $region84: #{_lambda_.8} parent=59 // pred_check_branch
                %453 = sbr.rel target = $region86
              $region85: #{_lambda_.8} parent=59 // pred_region
                _
              $region86: #{_lambda_.8} parent=59 // pred_fallthru
                _
            $region60: #{_lambda_.8} parent=55 // pred_fallthru
              _
            // Predicated region
            $region61: #{_lambda_.8} parent=55 // pred_check
              _
            $region62: #{_lambda_.8} parent=55 // pred_check_branch
              %368 = sbr.rel target = $region64
            $region63: #{_lambda_.8} parent=55 // pred_region
              loop: start=0, step=1, limit=1
              $region65: #{_lambda_.8} parent=63 // loop_pre_header
                _
              $region66: #{_lambda_.8} parent=63 // loop_header
                %s371 = sphi 0, %s375
                %p372 = scmp.ge.s32.totalorder %s371, 1
                %s376 = sphi %s362, %s362
                %s377 = sphi %s359, %s359
              $region67: #{_lambda_.8} parent=63 // loop_header_branch
                %374 = sbr.rel (%p372) target = $region71
              $region68: #{_lambda_.8} parent=63 // loop_body
                %v378 = vld [vmem:[%s376] sm:$0xff]
                %379 = vst [vmem:[%s377] sm:$0xff] %v378
                %v380 = vld [vmem:[%s376 + $0x10] sm:$0xff]
                %381 = vst [vmem:[%s377 + $0x8] sm:$0xff] %v380
                %v382 = vld [vmem:[%s376 + $0x20] sm:$0xff]
                %383 = vst [vmem:[%s377 + $0x10] sm:$0xff] %v382
                %v384 = vld [vmem:[%s376 + $0x30] sm:$0xff]
                %385 = vst [vmem:[%s377 + $0x18] sm:$0xff] %v384
                %v386 = vld [vmem:[%s376 + $0x40] sm:$0xff]
                %387 = vst [vmem:[%s377 + $0x20] sm:$0xff] %v386
                %v388 = vld [vmem:[%s376 + $0x50] sm:$0xff]
                %389 = vst [vmem:[%s377 + $0x28] sm:$0xff] %v388
                %v390 = vld [vmem:[%s376 + $0x60] sm:$0xff]
                %391 = vst [vmem:[%s377 + $0x30] sm:$0xff] %v390
                %v392 = vld [vmem:[%s376 + $0x70] sm:$0xff]
                %393 = vst [vmem:[%s377 + $0x38] sm:$0xff] %v392
                %v394 = vld [vmem:[%s376 + $0x80] sm:$0xff]
                %395 = vst [vmem:[%s377 + $0x40] sm:$0xff] %v394
                %v396 = vld [vmem:[%s376 + $0x90] sm:$0xff]
                %397 = vst [vmem:[%s377 + $0x48] sm:$0xff] %v396
                %v398 = vld [vmem:[%s376 + $0xa0] sm:$0xff]
                %399 = vst [vmem:[%s377 + $0x50] sm:$0xff] %v398
                %v400 = vld [vmem:[%s376 + $0xb0] sm:$0xff]
                %401 = vst [vmem:[%s377 + $0x58] sm:$0xff] %v400
                %v402 = vld [vmem:[%s376 + $0xc0] sm:$0xff]
                %403 = vst [vmem:[%s377 + $0x60] sm:$0xff] %v402
                %v404 = vld [vmem:[%s376 + $0xd0] sm:$0xff]
                %405 = vst [vmem:[%s377 + $0x68] sm:$0xff] %v404
                %v406 = vld [vmem:[%s376 + $0xe0] sm:$0xff]
                %407 = vst [vmem:[%s377 + $0x70] sm:$0xff] %v406
                %v408 = vld [vmem:[%s376 + $0xf0] sm:$0xff]
                %409 = vst [vmem:[%s377 + $0x78] sm:$0xff] %v408
              $region69: #{_lambda_.8} parent=63 // loop_footer
                %s375 = sadd.s32 1, %s371
              $region70: #{_lambda_.8} parent=63 // loop_footer_branch
                %370 = sbr.rel target = $region66
              $region71: #{_lambda_.8} parent=63 // loop_exit
                _
            $region64: #{_lambda_.8} parent=55 // pred_fallthru
              _
          $region56: #{_lambda_.8} parent=51 // pred_fallthru
            _
          %454 = vnop
        $region52: #{_lambda_.8} parent=47 // pred_fallthru
          _
        // Predicated region
        $region87: #{_lambda_.8} parent=47 // pred_check
          %p455 = pneg %p185
        $region88: #{_lambda_.8} parent=47 // pred_check_branch
          %457 = sbr.rel (%p455) target = $region90
        $region89: #{_lambda_.8} parent=47 // pred_region
          %s458 = smul.u32 2, %s25
          %p459 = scmp.lt.s32.totalorder %s458, 3
          %s460 = scalar_select %p459, %s458, 3
          %s461 = scalar_lea.vmem %s6, %s460
          %s462 = smul.u32 2, %s25
        $region90: #{_lambda_.8} parent=47 // pred_fallthru
          _
        // Predicated region
        $region91: #{_lambda_.8} parent=47 // pred_check
          %p463 = pneg %p211
        $region92: #{_lambda_.8} parent=47 // pred_check_branch
          %465 = sbr.rel (%p463) target = $region94
        $region93: #{_lambda_.8} parent=47 // pred_region
          %s466 = smul.u32 32, %s25
          %p467 = scmp.lt.s32.totalorder %s466, 63
          %s468 = scalar_select %p467, %s466, 63
          %s469 = smul.addr %s468, 4
          %s470 = scalar_lea.vmem %s7, %s469
          %s471 = smul.u32 32, %s25
        $region94: #{_lambda_.8} parent=47 // pred_fallthru
          _
      $region48: #{_lambda_.8} parent=5 // pred_fallthru
        _
      %p472 = scmp.le.s32.totalorder 1, %s17
      %p473 = scmp.lt.s32.totalorder %s17, 3
      %p474 = pnand %p472, %p473
      %p475 = pneg %p474
      // Predicated region
      $region95: #{_lambda_.8} parent=5 // pred_check
        _
      $region96: #{_lambda_.8} parent=5 // pred_check_branch
        %477 = sbr.rel (%p474) target = $region98
      $region97: #{_lambda_.8} parent=5 // pred_region
        %s478 = ssub.s32 %s17, 1
        %s479 = sand.u32 %s152, 1
        %s480 = sand.u32 %s152, 1
        %s481 = smul.addr %s480, 128
        %s482 = scalar_lea.vmem [#allocation4], %s481
        // Predicated region
        $region99: #{_lambda_.8} parent=97 // pred_check
          %p483 = pneg %p165
        $region100: #{_lambda_.8} parent=97 // pred_check_branch
          %485 = sbr.rel (%p483) target = $region102
        $region101: #{_lambda_.8} parent=97 // pred_region
          _
        $region102: #{_lambda_.8} parent=97 // pred_fallthru
          _
        %p486 = scmp.lt.s32.totalorder %s26, 0
        %s487 = scalar_select %p486, %s26, 0
        %s488 = smul.addr %s487, 8
        %s489 = scalar_lea.vmem %s0, %s488
        %p490 = pneg %p55
        %p491 = pneg %p52
        %p492 = pneg %p76
        %p493 = pneg %p73
        %p494 = pneg %p97
        %p495 = pneg %p94
        %p496 = pneg %p118
        %p497 = pneg %p115
        %p498 = pneg %p139
        %p499 = pneg %p136
        %s500 = sand.u32 %s152, 1
        %s501 = sand.u32 %s152, 1
        %s502 = smul.addr %s501, 128
        %s503 = scalar_lea.vmem [#allocation4], %s502
        %p504 = pneg %p165
        %p505 = pneg %p162
        %s506 = smul.u32 2, %s27
        %p507 = scmp.lt.s32.totalorder %s506, 3
        %s508 = scalar_select %p507, %s506, 3
        %s509 = scalar_lea.vmem %s6, %s508
        %p510 = pneg %p191
        %p511 = pneg %p188
        %s512 = smul.u32 32, %s27
        %p513 = scmp.lt.s32.totalorder %s512, 63
        %s514 = scalar_select %p513, %s512, 63
        %s515 = smul.addr %s514, 4
        %s516 = scalar_lea.vmem %s7, %s515
        %p517 = pneg %p217
        %p518 = pneg %p214
        %p519 = pneg %p238
        %p520 = pneg %p235
        %p521 = pneg %p259
        %p522 = pneg %p256
        %p523 = pneg %p280
        %p524 = pneg %p277
        %p525 = pneg %p306
        %p526 = pneg %p303
        %p527 = scmp.lt.s32.totalorder %s26, 0
        %s528 = scalar_select %p527, %s26, 0
        %s529 = smul.addr %s528, 8
        %s530 = scalar_lea.vmem %s11, %s529
        %p531 = scmp.lt.s32.totalorder %s26, 0
        %s532 = scalar_select %p531, %s26, 0
        %s533 = smul.addr %s532, 8
        %s534 = scalar_lea.vmem %s0, %s533
        %s535 = smul.u32 2, %s27
        %s536 = smul.u32 2, %s27
        %p537 = scmp.lt.s32.totalorder %s536, 3
        %s538 = scalar_select %p537, %s536, 3
        %s539 = scalar_lea.vmem %s6, %s538
        %s540 = smul.u32 2, %s27
        %s541 = smul.u32 32, %s27
        %p542 = scmp.lt.s32.totalorder %s541, 63
        %s543 = scalar_select %p542, %s541, 63
        %s544 = smul.addr %s543, 4
        %s545 = scalar_lea.vmem %s7, %s544
        %s546 = smul.u32 32, %s27
        %p547 = scmp.lt.s32.totalorder %s26, 0
        %s548 = scalar_select %p547, %s26, 0
        %s549 = smul.addr %s548, 8
        %s550 = scalar_lea.vmem %s11, %s549
        %p552 = scmp.eq.s32.totalorder %s27, 0
        // Predicated region
        $region103: #{_lambda_.8} parent=97 // pred_check
          %p553 = pneg %p552
        $region104: #{_lambda_.8} parent=97 // pred_check_branch
          %555 = sbr.rel (%p553) target = $region106
        $region105: #{_lambda_.8} parent=97 // pred_region
          %v556 = vld [vmem:[%s534] sm:$0xff]
          %v557 = vpack.c.bf16 %v556, %v556
          %v558 = vld [vmem:[%s1] sm:$0xf]
          %v559 = vld [vmem:[%s1 + $0x4] sm:$0xf]
          %v560 = vld [vmem:[%s1 + $0x8] sm:$0xf]
          %v561 = vld [vmem:[%s1 + $0xc] sm:$0xf]
          %v562 = vld [vmem:[%s1 + $0x10] sm:$0xf]
          %v563 = vld [vmem:[%s1 + $0x14] sm:$0xf]
          %v564 = vld [vmem:[%s1 + $0x18] sm:$0xf]
          %v565 = vld [vmem:[%s1 + $0x1c] sm:$0xf]
          %v566 = vld [vmem:[%s1 + $0x20] sm:$0xf]
          %v567 = vld [vmem:[%s1 + $0x24] sm:$0xf]
          %v568 = vld [vmem:[%s1 + $0x28] sm:$0xf]
          %v569 = vld [vmem:[%s1 + $0x2c] sm:$0xf]
          %v570 = vld [vmem:[%s1 + $0x30] sm:$0xf]
          %v571 = vld [vmem:[%s1 + $0x34] sm:$0xf]
          %v572 = vld [vmem:[%s1 + $0x38] sm:$0xf]
          %v573 = vld [vmem:[%s1 + $0x3c] sm:$0xf]
          %v574 = vld [vmem:[%s2] sm:$0x1]
          %v576 = vlaneseq
          %v577 = vshrl.u32 %v576, 7
          %v578 = vsub.s32 0, %v577
          %v579 = vrot.slane %v574, %v578
          %v597 = vunpack.c.l.b16 %v558
          %v598 = vunpack.c.l.b16 %v559
          %v599 = vunpack.c.l.b16 %v560
          %v600 = vunpack.c.l.b16 %v561
          %v601 = vunpack.c.l.b16 %v562
          %v602 = vunpack.c.l.b16 %v563
          %v603 = vunpack.c.l.b16 %v564
          %v604 = vunpack.c.l.b16 %v565
          %v605 = vunpack.c.l.b16 %v566
          %v606 = vunpack.c.l.b16 %v567
          %v607 = vunpack.c.l.b16 %v568
          %v608 = vunpack.c.l.b16 %v569
          %v609 = vunpack.c.l.b16 %v570
          %v610 = vunpack.c.l.b16 %v571
          %v611 = vunpack.c.l.b16 %v572
          %v612 = vunpack.c.l.b16 %v573
          %v613 = vpack.c.b16 %v598, %v597
          %v614 = vpack.c.b16 %v600, %v599
          %v615 = vpack.c.b16 %v602, %v601
          %v616 = vpack.c.b16 %v604, %v603
          %v617 = vpack.c.b16 %v606, %v605
          %v618 = vpack.c.b16 %v608, %v607
          %v619 = vpack.c.b16 %v610, %v609
          %v620 = vpack.c.b16 %v612, %v611
          %629 = vmatprep.subr.bf16.mxu0 0
          %630 = vmatpush1.bf16.msra.mxu0 %v613
          %631 = vmatprep.subr.bf16.mxu0 0
          %632 = vmatpush1.bf16.msra.mxu0 %v614
          %633 = vmatprep.subr.bf16.mxu0 0
          %634 = vmatpush1.bf16.msra.mxu0 %v615
          %635 = vmatprep.subr.bf16.mxu0 0
          %636 = vmatpush1.bf16.msra.mxu0 %v616
          %637 = vmatprep.subr.bf16.mxu0 0
          %638 = vmatpush1.bf16.msra.mxu0 %v617
          %639 = vmatprep.subr.bf16.mxu0 0
          %640 = vmatpush1.bf16.msra.mxu0 %v618
          %641 = vmatprep.subr.bf16.mxu0 0
          %642 = vmatpush1.bf16.msra.mxu0 %v619
          %643 = vmatprep.subr.bf16.mxu0 0
          %644 = vmatpush1.bf16.msra.mxu0 %v620
          %645 = vmatprep.subr.bf16.mxu0 0
          %646 = vmatpush1.bf16.msra.mxu0 0
          %647 = vmatprep.subr.bf16.mxu0 0
          %648 = vmatpush1.bf16.msra.mxu0 0
          %649 = vmatprep.subr.bf16.mxu0 0
          %650 = vmatpush1.bf16.msra.mxu0 0
          %651 = vmatprep.subr.bf16.mxu0 0
          %652 = vmatpush1.bf16.msra.mxu0 0
          %653 = vmatprep.subr.bf16.mxu0 0
          %654 = vmatpush1.bf16.msra.mxu0 0
          %655 = vmatprep.subr.bf16.mxu0 0
          %656 = vmatpush1.bf16.msra.mxu0 0
          %657 = vmatprep.subr.bf16.mxu0 0
          %658 = vmatpush1.bf16.msra.mxu0 0
          %659 = vmatprep.subr.bf16.mxu0 0
          %660 = vmatpush1.bf16.msra.mxu0 0
          %661 = vmatprep.mubr.bf16.mxu0 0
          %662 = vmatmul.mubr.bf16.gmra.mrb[0].mxu0 %v557
          %v663 = vpop.f32.mrb[0].mxu0
          %v664 = vadd.f32 %v579, %v663
          %v665 = vpop.f32.mrb[0].mxu0
          %v666 = vpop.f32.mrb[0].mxu0
          %v667 = vpop.f32.mrb[0].mxu0
          %668 = vdwg.mxu0
          %v669 = vadd.f32 %v664, %v556
          %v670 = vld [vmem:[%s3] sm:$0x1]
          %v671 = vld [vmem:[%s4] sm:$0x1]
          %672 = vadd.xlane.f32.xlu0 %v669
          %v673 = vpop.xlane.xlu0 %672
          %v674 = vrcp.pop 128.0
          %v675 = vmul.f32 %v673, %v674
          %v676 = vsub.f32 %v669, %v675
          %v677 = vmul.f32 %v676, %v676
          %678 = vadd.xlane.f32.xlu0 %v677
          %v679 = vpop.xlane.xlu0 %678
          %v680 = vmul.f32 %v679, %v674
          %v681 = vadd.f32 %v680, 1e-05
          %v682 = vrsqrt.pop %v681
          %v683 = vmul.f32 %v676, %v682
          %v685 = vlaneseq
          %v686 = vshrl.u32 %v685, 7
          %v687 = vsub.s32 0, %v686
          %v688 = vrot.slane %v670, %v687
          %v690 = vmul.f32 %v683, %v688
          %v692 = vlaneseq
          %v693 = vshrl.u32 %v692, 7
          %v694 = vsub.s32 0, %v693
          %v695 = vrot.slane %v671, %v694
          %v697 = vadd.f32 %v690, %v695
          %698 = vst [vmem:[#allocation2] sm:$0xff] %v697
          %699 = vst [vmem:[#allocation3] sm:$0xff] 0.0
        $region106: #{_lambda_.8} parent=97 // pred_fallthru
          _
        %v700 = vld [vmem:[#allocation2] sm:$0xff]
        %v701 = vpack.c.bf16 %v700, %v700
        %v702 = vld [vmem:[%s482] sm:$0xff]
        %v703 = vld [vmem:[%s482 + $0x8] sm:$0xff]
        %v704 = vld [vmem:[%s482 + $0x10] sm:$0xff]
        %v705 = vld [vmem:[%s482 + $0x18] sm:$0xff]
        %v706 = vld [vmem:[%s482 + $0x20] sm:$0xff]
        %v707 = vld [vmem:[%s482 + $0x28] sm:$0xff]
        %v708 = vld [vmem:[%s482 + $0x30] sm:$0xff]
        %v709 = vld [vmem:[%s482 + $0x38] sm:$0xff]
        %v710 = vld [vmem:[%s482 + $0x40] sm:$0xff]
        %v711 = vld [vmem:[%s482 + $0x48] sm:$0xff]
        %v712 = vld [vmem:[%s482 + $0x50] sm:$0xff]
        %v713 = vld [vmem:[%s482 + $0x58] sm:$0xff]
        %v714 = vld [vmem:[%s482 + $0x60] sm:$0xff]
        %v715 = vld [vmem:[%s482 + $0x68] sm:$0xff]
        %v716 = vld [vmem:[%s482 + $0x70] sm:$0xff]
        %v717 = vld [vmem:[%s482 + $0x78] sm:$0xff]
        %v718 = vld [vmem:[%s539] sm:$0x3]
        %v720 = vlaneseq
        %v721 = vshrl.u32 %v720, 7
        %v722 = vsub.s32 0, %v721
        %v723 = vrot.slane %v718, %v722
        %v724 = vlaneseq
        %v725 = vshrl.u32 %v724, 7
        %v726 = vsub.s32 1, %v725
        %v727 = vrot.slane %v718, %v726
        %v746 = vunpack.c.l.b16 %v702
        %v747 = vunpack.c.h.b16 %v702
        %v748 = vunpack.c.l.b16 %v703
        %v749 = vunpack.c.h.b16 %v703
        %v750 = vunpack.c.l.b16 %v704
        %v751 = vunpack.c.h.b16 %v704
        %v752 = vunpack.c.l.b16 %v705
        %v753 = vunpack.c.h.b16 %v705
        %v754 = vunpack.c.l.b16 %v706
        %v755 = vunpack.c.h.b16 %v706
        %v756 = vunpack.c.l.b16 %v707
        %v757 = vunpack.c.h.b16 %v707
        %v758 = vunpack.c.l.b16 %v708
        %v759 = vunpack.c.h.b16 %v708
        %v760 = vunpack.c.l.b16 %v709
        %v761 = vunpack.c.h.b16 %v709
        %v762 = vunpack.c.l.b16 %v710
        %v763 = vunpack.c.h.b16 %v710
        %v764 = vunpack.c.l.b16 %v711
        %v765 = vunpack.c.h.b16 %v711
        %v766 = vunpack.c.l.b16 %v712
        %v767 = vunpack.c.h.b16 %v712
        %v768 = vunpack.c.l.b16 %v713
        %v769 = vunpack.c.h.b16 %v713
        %v770 = vunpack.c.l.b16 %v714
        %v771 = vunpack.c.h.b16 %v714
        %v772 = vunpack.c.l.b16 %v715
        %v773 = vunpack.c.h.b16 %v715
        %v774 = vunpack.c.l.b16 %v716
        %v775 = vunpack.c.h.b16 %v716
        %v776 = vunpack.c.l.b16 %v717
        %v777 = vunpack.c.h.b16 %v717
        %v778 = vpack.c.b16 %v748, %v746
        %v779 = vpack.c.b16 %v749, %v747
        %v780 = vpack.c.b16 %v752, %v750
        %v781 = vpack.c.b16 %v753, %v751
        %v782 = vpack.c.b16 %v756, %v754
        %v783 = vpack.c.b16 %v757, %v755
        %v784 = vpack.c.b16 %v760, %v758
        %v785 = vpack.c.b16 %v761, %v759
        %v786 = vpack.c.b16 %v764, %v762
        %v787 = vpack.c.b16 %v765, %v763
        %v788 = vpack.c.b16 %v768, %v766
        %v789 = vpack.c.b16 %v769, %v767
        %v790 = vpack.c.b16 %v772, %v770
        %v791 = vpack.c.b16 %v773, %v771
        %v792 = vpack.c.b16 %v776, %v774
        %v793 = vpack.c.b16 %v777, %v775
        %810 = vmatprep.subr.bf16.mxu0 %v779
        %811 = vmatpush1.bf16.msra.mxu0 %v778
        %812 = vmatprep.subr.bf16.mxu0 %v781
        %813 = vmatpush1.bf16.msra.mxu0 %v780
        %814 = vmatprep.subr.bf16.mxu0 %v783
        %815 = vmatpush1.bf16.msra.mxu0 %v782
        %816 = vmatprep.subr.bf16.mxu0 %v785
        %817 = vmatpush1.bf16.msra.mxu0 %v784
        %818 = vmatprep.subr.bf16.mxu0 %v787
        %819 = vmatpush1.bf16.msra.mxu0 %v786
        %820 = vmatprep.subr.bf16.mxu0 %v789
        %821 = vmatpush1.bf16.msra.mxu0 %v788
        %822 = vmatprep.subr.bf16.mxu0 %v791
        %823 = vmatpush1.bf16.msra.mxu0 %v790
        %824 = vmatprep.subr.bf16.mxu0 %v793
        %825 = vmatpush1.bf16.msra.mxu0 %v792
        %826 = vmatprep.subr.bf16.mxu0 0
        %827 = vmatpush1.bf16.msra.mxu0 0
        %828 = vmatprep.subr.bf16.mxu0 0
        %829 = vmatpush1.bf16.msra.mxu0 0
        %830 = vmatprep.subr.bf16.mxu0 0
        %831 = vmatpush1.bf16.msra.mxu0 0
        %832 = vmatprep.subr.bf16.mxu0 0
        %833 = vmatpush1.bf16.msra.mxu0 0
        %834 = vmatprep.subr.bf16.mxu0 0
        %835 = vmatpush1.bf16.msra.mxu0 0
        %836 = vmatprep.subr.bf16.mxu0 0
        %837 = vmatpush1.bf16.msra.mxu0 0
        %838 = vmatprep.subr.bf16.mxu0 0
        %839 = vmatpush1.bf16.msra.mxu0 0
        %840 = vmatprep.subr.bf16.mxu0 0
        %841 = vmatpush1.bf16.msra.mxu0 0
        %842 = vmatprep.mubr.bf16.mxu0 0
        %843 = vmatmul.mubr.bf16.gmra.mrb[0].mxu0 %v701
        %v844 = vpop.f32.mrb[0].mxu0
        %v845 = vadd.f32 %v723, %v844
        %v846 = vpop.f32.mrb[0].mxu0
        %v847 = vadd.f32 %v727, %v846
        %v848 = vpop.f32.mrb[0].mxu0
        %v849 = vpop.f32.mrb[0].mxu0
        %850 = vdwg.mxu0
        %v851 = vmax.f32 %v845, 0.0
        %v852 = vmax.f32 %v847, 0.0
        %v853 = vld [vmem:[#allocation3] sm:$0xff]
        %v854 = vpack.c.bf16 %v851, %v851
        %v855 = vpack.c.bf16 %v852, %v852
        %v856 = vld [vmem:[%s545] sm:$0xf]
        %v857 = vld [vmem:[%s545 + $0x4] sm:$0xf]
        %v858 = vld [vmem:[%s545 + $0x8] sm:$0xf]
        %v859 = vld [vmem:[%s545 + $0xc] sm:$0xf]
        %v860 = vld [vmem:[%s545 + $0x10] sm:$0xf]
        %v861 = vld [vmem:[%s545 + $0x14] sm:$0xf]
        %v862 = vld [vmem:[%s545 + $0x18] sm:$0xf]
        %v863 = vld [vmem:[%s545 + $0x1c] sm:$0xf]
        %v864 = vld [vmem:[%s545 + $0x20] sm:$0xf]
        %v865 = vld [vmem:[%s545 + $0x24] sm:$0xf]
        %v866 = vld [vmem:[%s545 + $0x28] sm:$0xf]
        %v867 = vld [vmem:[%s545 + $0x2c] sm:$0xf]
        %v868 = vld [vmem:[%s545 + $0x30] sm:$0xf]
        %v869 = vld [vmem:[%s545 + $0x34] sm:$0xf]
        %v870 = vld [vmem:[%s545 + $0x38] sm:$0xf]
        %v871 = vld [vmem:[%s545 + $0x3c] sm:$0xf]
        %v872 = vld [vmem:[%s545 + $0x40] sm:$0xf]
        %v873 = vld [vmem:[%s545 + $0x44] sm:$0xf]
        %v874 = vld [vmem:[%s545 + $0x48] sm:$0xf]
        %v875 = vld [vmem:[%s545 + $0x4c] sm:$0xf]
        %v876 = vld [vmem:[%s545 + $0x50] sm:$0xf]
        %v877 = vld [vmem:[%s545 + $0x54] sm:$0xf]
        %v878 = vld [vmem:[%s545 + $0x58] sm:$0xf]
        %v879 = vld [vmem:[%s545 + $0x5c] sm:$0xf]
        %v880 = vld [vmem:[%s545 + $0x60] sm:$0xf]
        %v881 = vld [vmem:[%s545 + $0x64] sm:$0xf]
        %v882 = vld [vmem:[%s545 + $0x68] sm:$0xf]
        %v883 = vld [vmem:[%s545 + $0x6c] sm:$0xf]
        %v884 = vld [vmem:[%s545 + $0x70] sm:$0xf]
        %v885 = vld [vmem:[%s545 + $0x74] sm:$0xf]
        %v886 = vld [vmem:[%s545 + $0x78] sm:$0xf]
        %v887 = vld [vmem:[%s545 + $0x7c] sm:$0xf]
        %v920 = vunpack.c.l.b16 %v856
        %v921 = vunpack.c.l.b16 %v857
        %v922 = vunpack.c.l.b16 %v858
        %v923 = vunpack.c.l.b16 %v859
        %v924 = vunpack.c.l.b16 %v860
        %v925 = vunpack.c.l.b16 %v861
        %v926 = vunpack.c.l.b16 %v862
        %v927 = vunpack.c.l.b16 %v863
        %v928 = vunpack.c.l.b16 %v864
        %v929 = vunpack.c.l.b16 %v865
        %v930 = vunpack.c.l.b16 %v866
        %v931 = vunpack.c.l.b16 %v867
        %v932 = vunpack.c.l.b16 %v868
        %v933 = vunpack.c.l.b16 %v869
        %v934 = vunpack.c.l.b16 %v870
        %v935 = vunpack.c.l.b16 %v871
        %v936 = vunpack.c.l.b16 %v872
        %v937 = vunpack.c.l.b16 %v873
        %v938 = vunpack.c.l.b16 %v874
        %v939 = vunpack.c.l.b16 %v875
        %v940 = vunpack.c.l.b16 %v876
        %v941 = vunpack.c.l.b16 %v877
        %v942 = vunpack.c.l.b16 %v878
        %v943 = vunpack.c.l.b16 %v879
        %v944 = vunpack.c.l.b16 %v880
        %v945 = vunpack.c.l.b16 %v881
        %v946 = vunpack.c.l.b16 %v882
        %v947 = vunpack.c.l.b16 %v883
        %v948 = vunpack.c.l.b16 %v884
        %v949 = vunpack.c.l.b16 %v885
        %v950 = vunpack.c.l.b16 %v886
        %v951 = vunpack.c.l.b16 %v887
        %v952 = vpack.c.b16 %v921, %v920
        %v953 = vpack.c.b16 %v923, %v922
        %v954 = vpack.c.b16 %v925, %v924
        %v955 = vpack.c.b16 %v927, %v926
        %v956 = vpack.c.b16 %v929, %v928
        %v957 = vpack.c.b16 %v931, %v930
        %v958 = vpack.c.b16 %v933, %v932
        %v959 = vpack.c.b16 %v935, %v934
        %v960 = vpack.c.b16 %v937, %v936
        %v961 = vpack.c.b16 %v939, %v938
        %v962 = vpack.c.b16 %v941, %v940
        %v963 = vpack.c.b16 %v943, %v942
        %v964 = vpack.c.b16 %v945, %v944
        %v965 = vpack.c.b16 %v947, %v946
        %v966 = vpack.c.b16 %v949, %v948
        %v967 = vpack.c.b16 %v951, %v950
        %984 = vmatprep.subr.bf16.mxu0 0
        %985 = vmatpush1.bf16.msra.mxu0 %v952
        %986 = vmatprep.subr.bf16.mxu0 0
        %987 = vmatpush1.bf16.msra.mxu0 %v953
        %988 = vmatprep.subr.bf16.mxu0 0
        %989 = vmatpush1.bf16.msra.mxu0 %v954
        %990 = vmatprep.subr.bf16.mxu0 0
        %991 = vmatpush1.bf16.msra.mxu0 %v955
        %992 = vmatprep.subr.bf16.mxu0 0
        %993 = vmatpush1.bf16.msra.mxu0 %v956
        %994 = vmatprep.subr.bf16.mxu0 0
        %995 = vmatpush1.bf16.msra.mxu0 %v957
        %996 = vmatprep.subr.bf16.mxu0 0
        %997 = vmatpush1.bf16.msra.mxu0 %v958
        %998 = vmatprep.subr.bf16.mxu0 0
        %999 = vmatpush1.bf16.msra.mxu0 %v959
        %1000 = vmatprep.subr.bf16.mxu0 0
        %1001 = vmatpush1.bf16.msra.mxu0 %v960
        %1002 = vmatprep.subr.bf16.mxu0 0
        %1003 = vmatpush1.bf16.msra.mxu0 %v961
        %1004 = vmatprep.subr.bf16.mxu0 0
        %1005 = vmatpush1.bf16.msra.mxu0 %v962
        %1006 = vmatprep.subr.bf16.mxu0 0
        %1007 = vmatpush1.bf16.msra.mxu0 %v963
        %1008 = vmatprep.subr.bf16.mxu0 0
        %1009 = vmatpush1.bf16.msra.mxu0 %v964
        %1010 = vmatprep.subr.bf16.mxu0 0
        %1011 = vmatpush1.bf16.msra.mxu0 %v965
        %1012 = vmatprep.subr.bf16.mxu0 0
        %1013 = vmatpush1.bf16.msra.mxu0 %v966
        %1014 = vmatprep.subr.bf16.mxu0 0
        %1015 = vmatpush1.bf16.msra.mxu0 %v967
        %1016 = vmatprep.mubr.bf16.mxu0 %v855
        %1017 = vmatmul.mubr.bf16.gmra.mrb[0].mxu0 %v854
        %v1018 = vpop.f32.mrb[0].mxu0
        %v1019 = vadd.f32 0.0, %v1018
        %v1020 = vpop.f32.mrb[0].mxu0
        %v1021 = vpop.f32.mrb[0].mxu0
        %v1022 = vpop.f32.mrb[0].mxu0
        %1023 = vdwg.mxu0
        %v1024 = vadd.f32 %v853, %v1019
        %1025 = vst [vmem:[#allocation3] sm:$0xff] %v1024
        %p1026 = scmp.eq.s32.totalorder %s27, 1
        // Predicated region
        $region107: #{_lambda_.8} parent=97 // pred_check
          %p1027 = pneg %p1026
        $region108: #{_lambda_.8} parent=97 // pred_check_branch
          %1029 = sbr.rel (%p1027) target = $region110
        $region109: #{_lambda_.8} parent=97 // pred_region
          %v1030 = vld [vmem:[#allocation3] sm:$0xff]
          %v1031 = vld [vmem:[%s8] sm:$0x1]
          %v1033 = vlaneseq
          %v1034 = vshrl.u32 %v1033, 7
          %v1035 = vsub.s32 0, %v1034
          %v1036 = vrot.slane %v1031, %v1035
          %v1038 = vadd.f32 %v1030, %v1036
          %v1039 = vld [vmem:[#allocation2] sm:$0xff]
          %v1040 = vadd.f32 %v1038, %v1039
          %v1041 = vld [vmem:[%s9] sm:$0x1]
          %v1042 = vld [vmem:[%s10] sm:$0x1]
          %1043 = vadd.xlane.f32.xlu0 %v1040
          %v1044 = vpop.xlane.xlu0 %1043
          %v1045 = vrcp.pop 128.0
          %v1046 = vmul.f32 %v1044, %v1045
          %v1047 = vsub.f32 %v1040, %v1046
          %v1048 = vmul.f32 %v1047, %v1047
          %1049 = vadd.xlane.f32.xlu0 %v1048
          %v1050 = vpop.xlane.xlu0 %1049
          %v1051 = vmul.f32 %v1050, %v1045
          %v1052 = vadd.f32 %v1051, 1e-05
          %v1053 = vrsqrt.pop %v1052
          %v1054 = vmul.f32 %v1047, %v1053
          %v1056 = vlaneseq
          %v1057 = vshrl.u32 %v1056, 7
          %v1058 = vsub.s32 0, %v1057
          %v1059 = vrot.slane %v1041, %v1058
          %v1061 = vmul.f32 %v1054, %v1059
          %v1063 = vlaneseq
          %v1064 = vshrl.u32 %v1063, 7
          %v1065 = vsub.s32 0, %v1064
          %v1066 = vrot.slane %v1042, %v1065
          %v1068 = vadd.f32 %v1061, %v1066
          %1069 = vst [vmem:[%s550] sm:$0xff] %v1068
        $region110: #{_lambda_.8} parent=97 // pred_fallthru
          _
        %p1070 = scmp.lt.s32.totalorder %s26, 0
        %s1071 = scalar_select %p1070, %s26, 0
        %s1072 = smul.addr %s1071, 8
        %s1073 = scalar_lea.vmem %s11, %s1072
        // Predicated region
        $region111: #{_lambda_.8} parent=97 // pred_check
          %p1074 = pneg %p303
        $region112: #{_lambda_.8} parent=97 // pred_check_branch
          %1076 = sbr.rel (%p1074) target = $region114
        $region113: #{_lambda_.8} parent=97 // pred_region
          _
        $region114: #{_lambda_.8} parent=97 // pred_fallthru
          _
        // Predicated region
        $region115: #{_lambda_.8} parent=97 // pred_check
          %p1077 = pneg %p303
        $region116: #{_lambda_.8} parent=97 // pred_check_branch
          %1079 = sbr.rel (%p1077) target = $region118
        $region117: #{_lambda_.8} parent=97 // pred_region
          %p1080 = scmp.lt.s32.totalorder %s26, 0
          %s1081 = scalar_select %p1080, %s26, 0
          %s1082 = smul.addr %s1081, 8
          %s1083 = scalar_lea.vmem %s11, %s1082
        $region118: #{_lambda_.8} parent=97 // pred_fallthru
          _
      $region98: #{_lambda_.8} parent=5 // pred_fallthru
        _
      %p1084 = scmp.le.s32.totalorder 2, %s17
      // Predicated region
      $region119: #{_lambda_.8} parent=5 // pred_check
        %p1085 = pneg %p1084
      $region120: #{_lambda_.8} parent=5 // pred_check_branch
        %1087 = sbr.rel (%p1085) target = $region122
      $region121: #{_lambda_.8} parent=5 // pred_region
        %s1088 = ssub.s32 %s17, 2
      $region122: #{_lambda_.8} parent=5 // pred_fallthru
        _
    $region6: #{_lambda_.8} parent=1 // loop_footer
      %s21 = sadd.s32 1, %s17
    $region7: #{_lambda_.8} parent=1 // loop_footer_branch
      %16 = sbr.rel target = $region3
    $region8: #{_lambda_.8} parent=1 // loop_exit
      _

</llo_original>
